<compile_context>
chip_gen: v7x
topology: tpu7x:2x2x1
jax: 0.10.0
libtpu: 0.0.40
codegen_flags: <defaults>
</compile_context>

<pallas_src>
import functools

import numpy as np
import jax
import jax.numpy as jnp
from jax.experimental import pallas as pl
from jax.experimental.pallas import tpu as pltpu

EPS = 1e-5                      # nn.LayerNorm default eps
INV_SQRT2 = 0.7071067811865476
LANES = 128


def _round_up(x, m):
    return ((x + m - 1) // m) * m


def _gelu(v):
    # exact GELU (erf), matching torch.nn.GELU() default.
    # (tanh-approx GELU would move this to the EUP slot if VALU saturates.)
    return 0.5 * v * (1.0 + jax.lax.erf(v * INV_SQRT2))


def _layernorm_ref(v, g, b):
    mu = jnp.mean(v, axis=-1, keepdims=True)
    var = jnp.mean(jnp.square(v - mu), axis=-1, keepdims=True)
    return (v - mu) * jax.lax.rsqrt(var + EPS) * g + b


def _layernorm(v, g, b, true_dim, lane_mask):
    """LayerNorm over the (possibly lane-padded) last axis.

    If lane_mask is None the hidden dim is exactly the lane width and the
    cheap unmasked path is used; otherwise statistics only use the first
    `true_dim` lanes."""
    if lane_mask is None:
        mu = jnp.mean(v, axis=-1, keepdims=True)
        d = v - mu
        var = jnp.mean(d * d, axis=-1, keepdims=True)
    else:
        inv_n = 1.0 / float(true_dim)
        vm = jnp.where(lane_mask, v, 0.0)
        mu = jnp.sum(vm, axis=-1, keepdims=True) * inv_n
        d = jnp.where(lane_mask, v - mu, 0.0)
        var = jnp.sum(d * d, axis=-1, keepdims=True) * inv_n
    return (v - mu) * jax.lax.rsqrt(var + EPS) * g + b


# ------------------------------- kernel --------------------------------------
def mixer_block_kernel(patches_ref, wpatch_ref,
                       ltg_ref, ltb_ref, wt1t_ref, bt1_ref, wt2t_ref, bt2_ref,
                       lcg_ref, lcb_ref, wc1_ref, bc1_ref, wc2_ref, bc2_ref,
                       lfg_ref, lfb_ref, wfc_ref, bfc_ref,
                       out_ref, h_ref,
                       *, num_blocks, b_block, num_tokens, hidden_dim):
    f32, bf16 = jnp.float32, jnp.bfloat16
    T = num_tokens
    Hp = wpatch_ref.shape[1]
    Dt = wt1t_ref.shape[0]
    n_rows = b_block * T
    blk = pl.program_id(1)

    padded = hidden_dim != Hp
    hmask = (jax.lax.broadcasted_iota(jnp.int32, (1, Hp), 1) < hidden_dim
             if padded else None)

    # ---- patch embedding: only on the first mixer block of each batch tile --
    @pl.when(blk == 0)
    def _():
        p = patches_ref[...].reshape(n_rows, patches_ref.shape[-1])   # bf16
        h_ref[...] = jnp.dot(p, wpatch_ref[...], preferred_element_type=f32)

    h = h_ref[...]                                         # [n_rows, Hp] f32

    # ---- token mixing: one batched contraction over the token axis ----
    ln = _layernorm(h, ltg_ref[...], ltb_ref[...], hidden_dim, hmask)
    ln3 = ln.astype(bf16).reshape(b_block, T, Hp)          # [b, T, Hp]
    w1 = jnp.broadcast_to(wt1t_ref[...], (b_block, Dt, T))  # bf16, tiny
    a = _gelu(jnp.einsum("bdt,bth->bdh", w1, ln3,
                         preferred_element_type=f32) + bt1_ref[...])
    w2 = jnp.broadcast_to(wt2t_ref[...], (b_block, T, Dt))  # bf16, tiny
    tok = (jnp.einsum("btd,bdh->bth", w2, a.astype(bf16),
                      preferred_element_type=f32) + bt2_ref[...])
    tok = tok.reshape(n_rows, Hp)
    if padded:
        # keep the padded hidden lanes of h exactly 0 (bias is broadcast
        # across all lanes otherwise)
        tok = jnp.where(hmask, tok, 0.0)
    h = h + tok

    # ---- channel mixing: all images' tokens batched together ----
    ln2 = _layernorm(h, lcg_ref[...], lcb_ref[...], hidden_dim, hmask)
    c = _gelu(jnp.dot(ln2.astype(bf16), wc1_ref[...],
                      preferred_element_type=f32) + bc1_ref[...])
    c = (jnp.dot(c.astype(bf16), wc2_ref[...],
                 preferred_element_type=f32) + bc2_ref[...])
    h = h + c
    h_ref[...] = h

    # ---- final LayerNorm, token-mean pooling, linear head (last block) ----
    @pl.when(blk == num_blocks - 1)
    def _():
        hf = _layernorm(h, lfg_ref[...], lfb_ref[...], hidden_dim, hmask)
        pooled = jnp.mean(hf.reshape(b_block, T, Hp), axis=1)   # [b, Hp]
        out_ref[0] = (jnp.dot(pooled.astype(bf16), wfc_ref[...],
                              preferred_element_type=f32) + bfc_ref[...])


# ---------------------------- host-side prep ----------------------------------
def extract_patches(x_nchw, patch_size):
    """NCHW image -> [B, T, C*p*p] with (c, dy, dx) flattening (conv order)."""
    B, C, H, W = x_nchw.shape
    S = H // patch_size
    x = x_nchw.reshape(B, C, S, patch_size, S, patch_size)
    x = x.transpose(0, 2, 4, 1, 3, 5)                      # [B, S, S, C, p, p]
    return x.reshape(B, S * S, C * patch_size * patch_size)


def _pad2(a, rows, cols):
    return jnp.pad(a, ((0, rows - a.shape[0]), (0, cols - a.shape[1])))


def _pad_last(a, new_last):
    pad = [(0, 0)] * (a.ndim - 1) + [(0, new_last - a.shape[-1])]
    return jnp.pad(a, pad)


def pack_params_for_kernel(params):
    """Zero-pad lane dims to 128, pre-transpose token-mixing weights and cast
    matmul weights to bf16 (biases / LN params stay f32)."""
    Cpp, H = params["w_patch"].shape
    Dc = params["w_ch1"].shape[2]
    NC = params["w_fc"].shape[1]
    Hp, Cppp = _round_up(H, LANES), _round_up(Cpp, LANES)
    Dcp, NCp = _round_up(Dc, LANES), _round_up(NC, LANES)

    f32, bf16 = jnp.float32, jnp.bfloat16
    kp = dict(
        w_patch=_pad2(params["w_patch"], Cppp, Hp).astype(bf16),
        ln_tok_g=_pad_last(params["ln_tok_g"], Hp)[:, None, :].astype(f32),
        ln_tok_b=_pad_last(params["ln_tok_b"], Hp)[:, None, :].astype(f32),
        w_tok1_t=jnp.transpose(params["w_tok1"], (0, 2, 1)).astype(bf16),  # [NB,Dt,T]
        b_tok1=params["b_tok1"][..., None].astype(f32),                    # [NB,Dt,1]
        w_tok2_t=jnp.transpose(params["w_tok2"], (0, 2, 1)).astype(bf16),  # [NB,T,Dt]
        b_tok2=params["b_tok2"][..., None].astype(f32),                    # [NB,T,1]
        ln_ch_g=_pad_last(params["ln_ch_g"], Hp)[:, None, :].astype(f32),
        ln_ch_b=_pad_last(params["ln_ch_b"], Hp)[:, None, :].astype(f32),
        w_ch1=jnp.pad(params["w_ch1"],
                      ((0, 0), (0, Hp - H), (0, Dcp - Dc))).astype(bf16),
        b_ch1=_pad_last(params["b_ch1"], Dcp)[:, None, :].astype(f32),
        w_ch2=jnp.pad(params["w_ch2"],
                      ((0, 0), (0, Dcp - Dc), (0, Hp - H))).astype(bf16),
        b_ch2=_pad_last(params["b_ch2"], Hp)[:, None, :].astype(f32),
        ln_f_g=_pad_last(params["ln_f_g"][None, :], Hp).astype(f32),
        ln_f_b=_pad_last(params["ln_f_b"][None, :], Hp).astype(f32),
        w_fc=_pad2(params["w_fc"], Hp, NCp).astype(bf16),
        b_fc=_pad_last(params["b_fc"][None, :], NCp).astype(f32),
    )
    dims = dict(H=H, Hp=Hp, Cppp=Cppp, Dcp=Dcp, NC=NC, NCp=NCp)
    return kp, dims


def _num_tensorcores():
    """2 TensorCores per chip on v7x, 1 on v5e/v6e (megacore-aware batching)."""
    try:
        kind = jax.devices()[0].device_kind.lower()
        if "7" in kind:
            return 2
    except Exception:
        pass
    return 1


def _vmem_limit_bytes():
    """Generation-aware VMEM limit: ~3/4 of physical, capped at 96 MiB."""
    try:
        cap = int(pltpu.get_tpu_info().vmem_capacity_bytes)
    except Exception:
        cap = 64 * 1024 * 1024
    return max(32 * 1024 * 1024, min((cap * 3) // 4, 96 * 1024 * 1024))


# ------------------------------- wrapper --------------------------------------
def mlp_mixer_forward(x_nchw, params, *, patch_size, num_blocks, b_block=None):
    patches = extract_patches(x_nchw, patch_size).astype(jnp.float32)
    B, T, Cpp = patches.shape
    kp, dims = pack_params_for_kernel(params)
    H, Hp, Cppp = dims["H"], dims["Hp"], dims["Cppp"]
    NC, NCp = dims["NC"], dims["NCp"]

    num_tc = _num_tensorcores()
    if b_block is None:
        if num_tc <= 1:
            b_block = B                    # single TC: one big grid step
        else:
            b_block = max(1, B // num_tc)  # >= num_tc parallel steps on v7x
            while B % b_block:
                b_block -= 1
    assert B % b_block == 0
    n_batch_steps = B // b_block
    grid = (n_batch_steps, num_blocks)     # batch "parallel", blocks "arbitrary"

    # only per-grid-step DMA that scales with batch: stream it in bf16
    patches_p = _pad_last(patches, Cppp).astype(jnp.bfloat16)   # [B, T, Cppp]

    inputs = [
        patches_p, kp["w_patch"],
        kp["ln_tok_g"], kp["ln_tok_b"], kp["w_tok1_t"], kp["b_tok1"],
        kp["w_tok2_t"], kp["b_tok2"],
        kp["ln_ch_g"], kp["ln_ch_b"], kp["w_ch1"], kp["b_ch1"],
        kp["w_ch2"], kp["b_ch2"],
        kp["ln_f_g"], kp["ln_f_b"], kp["w_fc"], kp["b_fc"],
    ]
    # which inputs carry a leading [num_blocks] axis and are streamed per block
    per_block = [False, False,
                 True, True, True, True, True, True,
                 True, True, True, True, True, True,
                 False, False, False, False]

    def const_spec(a):
        nd = a.ndim
        return pl.BlockSpec(a.shape, lambda g, blk, nd=nd: (0,) * nd)

    def block_stream_spec(a):
        nd = a.ndim
        return pl.BlockSpec((None,) + tuple(a.shape[1:]),
                            lambda g, blk, nd=nd: (blk,) + (0,) * (nd - 1))

    in_specs = [pl.BlockSpec((b_block, T, Cppp), lambda g, blk: (g, 0, 0))]
    for a, pb in zip(inputs[1:], per_block[1:]):
        in_specs.append(block_stream_spec(a) if pb else const_spec(a))
    # TODO(synk): at production sizes the truly constant specs (patch-embed /
    # head weights) could additionally use pipeline_mode=pl.Buffered(1) to
    # avoid double-buffering them.

    out = pl.pallas_call(
        functools.partial(mixer_block_kernel, num_blocks=num_blocks,
                          b_block=b_block, num_tokens=T, hidden_dim=H),
        out_shape=jax.ShapeDtypeStruct((n_batch_steps, b_block, NCp),
                                       jnp.float32),
        grid=grid,
        in_specs=in_specs,
        out_specs=pl.BlockSpec((1, b_block, NCp), lambda g, blk: (g, 0, 0)),
        scratch_shapes=[pltpu.VMEM((b_block * T, Hp), jnp.float32)],
        compiler_params=pltpu.CompilerParams(
            dimension_semantics=("parallel", "arbitrary"),
            vmem_limit_bytes=_vmem_limit_bytes()),
    )(*inputs)
    return out.reshape(B, NCp)[:, :NC]


# ---------------------------- pure-JAX reference ------------------------------
def mlp_mixer_reference(x_nchw, params, *, patch_size, num_blocks):
    patches = extract_patches(x_nchw, patch_size).astype(jnp.float32)
    h = jnp.einsum("btp,ph->bth", patches, params["w_patch"])
    for blk in range(num_blocks):
        ln = _layernorm_ref(h, params["ln_tok_g"][blk], params["ln_tok_b"][blk])
        lnT = jnp.swapaxes(ln, 1, 2)                       # [B, H, T]
        t = _gelu(jnp.einsum("bht,td->bhd", lnT, params["w_tok1"][blk])
                  + params["b_tok1"][blk])
        t = (jnp.einsum("bhd,dt->bht", t, params["w_tok2"][blk])
             + params["b_tok2"][blk])
        h = h + jnp.swapaxes(t, 1, 2)
        ln2 = _layernorm_ref(h, params["ln_ch_g"][blk], params["ln_ch_b"][blk])
        c = _gelu(jnp.einsum("bth,hd->btd", ln2, params["w_ch1"][blk])
                  + params["b_ch1"][blk])
        c = (jnp.einsum("btd,dh->bth", c, params["w_ch2"][blk])
             + params["b_ch2"][blk])
        h = h + c
    hf = _layernorm_ref(h, params["ln_f_g"], params["ln_f_b"])
    pooled = jnp.mean(hf, axis=1)
    return jnp.einsum("bh,hc->bc", pooled, params["w_fc"]) + params["b_fc"]


# ------------------------------- params --------------------------------------
def make_params(key, *, num_blocks, num_tokens, hidden_dim,
                tokens_mlp_dim, channels_mlp_dim, num_classes, in_feat):
    ks = jax.random.split(key, 16)
    n = lambda k, shape, s=0.05: (s * jax.random.normal(k, shape)).astype(jnp.float32)
    NB, T, H, DT, DC, NC = (num_blocks, num_tokens, hidden_dim,
                            tokens_mlp_dim, channels_mlp_dim, num_classes)
    return dict(
        w_patch=n(ks[0], (in_feat, H)),
        ln_tok_g=1.0 + n(ks[1], (NB, H), 0.1),
        ln_tok_b=n(ks[2], (NB, H), 0.1),
        w_tok1=n(ks[3], (NB, T, DT)),
        b_tok1=n(ks[4], (NB, DT), 0.02),
        w_tok2=n(ks[5], (NB, DT, T)),
        b_tok2=n(ks[6], (NB, T), 0.02),
        ln_ch_g=1.0 + n(ks[7], (NB, H), 0.1),
        ln_ch_b=n(ks[8], (NB, H), 0.1),
        w_ch1=n(ks[9], (NB, H, DC)),
        b_ch1=n(ks[10], (NB, DC), 0.02),
        w_ch2=n(ks[11], (NB, DC, H)),
        b_ch2=n(ks[12], (NB, H), 0.02),
        ln_f_g=1.0 + n(ks[13], (H,), 0.1),
        ln_f_b=n(ks[14], (H,), 0.1),
        w_fc=n(ks[15], (H, NC)),
        b_fc=jnp.zeros((NC,), jnp.float32),
    )


# --------------------------------- main ---------------------------------------
if __name__ == "__main__":
    # small configuration
    num_classes = 8
    num_blocks = 2
    patch_size = 4
    hidden_dim = 32
    tokens_mlp_dim = 16
    channels_mlp_dim = 64
    image_size = 16
    batch = 8

    num_tokens = (image_size // patch_size) ** 2            # 16
    in_feat = 3 * patch_size * patch_size                   # 48

    root = jax.random.PRNGKey(0)
    kx, kp = jax.random.split(root)
    x = jax.random.normal(kx, (batch, 3, image_size, image_size),
                          dtype=jnp.float32)
    params = make_params(kp, num_blocks=num_blocks, num_tokens=num_tokens,
                         hidden_dim=hidden_dim, tokens_mlp_dim=tokens_mlp_dim,
                         channels_mlp_dim=channels_mlp_dim,
                         num_classes=num_classes, in_feat=in_feat)

    out = mlp_mixer_forward(x, params, patch_size=patch_size,
                            num_blocks=num_blocks)
    out = jax.block_until_ready(out)

    ref = jax.block_until_ready(
        mlp_mixer_reference(x, params, patch_size=patch_size,
                            num_blocks=num_blocks))

    assert out.shape == (batch, num_classes)
    # kernel uses bf16 MXU operands (f32 accumulate); reference is pure f32,
    # so tolerance is set for bf16 operand rounding.
    np.testing.assert_allclose(np.asarray(out), np.asarray(ref),
                               rtol=5e-2, atol=8e-3)
    print("KERNEL_OK")
</pallas_src>

<mosaic_0001>
module attributes {stable_mosaic.version = 11 : i64} {
  func.func @mixer_block_kernel(%arg0: i32, %arg1: i32, %arg2: memref<8x16x128xbf16, #tpu.memory_space<vmem>>, %arg3: memref<128x128xbf16, #tpu.memory_space<vmem>>, %arg4: memref<1x1x128xf32, #tpu.memory_space<vmem>>, %arg5: memref<1x1x128xf32, #tpu.memory_space<vmem>>, %arg6: memref<1x16x16xbf16, #tpu.memory_space<vmem>>, %arg7: memref<1x16x1xf32, #tpu.memory_space<vmem>>, %arg8: memref<1x16x16xbf16, #tpu.memory_space<vmem>>, %arg9: memref<1x16x1xf32, #tpu.memory_space<vmem>>, %arg10: memref<1x1x128xf32, #tpu.memory_space<vmem>>, %arg11: memref<1x1x128xf32, #tpu.memory_space<vmem>>, %arg12: memref<1x128x128xbf16, #tpu.memory_space<vmem>>, %arg13: memref<1x1x128xf32, #tpu.memory_space<vmem>>, %arg14: memref<1x128x128xbf16, #tpu.memory_space<vmem>>, %arg15: memref<1x1x128xf32, #tpu.memory_space<vmem>>, %arg16: memref<1x128xf32, #tpu.memory_space<vmem>>, %arg17: memref<1x128xf32, #tpu.memory_space<vmem>>, %arg18: memref<128x128xbf16, #tpu.memory_space<vmem>>, %arg19: memref<1x128xf32, #tpu.memory_space<vmem>>, %arg20: memref<1x8x128xf32, #tpu.memory_space<vmem>>, %arg21: memref<128x128xf32, #tpu.memory_space<vmem>>) attributes {dimension_semantics = [#tpu.dimension_semantics<parallel>, #tpu.dimension_semantics<arbitrary>], iteration_bounds = array<i64: 1, 2>, scalar_prefetch = 0 : i64, scratch_operands = 1 : i64, tpu.core_type = #tpu.core_type<tc>, window_params = [{transform_indices = @transform_0, window_bounds = array<i64: 8, 16, 128>}, {pipeline_mode = #tpu.pipeline_mode<synchronous>, transform_indices = @transform_1, window_bounds = array<i64: 128, 128>}, {transform_indices = @transform_2, window_bounds = array<i64: 1, 1, 128>}, {transform_indices = @transform_3, window_bounds = array<i64: 1, 1, 128>}, {transform_indices = @transform_4, window_bounds = array<i64: 1, 16, 16>}, {transform_indices = @transform_5, window_bounds = array<i64: 1, 16, 1>}, {transform_indices = @transform_6, window_bounds = array<i64: 1, 16, 16>}, {transform_indices = @transform_7, window_bounds = array<i64: 1, 16, 1>}, {transform_indices = @transform_8, window_bounds = array<i64: 1, 1, 128>}, {transform_indices = @transform_9, window_bounds = array<i64: 1, 1, 128>}, {transform_indices = @transform_10, window_bounds = array<i64: 1, 128, 128>}, {transform_indices = @transform_11, window_bounds = array<i64: 1, 1, 128>}, {transform_indices = @transform_12, window_bounds = array<i64: 1, 128, 128>}, {transform_indices = @transform_13, window_bounds = array<i64: 1, 1, 128>}, {pipeline_mode = #tpu.pipeline_mode<synchronous>, transform_indices = @transform_14, window_bounds = array<i64: 1, 128>}, {pipeline_mode = #tpu.pipeline_mode<synchronous>, transform_indices = @transform_15, window_bounds = array<i64: 1, 128>}, {pipeline_mode = #tpu.pipeline_mode<synchronous>, transform_indices = @transform_16, window_bounds = array<i64: 128, 128>}, {pipeline_mode = #tpu.pipeline_mode<synchronous>, transform_indices = @transform_17, window_bounds = array<i64: 1, 128>}, {transform_indices = @transform_18, window_bounds = array<i64: 1, 8, 128>}]} {
    %0 = tpu.iota {dimensions = array<i32: 1>} : vector<1x128xi32>
    %c32_i32 = arith.constant 32 : i32
    %1 = vector.broadcast %c32_i32 : i32 to vector<1x128xi32>
    %2 = arith.cmpi slt, %0, %1 : vector<1x128xi32>
    %c0_i32 = arith.constant 0 : i32
    %3 = arith.cmpi eq, %arg1, %c0_i32 : i32
    %4 = arith.extui %3 : i1 to i32
    %c0_i32_0 = arith.constant 0 : i32
    %5 = arith.cmpi ne, %4, %c0_i32_0 : i32
    scf.if %5 {
      %c0_65 = arith.constant 0 : index
      %c0_66 = arith.constant 0 : index
      %c0_67 = arith.constant 0 : index
      %141 = vector.load %arg2[%c0_65, %c0_66, %c0_67] : memref<8x16x128xbf16, #tpu.memory_space<vmem>>, vector<8x16x128xbf16>
      %142 = vector.shape_cast %141 : vector<8x16x128xbf16> to vector<128x128xbf16>
      %c0_68 = arith.constant 0 : index
      %c0_69 = arith.constant 0 : index
      %143 = vector.load %arg3[%c0_68, %c0_69] : memref<128x128xbf16, #tpu.memory_space<vmem>>, vector<128x128xbf16>
      %cst_70 = arith.constant dense<0.000000e+00> : vector<128x128xf32>
      %144 = tpu.matmul %142, %143, %cst_70 {dimension_numbers = #tpu.dot_dimension_numbers<[1], [0], [0], [1], [0, 0, 1, 1], [], []>} : vector<128x128xbf16>, vector<128x128xbf16>, vector<128x128xf32> -> vector<128x128xf32>
      %c0_71 = arith.constant 0 : index
      %c0_72 = arith.constant 0 : index
      %145 = vector.load %arg21[%c0_71, %c0_72] : memref<128x128xf32, #tpu.memory_space<vmem>>, vector<128x128xf32>
      tpu.vector_store %arg21[%c0_71, %c0_72], %144 {strides = array<i32>} : memref<128x128xf32, #tpu.memory_space<vmem>>, vector<128x128xf32>,
    } else {
    }
    %c0 = arith.constant 0 : index
    %c0_1 = arith.constant 0 : index
    %6 = vector.load %arg21[%c0, %c0_1] : memref<128x128xf32, #tpu.memory_space<vmem>>, vector<128x128xf32>
    %c0_2 = arith.constant 0 : index
    %c0_3 = arith.constant 0 : index
    %c0_4 = arith.constant 0 : index
    %7 = vector.load %arg4[%c0_2, %c0_3, %c0_4] : memref<1x1x128xf32, #tpu.memory_space<vmem>>, vector<1x1x128xf32>
    %8 = vector.shape_cast %7 : vector<1x1x128xf32> to vector<1x128xf32>
    %c0_5 = arith.constant 0 : index
    %c0_6 = arith.constant 0 : index
    %c0_7 = arith.constant 0 : index
    %9 = vector.load %arg5[%c0_5, %c0_6, %c0_7] : memref<1x1x128xf32, #tpu.memory_space<vmem>>, vector<1x1x128xf32>
    %10 = vector.shape_cast %9 : vector<1x1x128xf32> to vector<1x128xf32>
    %cst = arith.constant 0.000000e+00 : f32
    %11 = vector.shape_cast %2 : vector<1x128xi1> to vector<1x128xi1>
    %12 = vector.broadcast %11 : vector<1x128xi1> to vector<128x128xi1>
    %13 = vector.broadcast %cst : f32 to vector<128x128xf32>
    %14 = arith.select %12, %6, %13 : vector<128x128xi1>, vector<128x128xf32>
    %cst_8 = arith.constant dense<0.000000e+00> : vector<128xf32>
    %15 = vector.multi_reduction <add>, %14, %cst_8 [1] : vector<128x128xf32> to vector<128xf32>
    %16 = vector.shape_cast %15 : vector<128xf32> to vector<128x1xf32>
    %cst_9 = arith.constant 3.125000e-02 : f32
    %17 = vector.broadcast %cst_9 : f32 to vector<128x1xf32>
    %18 = arith.mulf %16, %17 : vector<128x1xf32>
    %19 = vector.broadcast %18 : vector<128x1xf32> to vector<128x128xf32>
    %20 = arith.subf %6, %19 : vector<128x128xf32>
    %cst_10 = arith.constant 0.000000e+00 : f32
    %21 = vector.shape_cast %2 : vector<1x128xi1> to vector<1x128xi1>
    %22 = vector.broadcast %21 : vector<1x128xi1> to vector<128x128xi1>
    %23 = vector.broadcast %cst_10 : f32 to vector<128x128xf32>
    %24 = arith.select %22, %20, %23 : vector<128x128xi1>, vector<128x128xf32>
    %25 = arith.mulf %24, %24 : vector<128x128xf32>
    %cst_11 = arith.constant dense<0.000000e+00> : vector<128xf32>
    %26 = vector.multi_reduction <add>, %25, %cst_11 [1] : vector<128x128xf32> to vector<128xf32>
    %27 = vector.shape_cast %26 : vector<128xf32> to vector<128x1xf32>
    %cst_12 = arith.constant 3.125000e-02 : f32
    %28 = vector.broadcast %cst_12 : f32 to vector<128x1xf32>
    %29 = arith.mulf %27, %28 : vector<128x1xf32>
    %30 = vector.broadcast %18 : vector<128x1xf32> to vector<128x128xf32>
    %31 = arith.subf %6, %30 : vector<128x128xf32>
    %cst_13 = arith.constant 9.99999974E-6 : f32
    %32 = vector.broadcast %cst_13 : f32 to vector<128x1xf32>
    %33 = arith.addf %29, %32 : vector<128x1xf32>
    %34 = math.rsqrt %33 : vector<128x1xf32>
    %35 = vector.broadcast %34 : vector<128x1xf32> to vector<128x128xf32>
    %36 = arith.mulf %31, %35 : vector<128x128xf32>
    %37 = vector.broadcast %8 : vector<1x128xf32> to vector<128x128xf32>
    %38 = arith.mulf %36, %37 : vector<128x128xf32>
    %39 = vector.broadcast %10 : vector<1x128xf32> to vector<128x128xf32>
    %40 = arith.addf %38, %39 : vector<128x128xf32>
    %41 = arith.truncf %40 : vector<128x128xf32> to vector<128x128xbf16>
    %42 = vector.shape_cast %41 : vector<128x128xbf16> to vector<8x16x128xbf16>
    %c0_14 = arith.constant 0 : index
    %c0_15 = arith.constant 0 : index
    %c0_16 = arith.constant 0 : index
    %43 = vector.load %arg6[%c0_14, %c0_15, %c0_16] : memref<1x16x16xbf16, #tpu.memory_space<vmem>>, vector<1x16x16xbf16>
    %44 = vector.shape_cast %43 : vector<1x16x16xbf16> to vector<16x16xbf16>
    %45 = vector.shape_cast %44 : vector<16x16xbf16> to vector<1x16x16xbf16>
    %46 = vector.broadcast %45 : vector<1x16x16xbf16> to vector<8x16x16xbf16>
    "tpu.trace_start"() <{level = 10 : i32, message = "bdt,bth->bdh"}> : () -> ()
    %cst_17 = arith.constant dense<0.000000e+00> : vector<8x16x128xf32>
    %47 = tpu.matmul %46, %42, %cst_17 {dimension_numbers = #tpu.dot_dimension_numbers<[2], [1], [1], [2], [0, 0, 0, 1, 1, 2], [0], [0]>} : vector<8x16x16xbf16>, vector<8x16x128xbf16>, vector<8x16x128xf32> -> vector<8x16x128xf32>
    "tpu.trace_stop"() : () -> ()
    %c0_18 = arith.constant 0 : index
    %c0_19 = arith.constant 0 : index
    %c0_20 = arith.constant 0 : index
    %48 = vector.load %arg7[%c0_18, %c0_19, %c0_20] : memref<1x16x1xf32, #tpu.memory_space<vmem>>, vector<1x16x1xf32>
    %49 = vector.shape_cast %48 : vector<1x16x1xf32> to vector<16x1xf32>
    %50 = vector.shape_cast %49 : vector<16x1xf32> to vector<1x16x1xf32>
    %51 = vector.broadcast %50 : vector<1x16x1xf32> to vector<8x16x128xf32>
    %52 = arith.addf %47, %51 : vector<8x16x128xf32>
    %cst_21 = arith.constant 5.000000e-01 : f32
    %53 = vector.broadcast %cst_21 : f32 to vector<8x16x128xf32>
    %54 = arith.mulf %53, %52 : vector<8x16x128xf32>
    %cst_22 = arith.constant 0.707106769 : f32
    %55 = vector.broadcast %cst_22 : f32 to vector<8x16x128xf32>
    %56 = arith.mulf %52, %55 : vector<8x16x128xf32>
    %57 = math.erf %56 : vector<8x16x128xf32>
    %cst_23 = arith.constant 1.000000e+00 : f32
    %58 = vector.broadcast %cst_23 : f32 to vector<8x16x128xf32>
    %59 = arith.addf %58, %57 : vector<8x16x128xf32>
    %60 = arith.mulf %54, %59 : vector<8x16x128xf32>
    %c0_24 = arith.constant 0 : index
    %c0_25 = arith.constant 0 : index
    %c0_26 = arith.constant 0 : index
    %61 = vector.load %arg8[%c0_24, %c0_25, %c0_26] : memref<1x16x16xbf16, #tpu.memory_space<vmem>>, vector<1x16x16xbf16>
    %62 = vector.shape_cast %61 : vector<1x16x16xbf16> to vector<16x16xbf16>
    %63 = vector.shape_cast %62 : vector<16x16xbf16> to vector<1x16x16xbf16>
    %64 = vector.broadcast %63 : vector<1x16x16xbf16> to vector<8x16x16xbf16>
    %65 = arith.truncf %60 : vector<8x16x128xf32> to vector<8x16x128xbf16>
    "tpu.trace_start"() <{level = 10 : i32, message = "btd,bdh->bth"}> : () -> ()
    %cst_27 = arith.constant dense<0.000000e+00> : vector<8x16x128xf32>
    %66 = tpu.matmul %64, %65, %cst_27 {dimension_numbers = #tpu.dot_dimension_numbers<[2], [1], [1], [2], [0, 0, 0, 1, 1, 2], [0], [0]>} : vector<8x16x16xbf16>, vector<8x16x128xbf16>, vector<8x16x128xf32> -> vector<8x16x128xf32>
    "tpu.trace_stop"() : () -> ()
    %c0_28 = arith.constant 0 : index
    %c0_29 = arith.constant 0 : index
    %c0_30 = arith.constant 0 : index
    %67 = vector.load %arg9[%c0_28, %c0_29, %c0_30] : memref<1x16x1xf32, #tpu.memory_space<vmem>>, vector<1x16x1xf32>
    %68 = vector.shape_cast %67 : vector<1x16x1xf32> to vector<16x1xf32>
    %69 = vector.shape_cast %68 : vector<16x1xf32> to vector<1x16x1xf32>
    %70 = vector.broadcast %69 : vector<1x16x1xf32> to vector<8x16x128xf32>
    %71 = arith.addf %66, %70 : vector<8x16x128xf32>
    %72 = vector.shape_cast %71 : vector<8x16x128xf32> to vector<128x128xf32>
    %cst_31 = arith.constant 0.000000e+00 : f32
    %73 = vector.shape_cast %2 : vector<1x128xi1> to vector<1x128xi1>
    %74 = vector.broadcast %73 : vector<1x128xi1> to vector<128x128xi1>
    %75 = vector.broadcast %cst_31 : f32 to vector<128x128xf32>
    %76 = arith.select %74, %72, %75 : vector<128x128xi1>, vector<128x128xf32>
    %77 = arith.addf %6, %76 : vector<128x128xf32>
    %c0_32 = arith.constant 0 : index
    %c0_33 = arith.constant 0 : index
    %c0_34 = arith.constant 0 : index
    %78 = vector.load %arg10[%c0_32, %c0_33, %c0_34] : memref<1x1x128xf32, #tpu.memory_space<vmem>>, vector<1x1x128xf32>
    %79 = vector.shape_cast %78 : vector<1x1x128xf32> to vector<1x128xf32>
    %c0_35 = arith.constant 0 : index
    %c0_36 = arith.constant 0 : index
    %c0_37 = arith.constant 0 : index
    %80 = vector.load %arg11[%c0_35, %c0_36, %c0_37] : memref<1x1x128xf32, #tpu.memory_space<vmem>>, vector<1x1x128xf32>
    %81 = vector.shape_cast %80 : vector<1x1x128xf32> to vector<1x128xf32>
    %cst_38 = arith.constant 0.000000e+00 : f32
    %82 = vector.shape_cast %2 : vector<1x128xi1> to vector<1x128xi1>
    %83 = vector.broadcast %82 : vector<1x128xi1> to vector<128x128xi1>
    %84 = vector.broadcast %cst_38 : f32 to vector<128x128xf32>
    %85 = arith.select %83, %77, %84 : vector<128x128xi1>, vector<128x128xf32>
    %cst_39 = arith.constant dense<0.000000e+00> : vector<128xf32>
    %86 = vector.multi_reduction <add>, %85, %cst_39 [1] : vector<128x128xf32> to vector<128xf32>
    %87 = vector.shape_cast %86 : vector<128xf32> to vector<128x1xf32>
    %cst_40 = arith.constant 3.125000e-02 : f32
    %88 = vector.broadcast %cst_40 : f32 to vector<128x1xf32>
    %89 = arith.mulf %87, %88 : vector<128x1xf32>
    %90 = vector.broadcast %89 : vector<128x1xf32> to vector<128x128xf32>
    %91 = arith.subf %77, %90 : vector<128x128xf32>
    %cst_41 = arith.constant 0.000000e+00 : f32
    %92 = vector.shape_cast %2 : vector<1x128xi1> to vector<1x128xi1>
    %93 = vector.broadcast %92 : vector<1x128xi1> to vector<128x128xi1>
    %94 = vector.broadcast %cst_41 : f32 to vector<128x128xf32>
    %95 = arith.select %93, %91, %94 : vector<128x128xi1>, vector<128x128xf32>
    %96 = arith.mulf %95, %95 : vector<128x128xf32>
    %cst_42 = arith.constant dense<0.000000e+00> : vector<128xf32>
    %97 = vector.multi_reduction <add>, %96, %cst_42 [1] : vector<128x128xf32> to vector<128xf32>
    %98 = vector.shape_cast %97 : vector<128xf32> to vector<128x1xf32>
    %cst_43 = arith.constant 3.125000e-02 : f32
    %99 = vector.broadcast %cst_43 : f32 to vector<128x1xf32>
    %100 = arith.mulf %98, %99 : vector<128x1xf32>
    %101 = vector.broadcast %89 : vector<128x1xf32> to vector<128x128xf32>
    %102 = arith.subf %77, %101 : vector<128x128xf32>
    %cst_44 = arith.constant 9.99999974E-6 : f32
    %103 = vector.broadcast %cst_44 : f32 to vector<128x1xf32>
    %104 = arith.addf %100, %103 : vector<128x1xf32>
    %105 = math.rsqrt %104 : vector<128x1xf32>
    %106 = vector.broadcast %105 : vector<128x1xf32> to vector<128x128xf32>
    %107 = arith.mulf %102, %106 : vector<128x128xf32>
    %108 = vector.broadcast %79 : vector<1x128xf32> to vector<128x128xf32>
    %109 = arith.mulf %107, %108 : vector<128x128xf32>
    %110 = vector.broadcast %81 : vector<1x128xf32> to vector<128x128xf32>
    %111 = arith.addf %109, %110 : vector<128x128xf32>
    %112 = arith.truncf %111 : vector<128x128xf32> to vector<128x128xbf16>
    %c0_45 = arith.constant 0 : index
    %c0_46 = arith.constant 0 : index
    %c0_47 = arith.constant 0 : index
    %113 = vector.load %arg12[%c0_45, %c0_46, %c0_47] : memref<1x128x128xbf16, #tpu.memory_space<vmem>>, vector<1x128x128xbf16>
    %114 = vector.shape_cast %113 : vector<1x128x128xbf16> to vector<128x128xbf16>
    %cst_48 = arith.constant dense<0.000000e+00> : vector<128x128xf32>
    %115 = tpu.matmul %112, %114, %cst_48 {dimension_numbers = #tpu.dot_dimension_numbers<[1], [0], [0], [1], [0, 0, 1, 1], [], []>} : vector<128x128xbf16>, vector<128x128xbf16>, vector<128x128xf32> -> vector<128x128xf32>
    %c0_49 = arith.constant 0 : index
    %c0_50 = arith.constant 0 : index
    %c0_51 = arith.constant 0 : index
    %116 = vector.load %arg13[%c0_49, %c0_50, %c0_51] : memref<1x1x128xf32, #tpu.memory_space<vmem>>, vector<1x1x128xf32>
    %117 = vector.shape_cast %116 : vector<1x1x128xf32> to vector<1x128xf32>
    %118 = vector.broadcast %117 : vector<1x128xf32> to vector<128x128xf32>
    %119 = arith.addf %115, %118 : vector<128x128xf32>
    %cst_52 = arith.constant 5.000000e-01 : f32
    %120 = vector.broadcast %cst_52 : f32 to vector<128x128xf32>
    %121 = arith.mulf %120, %119 : vector<128x128xf32>
    %cst_53 = arith.constant 0.707106769 : f32
    %122 = vector.broadcast %cst_53 : f32 to vector<128x128xf32>
    %123 = arith.mulf %119, %122 : vector<128x128xf32>
    %124 = math.erf %123 : vector<128x128xf32>
    %cst_54 = arith.constant 1.000000e+00 : f32
    %125 = vector.broadcast %cst_54 : f32 to vector<128x128xf32>
    %126 = arith.addf %125, %124 : vector<128x128xf32>
    %127 = arith.mulf %121, %126 : vector<128x128xf32>
    %128 = arith.truncf %127 : vector<128x128xf32> to vector<128x128xbf16>
    %c0_55 = arith.constant 0 : index
    %c0_56 = arith.constant 0 : index
    %c0_57 = arith.constant 0 : index
    %129 = vector.load %arg14[%c0_55, %c0_56, %c0_57] : memref<1x128x128xbf16, #tpu.memory_space<vmem>>, vector<1x128x128xbf16>
    %130 = vector.shape_cast %129 : vector<1x128x128xbf16> to vector<128x128xbf16>
    %cst_58 = arith.constant dense<0.000000e+00> : vector<128x128xf32>
    %131 = tpu.matmul %128, %130, %cst_58 {dimension_numbers = #tpu.dot_dimension_numbers<[1], [0], [0], [1], [0, 0, 1, 1], [], []>} : vector<128x128xbf16>, vector<128x128xbf16>, vector<128x128xf32> -> vector<128x128xf32>
    %c0_59 = arith.constant 0 : index
    %c0_60 = arith.constant 0 : index
    %c0_61 = arith.constant 0 : index
    %132 = vector.load %arg15[%c0_59, %c0_60, %c0_61] : memref<1x1x128xf32, #tpu.memory_space<vmem>>, vector<1x1x128xf32>
    %133 = vector.shape_cast %132 : vector<1x1x128xf32> to vector<1x128xf32>
    %134 = vector.broadcast %133 : vector<1x128xf32> to vector<128x128xf32>
    %135 = arith.addf %131, %134 : vector<128x128xf32>
    %136 = arith.addf %77, %135 : vector<128x128xf32>
    %c0_62 = arith.constant 0 : index
    %c0_63 = arith.constant 0 : index
    %137 = vector.load %arg21[%c0_62, %c0_63] : memref<128x128xf32, #tpu.memory_space<vmem>>, vector<128x128xf32>
    tpu.vector_store %arg21[%c0_62, %c0_63], %136 {strides = array<i32>} : memref<128x128xf32, #tpu.memory_space<vmem>>, vector<128x128xf32>,
    %c1_i32 = arith.constant 1 : i32
    %138 = arith.cmpi eq, %arg1, %c1_i32 : i32
    %139 = arith.extui %138 : i1 to i32
    %c0_i32_64 = arith.constant 0 : i32
    %140 = arith.cmpi ne, %139, %c0_i32_64 : i32
    scf.if %140 {
      %c0_65 = arith.constant 0 : index
      %c0_66 = arith.constant 0 : index
      %141 = vector.load %arg16[%c0_65, %c0_66] : memref<1x128xf32, #tpu.memory_space<vmem>>, vector<1x128xf32>
      %c0_67 = arith.constant 0 : index
      %c0_68 = arith.constant 0 : index
      %142 = vector.load %arg17[%c0_67, %c0_68] : memref<1x128xf32, #tpu.memory_space<vmem>>, vector<1x128xf32>
      %cst_69 = arith.constant 0.000000e+00 : f32
      %143 = vector.shape_cast %2 : vector<1x128xi1> to vector<1x128xi1>
      %144 = vector.broadcast %143 : vector<1x128xi1> to vector<128x128xi1>
      %145 = vector.broadcast %cst_69 : f32 to vector<128x128xf32>
      %146 = arith.select %144, %136, %145 : vector<128x128xi1>, vector<128x128xf32>
      %cst_70 = arith.constant dense<0.000000e+00> : vector<128xf32>
      %147 = vector.multi_reduction <add>, %146, %cst_70 [1] : vector<128x128xf32> to vector<128xf32>
      %148 = vector.shape_cast %147 : vector<128xf32> to vector<128x1xf32>
      %cst_71 = arith.constant 3.125000e-02 : f32
      %149 = vector.broadcast %cst_71 : f32 to vector<128x1xf32>
      %150 = arith.mulf %148, %149 : vector<128x1xf32>
      %151 = vector.broadcast %150 : vector<128x1xf32> to vector<128x128xf32>
      %152 = arith.subf %136, %151 : vector<128x128xf32>
      %cst_72 = arith.constant 0.000000e+00 : f32
      %153 = vector.shape_cast %2 : vector<1x128xi1> to vector<1x128xi1>
      %154 = vector.broadcast %153 : vector<1x128xi1> to vector<128x128xi1>
      %155 = vector.broadcast %cst_72 : f32 to vector<128x128xf32>
      %156 = arith.select %154, %152, %155 : vector<128x128xi1>, vector<128x128xf32>
      %157 = arith.mulf %156, %156 : vector<128x128xf32>
      %cst_73 = arith.constant dense<0.000000e+00> : vector<128xf32>
      %158 = vector.multi_reduction <add>, %157, %cst_73 [1] : vector<128x128xf32> to vector<128xf32>
      %159 = vector.shape_cast %158 : vector<128xf32> to vector<128x1xf32>
      %cst_74 = arith.constant 3.125000e-02 : f32
      %160 = vector.broadcast %cst_74 : f32 to vector<128x1xf32>
      %161 = arith.mulf %159, %160 : vector<128x1xf32>
      %162 = vector.broadcast %150 : vector<128x1xf32> to vector<128x128xf32>
      %163 = arith.subf %136, %162 : vector<128x128xf32>
      %cst_75 = arith.constant 9.99999974E-6 : f32
      %164 = vector.broadcast %cst_75 : f32 to vector<128x1xf32>
      %165 = arith.addf %161, %164 : vector<128x1xf32>
      %166 = math.rsqrt %165 : vector<128x1xf32>
      %167 = vector.broadcast %166 : vector<128x1xf32> to vector<128x128xf32>
      %168 = arith.mulf %163, %167 : vector<128x128xf32>
      %169 = vector.broadcast %141 : vector<1x128xf32> to vector<128x128xf32>
      %170 = arith.mulf %168, %169 : vector<128x128xf32>
      %171 = vector.broadcast %142 : vector<1x128xf32> to vector<128x128xf32>
      %172 = arith.addf %170, %171 : vector<128x128xf32>
      %173 = vector.shape_cast %172 : vector<128x128xf32> to vector<8x16x128xf32>
      %cst_76 = arith.constant dense<0.000000e+00> : vector<8x128xf32>
      %174 = vector.multi_reduction <add>, %173, %cst_76 [1] : vector<8x16x128xf32> to vector<8x128xf32>
      %cst_77 = arith.constant 1.600000e+01 : f32
      %175 = vector.broadcast %cst_77 : f32 to vector<8x128xf32>
      %176 = arith.divf %174, %175 : vector<8x128xf32>
      %177 = arith.truncf %176 : vector<8x128xf32> to vector<8x128xbf16>
      %c0_78 = arith.constant 0 : index
      %c0_79 = arith.constant 0 : index
      %178 = vector.load %arg18[%c0_78, %c0_79] : memref<128x128xbf16, #tpu.memory_space<vmem>>, vector<128x128xbf16>
      %cst_80 = arith.constant dense<0.000000e+00> : vector<8x128xf32>
      %179 = tpu.matmul %177, %178, %cst_80 {dimension_numbers = #tpu.dot_dimension_numbers<[1], [0], [0], [1], [0, 0, 1, 1], [], []>} : vector<8x128xbf16>, vector<128x128xbf16>, vector<8x128xf32> -> vector<8x128xf32>
      %c0_81 = arith.constant 0 : index
      %c0_82 = arith.constant 0 : index
      %180 = vector.load %arg19[%c0_81, %c0_82] : memref<1x128xf32, #tpu.memory_space<vmem>>, vector<1x128xf32>
      %181 = vector.broadcast %180 : vector<1x128xf32> to vector<8x128xf32>
      %182 = arith.addf %179, %181 : vector<8x128xf32>
      %c0_83 = arith.constant 0 : index
      %c0_84 = arith.constant 0 : index
      %c0_85 = arith.constant 0 : index
      %183 = vector.load %arg20[%c0_83, %c0_84, %c0_85] : memref<1x8x128xf32, #tpu.memory_space<vmem>>, vector<1x8x128xf32>
      %184 = vector.shape_cast %183 : vector<1x8x128xf32> to vector<8x128xf32>
      %185 = vector.shape_cast %182 : vector<8x128xf32> to vector<1x8x128xf32>
      tpu.vector_store %arg20[%c0_83, %c0_84, %c0_85], %185 {strides = array<i32>} : memref<1x8x128xf32, #tpu.memory_space<vmem>>, vector<1x8x128xf32>,
    } else {
    }
    return
  }
  func.func @transform_0(%arg0: i32, %arg1: i32) -> (i32, i32, i32) {
    %c0_i32 = arith.constant 0 : i32
    %c0_i32_0 = arith.constant 0 : i32
    %c0_i32_1 = arith.constant 0 : i32
    return %arg0, %c0_i32, %c0_i32_0 : i32, i32, i32
  }
  func.func @transform_1(%arg0: i32, %arg1: i32) -> (i32, i32) {
    %c0_i32 = arith.constant 0 : i32
    %c0_i32_0 = arith.constant 0 : i32
    %c0_i32_1 = arith.constant 0 : i32
    return %c0_i32, %c0_i32_0 : i32, i32
  }
  func.func @transform_2(%arg0: i32, %arg1: i32) -> (i32, i32, i32) {
    %c0_i32 = arith.constant 0 : i32
    %c0_i32_0 = arith.constant 0 : i32
    %c0_i32_1 = arith.constant 0 : i32
    return %arg1, %c0_i32, %c0_i32_0 : i32, i32, i32
  }
  func.func @transform_3(%arg0: i32, %arg1: i32) -> (i32, i32, i32) {
    %c0_i32 = arith.constant 0 : i32
    %c0_i32_0 = arith.constant 0 : i32
    %c0_i32_1 = arith.constant 0 : i32
    return %arg1, %c0_i32, %c0_i32_0 : i32, i32, i32
  }
  func.func @transform_4(%arg0: i32, %arg1: i32) -> (i32, i32, i32) {
    %c0_i32 = arith.constant 0 : i32
    %c0_i32_0 = arith.constant 0 : i32
    %c0_i32_1 = arith.constant 0 : i32
    return %arg1, %c0_i32, %c0_i32_0 : i32, i32, i32
  }
  func.func @transform_5(%arg0: i32, %arg1: i32) -> (i32, i32, i32) {
    %c0_i32 = arith.constant 0 : i32
    %c0_i32_0 = arith.constant 0 : i32
    %c0_i32_1 = arith.constant 0 : i32
    return %arg1, %c0_i32, %c0_i32_0 : i32, i32, i32
  }
  func.func @transform_6(%arg0: i32, %arg1: i32) -> (i32, i32, i32) {
    %c0_i32 = arith.constant 0 : i32
    %c0_i32_0 = arith.constant 0 : i32
    %c0_i32_1 = arith.constant 0 : i32
    return %arg1, %c0_i32, %c0_i32_0 : i32, i32, i32
  }
  func.func @transform_7(%arg0: i32, %arg1: i32) -> (i32, i32, i32) {
    %c0_i32 = arith.constant 0 : i32
    %c0_i32_0 = arith.constant 0 : i32
    %c0_i32_1 = arith.constant 0 : i32
    return %arg1, %c0_i32, %c0_i32_0 : i32, i32, i32
  }
  func.func @transform_8(%arg0: i32, %arg1: i32) -> (i32, i32, i32) {
    %c0_i32 = arith.constant 0 : i32
    %c0_i32_0 = arith.constant 0 : i32
    %c0_i32_1 = arith.constant 0 : i32
    return %arg1, %c0_i32, %c0_i32_0 : i32, i32, i32
  }
  func.func @transform_9(%arg0: i32, %arg1: i32) -> (i32, i32, i32) {
    %c0_i32 = arith.constant 0 : i32
    %c0_i32_0 = arith.constant 0 : i32
    %c0_i32_1 = arith.constant 0 : i32
    return %arg1, %c0_i32, %c0_i32_0 : i32, i32, i32
  }
  func.func @transform_10(%arg0: i32, %arg1: i32) -> (i32, i32, i32) {
    %c0_i32 = arith.constant 0 : i32
    %c0_i32_0 = arith.constant 0 : i32
    %c0_i32_1 = arith.constant 0 : i32
    return %arg1, %c0_i32, %c0_i32_0 : i32, i32, i32
  }
  func.func @transform_11(%arg0: i32, %arg1: i32) -> (i32, i32, i32) {
    %c0_i32 = arith.constant 0 : i32
    %c0_i32_0 = arith.constant 0 : i32
    %c0_i32_1 = arith.constant 0 : i32
    return %arg1, %c0_i32, %c0_i32_0 : i32, i32, i32
  }
  func.func @transform_12(%arg0: i32, %arg1: i32) -> (i32, i32, i32) {
    %c0_i32 = arith.constant 0 : i32
    %c0_i32_0 = arith.constant 0 : i32
    %c0_i32_1 = arith.constant 0 : i32
    return %arg1, %c0_i32, %c0_i32_0 : i32, i32, i32
  }
  func.func @transform_13(%arg0: i32, %arg1: i32) -> (i32, i32, i32) {
    %c0_i32 = arith.constant 0 : i32
    %c0_i32_0 = arith.constant 0 : i32
    %c0_i32_1 = arith.constant 0 : i32
    return %arg1, %c0_i32, %c0_i32_0 : i32, i32, i32
  }
  func.func @transform_14(%arg0: i32, %arg1: i32) -> (i32, i32) {
    %c0_i32 = arith.constant 0 : i32
    %c0_i32_0 = arith.constant 0 : i32
    %c0_i32_1 = arith.constant 0 : i32
    return %c0_i32, %c0_i32_0 : i32, i32
  }
  func.func @transform_15(%arg0: i32, %arg1: i32) -> (i32, i32) {
    %c0_i32 = arith.constant 0 : i32
    %c0_i32_0 = arith.constant 0 : i32
    %c0_i32_1 = arith.constant 0 : i32
    return %c0_i32, %c0_i32_0 : i32, i32
  }
  func.func @transform_16(%arg0: i32, %arg1: i32) -> (i32, i32) {
    %c0_i32 = arith.constant 0 : i32
    %c0_i32_0 = arith.constant 0 : i32
    %c0_i32_1 = arith.constant 0 : i32
    return %c0_i32, %c0_i32_0 : i32, i32
  }
  func.func @transform_17(%arg0: i32, %arg1: i32) -> (i32, i32) {
    %c0_i32 = arith.constant 0 : i32
    %c0_i32_0 = arith.constant 0 : i32
    %c0_i32_1 = arith.constant 0 : i32
    return %c0_i32, %c0_i32_0 : i32, i32
  }
  func.func @transform_18(%arg0: i32, %arg1: i32) -> (i32, i32, i32) {
    %c0_i32 = arith.constant 0 : i32
    %c0_i32_0 = arith.constant 0 : i32
    %c0_i32_1 = arith.constant 0 : i32
    return %arg0, %c0_i32, %c0_i32_0 : i32, i32, i32
  }
}

</mosaic_0001>

<llo_original>
// kernel: tpu_custom_call.1
$region0: #{tpu_custom_call.1}
  #allocation0 [shape = 'u32[]', space=smem, size = 0x4, offset = 0x4, fixed_abs, tag = 'smem constant byte address 0x4 - core index']
  #allocation1 [shape = 'u32[144,128]{1,0:T(1,128)}', space=vmem, size = 0x12000, scoped, tag = 'internal scratch']
  #allocation2 [shape = 'f32[128,128]{1,0:T(8,128)}', space=vmem, size = 0x10000, scoped, tag = 'scratch operand']
  %s0 = inlined_call_operand.vmem [shape: bf16[8,16,128], index: 0, kind: input, shape index: {}]
  %s1 = inlined_call_operand.hbm [shape: bf16[128,128], index: 1, kind: input, shape index: {}]
  %s2 = inlined_call_operand.hbm [shape: f32[2,1,128], index: 2, kind: input, shape index: {}]
  %s3 = inlined_call_operand.hbm [shape: f32[2,1,128], index: 3, kind: input, shape index: {}]
  %s4 = inlined_call_operand.hbm [shape: bf16[2,16,16], index: 4, kind: input, shape index: {}]
  %s5 = inlined_call_operand.vmem [shape: f32[2,16,1], index: 5, kind: input, shape index: {}]
  %s6 = inlined_call_operand.hbm [shape: bf16[2,16,16], index: 6, kind: input, shape index: {}]
  %s7 = inlined_call_operand.vmem [shape: f32[2,16,1], index: 7, kind: input, shape index: {}]
  %s8 = inlined_call_operand.hbm [shape: f32[2,1,128], index: 8, kind: input, shape index: {}]
  %s9 = inlined_call_operand.hbm [shape: f32[2,1,128], index: 9, kind: input, shape index: {}]
  %s10 = inlined_call_operand.hbm [shape: bf16[2,128,128], index: 10, kind: input, shape index: {}]
  %s11 = inlined_call_operand.hbm [shape: f32[2,1,128], index: 11, kind: input, shape index: {}]
  %s12 = inlined_call_operand.hbm [shape: bf16[2,128,128], index: 12, kind: input, shape index: {}]
  %s13 = inlined_call_operand.hbm [shape: f32[2,1,128], index: 13, kind: input, shape index: {}]
  %s14 = inlined_call_operand.hbm [shape: f32[1,128], index: 14, kind: input, shape index: {}]
  %s15 = inlined_call_operand.hbm [shape: f32[1,128], index: 15, kind: input, shape index: {}]
  %s16 = inlined_call_operand.vmem [shape: bf16[128,128], index: 16, kind: input, shape index: {}]
  %s17 = inlined_call_operand.vmem [shape: f32[1,128], index: 17, kind: input, shape index: {}]
  %s18 = inlined_call_operand.hbm [shape: f32[1,8,128], index: 18, kind: output, shape index: {}]
  %s19 = sld [smem:[#allocation0]]
  $region165: #{tpu_custom_call.1} parent=0
    _
  %s21 = ssub.s32 1, %s19
  %s22 = scalar_select 0, %s21, %s19
  $region1: #{tpu_custom_call.1} parent=0
    #allocation3 [shape = 'u8[32768]{0}', space=vmem, size = 0x8000, scoped, tag = 'input window, operand 1, single buffered']
    #allocation4 [shape = 's32[2]{0}', space=sflag, size = 0x8, scoped, tag = 'scoped memory for tpu_custom_call.1']
    #allocation5 [shape = 's32[2]{0}', space=sflag, size = 0x8, scoped, tag = 'scoped memory for tpu_custom_call.1']
    #allocation6 [shape = 'u8[1024]{0}', space=vmem, size = 0x400, scoped, tag = 'input window, operand 2']
    #allocation7 [shape = 's32[2]{0}', space=sflag, size = 0x8, scoped, tag = 'scoped memory for tpu_custom_call.1']
    #allocation8 [shape = 'u8[1024]{0}', space=vmem, size = 0x400, scoped, tag = 'input window, operand 3']
    #allocation9 [shape = 'u8[8192]{0}', space=vmem, size = 0x2000, scoped, tag = 'input window, operand 4']
    #allocation10 [shape = 's32[2]{0}', space=sflag, size = 0x8, scoped, tag = 'scoped memory for tpu_custom_call.1']
    #allocation11 [shape = 'u8[8192]{0}', space=vmem, size = 0x2000, scoped, tag = 'input window, operand 6']
    #allocation12 [shape = 'u8[1024]{0}', space=vmem, size = 0x400, scoped, tag = 'input window, operand 8']
    #allocation13 [shape = 's32[2]{0}', space=sflag, size = 0x8, scoped, tag = 'scoped memory for tpu_custom_call.1']
    #allocation14 [shape = 'u8[1024]{0}', space=vmem, size = 0x400, scoped, tag = 'input window, operand 9']
    #allocation15 [shape = 'u8[65536]{0}', space=vmem, size = 0x10000, scoped, tag = 'input window, operand 10']
    #allocation16 [shape = 's32[2]{0}', space=sflag, size = 0x8, scoped, tag = 'scoped memory for tpu_custom_call.1']
    #allocation17 [shape = 'u8[1024]{0}', space=vmem, size = 0x400, scoped, tag = 'input window, operand 11']
    #allocation18 [shape = 'u8[65536]{0}', space=vmem, size = 0x10000, scoped, tag = 'input window, operand 12']
    #allocation19 [shape = 's32[2]{0}', space=sflag, size = 0x8, scoped, tag = 'scoped memory for tpu_custom_call.1']
    #allocation20 [shape = 'u8[1024]{0}', space=vmem, size = 0x400, scoped, tag = 'input window, operand 13']
    #allocation21 [shape = 'u8[512]{0}', space=vmem, size = 0x400, scoped, tag = 'input window, operand 14, single buffered']
    #allocation22 [shape = 's32[1]{0}', space=sflag, size = 0x4, scoped, tag = 'scoped memory for tpu_custom_call.1']
    #allocation23 [shape = 'u8[512]{0}', space=vmem, size = 0x400, scoped, tag = 'input window, operand 15, single buffered']
    #allocation24 [shape = 'u8[4096]{0}', space=vmem, size = 0x1000, scoped, tag = 'output window, operand 0, single buffered']
    %23 = vsyncpa [#allocation4], 0
    %24 = vsyncpa [#allocation7], 0
    %s25 = scalar_lea.sflag [#allocation7], 1
    %26 = vsyncpa %s25, 0
    %27 = vsyncpa [#allocation10], 0
    %s28 = scalar_lea.sflag [#allocation10], 1
    %29 = vsyncpa %s28, 0
    %30 = vsyncpa [#allocation13], 0
    %s31 = scalar_lea.sflag [#allocation13], 1
    %32 = vsyncpa %s31, 0
    %33 = vsyncpa [#allocation16], 0
    %s34 = scalar_lea.sflag [#allocation16], 1
    %35 = vsyncpa %s34, 0
    %36 = vsyncpa [#allocation19], 0
    %s37 = scalar_lea.sflag [#allocation19], 1
    %38 = vsyncpa %s37, 0
    %39 = vsyncpa [#allocation22], 0
    %40 = vsyncpa [#allocation5], 0
    loop: start=0, step=1, limit=4
    $region2: #{tpu_custom_call.1} parent=1 // loop_pre_header
      _
    $region3: #{tpu_custom_call.1} parent=1 // loop_header
      %s42 = sphi 0, %s46
      %p43 = scmp.ge.s32.totalorder %s42, 4
      %s49 = sphi 0, %s61
      %s50 = sphi 0, %s57
      %s51 = sphi 0, %s49
      %s52 = sphi 0, %s50
      %s53 = sphi 0, %s51
      %s54 = sphi 0, %s52
      %s64 = sphi 0, %s66
      %s67 = sphi 0, %s64
      %s68 = sphi 0, %s67
      %s84 = sphi 0, %s68
      %s88 = sphi 0, %s88
      %s90 = sphi 0, %s88
      %s91 = sphi 0, %s90
      %s105 = sphi 0, %s91
      %s111 = sphi 0, %s113
      %s114 = sphi 0, %s111
      %s115 = sphi 0, %s114
      %s131 = sphi 0, %s115
      %s137 = sphi 0, %s139
      %s140 = sphi 0, %s137
      %s141 = sphi 0, %s140
      %s157 = sphi 0, %s141
      %s163 = sphi 0, %s165
      %s166 = sphi 0, %s163
      %s167 = sphi 0, %s166
      %s183 = sphi 0, %s167
      %s189 = sphi 0, %s191
      %s192 = sphi 0, %s189
      %s193 = sphi 0, %s192
      %s209 = sphi 0, %s193
      %s215 = sphi 0, %s217
      %s218 = sphi 0, %s215
      %s219 = sphi 0, %s218
      %s235 = sphi 0, %s219
      %s241 = sphi 0, %s243
      %s244 = sphi 0, %s241
      %s245 = sphi 0, %s244
      %s261 = sphi 0, %s245
      %s267 = sphi 0, %s269
      %s270 = sphi 0, %s267
      %s271 = sphi 0, %s270
      %s287 = sphi 0, %s271
      %s293 = sphi 0, %s295
      %s296 = sphi 0, %s293
      %s297 = sphi 0, %s296
      %s313 = sphi 0, %s297
      %s319 = sphi 0, %s321
      %s322 = sphi 0, %s319
      %s323 = sphi 0, %s322
      %s339 = sphi 0, %s323
      %s345 = sphi 0, %s347
      %s348 = sphi 0, %s345
      %s349 = sphi 0, %s348
      %s365 = sphi 0, %s349
      %s371 = sphi 0, %s373
      %s374 = sphi 0, %s371
      %s375 = sphi 0, %s374
      %s391 = sphi 0, %s375
      %s397 = sphi 0, %s399
      %s400 = sphi 0, %s397
      %s401 = sphi 0, %s400
      %s417 = sphi 0, %s401
      %s421 = sphi 0, %s421
      %s423 = sphi 0, %s421
      %s424 = sphi 0, %s423
      %s438 = sphi 0, %s424
      %s442 = sphi 0, %s442
      %s444 = sphi 0, %s442
      %s445 = sphi 0, %s444
      %s459 = sphi 0, %s445
      %s463 = sphi 0, %s463
      %s465 = sphi 0, %s463
      %s466 = sphi 0, %s465
      %s480 = sphi 0, %s466
      %s484 = sphi 0, %s484
      %s486 = sphi 0, %s484
      %s487 = sphi 0, %s486
      %s501 = sphi 0, %s487
      %s507 = sphi 0, %s509
      %s510 = sphi 0, %s507
      %s511 = sphi 0, %s510
      %s527 = sphi 0, %s511
    $region4: #{tpu_custom_call.1} parent=1 // loop_header_branch
      %45 = sbr.rel (%p43) target = $region8
    $region5: #{tpu_custom_call.1} parent=1 // loop_body
      %s47 = ssub.s32 %s42, 1
      %s48 = ssub.s32 %s42, 2
      %s55 = sadd.s32 1, %s50
      %p56 = scmp.ge.s32.totalorder %s55, 2
      %s57 = scalar_select %p56, 0, %s55
      %s58 = sadd.s32 1, %s49
      %s59 = scalar_select %p56, %s58, %s49
      %p60 = scmp.ge.s32.totalorder %s59, 1
      %s61 = scalar_select %p60, 0, %s59
      %s62 = ssub.s32 %s49, %s61
      %p63 = scmp.eq.s32.totalorder %s62, 0
      %s65 = sadd.s32 %s64, 1
      %s66 = scalar_select %p63, %s64, %s65
      %p69 = pneg %p63
      %p70 = scmp.eq.s32.totalorder %s42, 1
      %p71 = por %p69, %p70
      %p72 = scmp.ne.s32.totalorder %s64, %s67
      %p73 = scmp.eq.s32.totalorder %s42, 0
      %p74 = por %p72, %p73
      %p75 = scmp.ne.s32.totalorder %s64, %s67
      %p76 = scmp.eq.s32.totalorder %s47, 1
      %p77 = por %p75, %p76
      %p78 = scmp.ne.s32.totalorder %s67, %s68
      %p79 = scmp.eq.s32.totalorder %s47, 0
      %p80 = por %p78, %p79
      %p81 = scmp.ne.s32.totalorder %s67, %s68
      %p82 = scmp.eq.s32.totalorder %s48, 1
      %p83 = por %p81, %p82
      %p85 = scmp.ne.s32.totalorder %s68, %s84
      %p86 = scmp.eq.s32.totalorder %s48, 0
      %p87 = por %p85, %p86
      %s89 = sadd.s32 %s88, 1
      %p92 = scmp.eq.s32.totalorder %s42, 1
      %p93 = scmp.ne.s32.totalorder %s88, %s90
      %p94 = scmp.eq.s32.totalorder %s42, 0
      %p95 = por %p93, %p94
      %p96 = scmp.ne.s32.totalorder %s88, %s90
      %p97 = scmp.eq.s32.totalorder %s47, 1
      %p98 = por %p96, %p97
      %p99 = scmp.ne.s32.totalorder %s90, %s91
      %p100 = scmp.eq.s32.totalorder %s47, 0
      %p101 = por %p99, %p100
      %p102 = scmp.ne.s32.totalorder %s90, %s91
      %p103 = scmp.eq.s32.totalorder %s48, 1
      %p104 = por %p102, %p103
      %p106 = scmp.ne.s32.totalorder %s91, %s105
      %p107 = scmp.eq.s32.totalorder %s48, 0
      %p108 = por %p106, %p107
      %s109 = ssub.s32 %s50, %s57
      %p110 = scmp.eq.s32.totalorder %s109, 0
      %s112 = sadd.s32 %s111, 1
      %s113 = scalar_select %p110, %s111, %s112
      %p116 = pneg %p110
      %p117 = scmp.eq.s32.totalorder %s42, 1
      %p118 = por %p116, %p117
      %p119 = scmp.ne.s32.totalorder %s111, %s114
      %p120 = scmp.eq.s32.totalorder %s42, 0
      %p121 = por %p119, %p120
      %p122 = scmp.ne.s32.totalorder %s111, %s114
      %p123 = scmp.eq.s32.totalorder %s47, 1
      %p124 = por %p122, %p123
      %p125 = scmp.ne.s32.totalorder %s114, %s115
      %p126 = scmp.eq.s32.totalorder %s47, 0
      %p127 = por %p125, %p126
      %p128 = scmp.ne.s32.totalorder %s114, %s115
      %p129 = scmp.eq.s32.totalorder %s48, 1
      %p130 = por %p128, %p129
      %p132 = scmp.ne.s32.totalorder %s115, %s131
      %p133 = scmp.eq.s32.totalorder %s48, 0
      %p134 = por %p132, %p133
      %s135 = ssub.s32 %s50, %s57
      %p136 = scmp.eq.s32.totalorder %s135, 0
      %s138 = sadd.s32 %s137, 1
      %s139 = scalar_select %p136, %s137, %s138
      %p142 = pneg %p136
      %p143 = scmp.eq.s32.totalorder %s42, 1
      %p144 = por %p142, %p143
      %p145 = scmp.ne.s32.totalorder %s137, %s140
      %p146 = scmp.eq.s32.totalorder %s42, 0
      %p147 = por %p145, %p146
      %p148 = scmp.ne.s32.totalorder %s137, %s140
      %p149 = scmp.eq.s32.totalorder %s47, 1
      %p150 = por %p148, %p149
      %p151 = scmp.ne.s32.totalorder %s140, %s141
      %p152 = scmp.eq.s32.totalorder %s47, 0
      %p153 = por %p151, %p152
      %p154 = scmp.ne.s32.totalorder %s140, %s141
      %p155 = scmp.eq.s32.totalorder %s48, 1
      %p156 = por %p154, %p155
      %p158 = scmp.ne.s32.totalorder %s141, %s157
      %p159 = scmp.eq.s32.totalorder %s48, 0
      %p160 = por %p158, %p159
      %s161 = ssub.s32 %s50, %s57
      %p162 = scmp.eq.s32.totalorder %s161, 0
      %s164 = sadd.s32 %s163, 1
      %s165 = scalar_select %p162, %s163, %s164
      %p168 = pneg %p162
      %p169 = scmp.eq.s32.totalorder %s42, 1
      %p170 = por %p168, %p169
      %p171 = scmp.ne.s32.totalorder %s163, %s166
      %p172 = scmp.eq.s32.totalorder %s42, 0
      %p173 = por %p171, %p172
      %p174 = scmp.ne.s32.totalorder %s163, %s166
      %p175 = scmp.eq.s32.totalorder %s47, 1
      %p176 = por %p174, %p175
      %p177 = scmp.ne.s32.totalorder %s166, %s167
      %p178 = scmp.eq.s32.totalorder %s47, 0
      %p179 = por %p177, %p178
      %p180 = scmp.ne.s32.totalorder %s166, %s167
      %p181 = scmp.eq.s32.totalorder %s48, 1
      %p182 = por %p180, %p181
      %p184 = scmp.ne.s32.totalorder %s167, %s183
      %p185 = scmp.eq.s32.totalorder %s48, 0
      %p186 = por %p184, %p185
      %s187 = ssub.s32 %s50, %s57
      %p188 = scmp.eq.s32.totalorder %s187, 0
      %s190 = sadd.s32 %s189, 1
      %s191 = scalar_select %p188, %s189, %s190
      %p194 = pneg %p188
      %p195 = scmp.eq.s32.totalorder %s42, 1
      %p196 = por %p194, %p195
      %p197 = scmp.ne.s32.totalorder %s189, %s192
      %p198 = scmp.eq.s32.totalorder %s42, 0
      %p199 = por %p197, %p198
      %p200 = scmp.ne.s32.totalorder %s189, %s192
      %p201 = scmp.eq.s32.totalorder %s47, 1
      %p202 = por %p200, %p201
      %p203 = scmp.ne.s32.totalorder %s192, %s193
      %p204 = scmp.eq.s32.totalorder %s47, 0
      %p205 = por %p203, %p204
      %p206 = scmp.ne.s32.totalorder %s192, %s193
      %p207 = scmp.eq.s32.totalorder %s48, 1
      %p208 = por %p206, %p207
      %p210 = scmp.ne.s32.totalorder %s193, %s209
      %p211 = scmp.eq.s32.totalorder %s48, 0
      %p212 = por %p210, %p211
      %s213 = ssub.s32 %s50, %s57
      %p214 = scmp.eq.s32.totalorder %s213, 0
      %s216 = sadd.s32 %s215, 1
      %s217 = scalar_select %p214, %s215, %s216
      %p220 = pneg %p214
      %p221 = scmp.eq.s32.totalorder %s42, 1
      %p222 = por %p220, %p221
      %p223 = scmp.ne.s32.totalorder %s215, %s218
      %p224 = scmp.eq.s32.totalorder %s42, 0
      %p225 = por %p223, %p224
      %p226 = scmp.ne.s32.totalorder %s215, %s218
      %p227 = scmp.eq.s32.totalorder %s47, 1
      %p228 = por %p226, %p227
      %p229 = scmp.ne.s32.totalorder %s218, %s219
      %p230 = scmp.eq.s32.totalorder %s47, 0
      %p231 = por %p229, %p230
      %p232 = scmp.ne.s32.totalorder %s218, %s219
      %p233 = scmp.eq.s32.totalorder %s48, 1
      %p234 = por %p232, %p233
      %p236 = scmp.ne.s32.totalorder %s219, %s235
      %p237 = scmp.eq.s32.totalorder %s48, 0
      %p238 = por %p236, %p237
      %s239 = ssub.s32 %s50, %s57
      %p240 = scmp.eq.s32.totalorder %s239, 0
      %s242 = sadd.s32 %s241, 1
      %s243 = scalar_select %p240, %s241, %s242
      %p246 = pneg %p240
      %p247 = scmp.eq.s32.totalorder %s42, 1
      %p248 = por %p246, %p247
      %p249 = scmp.ne.s32.totalorder %s241, %s244
      %p250 = scmp.eq.s32.totalorder %s42, 0
      %p251 = por %p249, %p250
      %p252 = scmp.ne.s32.totalorder %s241, %s244
      %p253 = scmp.eq.s32.totalorder %s47, 1
      %p254 = por %p252, %p253
      %p255 = scmp.ne.s32.totalorder %s244, %s245
      %p256 = scmp.eq.s32.totalorder %s47, 0
      %p257 = por %p255, %p256
      %p258 = scmp.ne.s32.totalorder %s244, %s245
      %p259 = scmp.eq.s32.totalorder %s48, 1
      %p260 = por %p258, %p259
      %p262 = scmp.ne.s32.totalorder %s245, %s261
      %p263 = scmp.eq.s32.totalorder %s48, 0
      %p264 = por %p262, %p263
      %s265 = ssub.s32 %s50, %s57
      %p266 = scmp.eq.s32.totalorder %s265, 0
      %s268 = sadd.s32 %s267, 1
      %s269 = scalar_select %p266, %s267, %s268
      %p272 = pneg %p266
      %p273 = scmp.eq.s32.totalorder %s42, 1
      %p274 = por %p272, %p273
      %p275 = scmp.ne.s32.totalorder %s267, %s270
      %p276 = scmp.eq.s32.totalorder %s42, 0
      %p277 = por %p275, %p276
      %p278 = scmp.ne.s32.totalorder %s267, %s270
      %p279 = scmp.eq.s32.totalorder %s47, 1
      %p280 = por %p278, %p279
      %p281 = scmp.ne.s32.totalorder %s270, %s271
      %p282 = scmp.eq.s32.totalorder %s47, 0
      %p283 = por %p281, %p282
      %p284 = scmp.ne.s32.totalorder %s270, %s271
      %p285 = scmp.eq.s32.totalorder %s48, 1
      %p286 = por %p284, %p285
      %p288 = scmp.ne.s32.totalorder %s271, %s287
      %p289 = scmp.eq.s32.totalorder %s48, 0
      %p290 = por %p288, %p289
      %s291 = ssub.s32 %s50, %s57
      %p292 = scmp.eq.s32.totalorder %s291, 0
      %s294 = sadd.s32 %s293, 1
      %s295 = scalar_select %p292, %s293, %s294
      %p298 = pneg %p292
      %p299 = scmp.eq.s32.totalorder %s42, 1
      %p300 = por %p298, %p299
      %p301 = scmp.ne.s32.totalorder %s293, %s296
      %p302 = scmp.eq.s32.totalorder %s42, 0
      %p303 = por %p301, %p302
      %p304 = scmp.ne.s32.totalorder %s293, %s296
      %p305 = scmp.eq.s32.totalorder %s47, 1
      %p306 = por %p304, %p305
      %p307 = scmp.ne.s32.totalorder %s296, %s297
      %p308 = scmp.eq.s32.totalorder %s47, 0
      %p309 = por %p307, %p308
      %p310 = scmp.ne.s32.totalorder %s296, %s297
      %p311 = scmp.eq.s32.totalorder %s48, 1
      %p312 = por %p310, %p311
      %p314 = scmp.ne.s32.totalorder %s297, %s313
      %p315 = scmp.eq.s32.totalorder %s48, 0
      %p316 = por %p314, %p315
      %s317 = ssub.s32 %s50, %s57
      %p318 = scmp.eq.s32.totalorder %s317, 0
      %s320 = sadd.s32 %s319, 1
      %s321 = scalar_select %p318, %s319, %s320
      %p324 = pneg %p318
      %p325 = scmp.eq.s32.totalorder %s42, 1
      %p326 = por %p324, %p325
      %p327 = scmp.ne.s32.totalorder %s319, %s322
      %p328 = scmp.eq.s32.totalorder %s42, 0
      %p329 = por %p327, %p328
      %p330 = scmp.ne.s32.totalorder %s319, %s322
      %p331 = scmp.eq.s32.totalorder %s47, 1
      %p332 = por %p330, %p331
      %p333 = scmp.ne.s32.totalorder %s322, %s323
      %p334 = scmp.eq.s32.totalorder %s47, 0
      %p335 = por %p333, %p334
      %p336 = scmp.ne.s32.totalorder %s322, %s323
      %p337 = scmp.eq.s32.totalorder %s48, 1
      %p338 = por %p336, %p337
      %p340 = scmp.ne.s32.totalorder %s323, %s339
      %p341 = scmp.eq.s32.totalorder %s48, 0
      %p342 = por %p340, %p341
      %s343 = ssub.s32 %s50, %s57
      %p344 = scmp.eq.s32.totalorder %s343, 0
      %s346 = sadd.s32 %s345, 1
      %s347 = scalar_select %p344, %s345, %s346
      %p350 = pneg %p344
      %p351 = scmp.eq.s32.totalorder %s42, 1
      %p352 = por %p350, %p351
      %p353 = scmp.ne.s32.totalorder %s345, %s348
      %p354 = scmp.eq.s32.totalorder %s42, 0
      %p355 = por %p353, %p354
      %p356 = scmp.ne.s32.totalorder %s345, %s348
      %p357 = scmp.eq.s32.totalorder %s47, 1
      %p358 = por %p356, %p357
      %p359 = scmp.ne.s32.totalorder %s348, %s349
      %p360 = scmp.eq.s32.totalorder %s47, 0
      %p361 = por %p359, %p360
      %p362 = scmp.ne.s32.totalorder %s348, %s349
      %p363 = scmp.eq.s32.totalorder %s48, 1
      %p364 = por %p362, %p363
      %p366 = scmp.ne.s32.totalorder %s349, %s365
      %p367 = scmp.eq.s32.totalorder %s48, 0
      %p368 = por %p366, %p367
      %s369 = ssub.s32 %s50, %s57
      %p370 = scmp.eq.s32.totalorder %s369, 0
      %s372 = sadd.s32 %s371, 1
      %s373 = scalar_select %p370, %s371, %s372
      %p376 = pneg %p370
      %p377 = scmp.eq.s32.totalorder %s42, 1
      %p378 = por %p376, %p377
      %p379 = scmp.ne.s32.totalorder %s371, %s374
      %p380 = scmp.eq.s32.totalorder %s42, 0
      %p381 = por %p379, %p380
      %p382 = scmp.ne.s32.totalorder %s371, %s374
      %p383 = scmp.eq.s32.totalorder %s47, 1
      %p384 = por %p382, %p383
      %p385 = scmp.ne.s32.totalorder %s374, %s375
      %p386 = scmp.eq.s32.totalorder %s47, 0
      %p387 = por %p385, %p386
      %p388 = scmp.ne.s32.totalorder %s374, %s375
      %p389 = scmp.eq.s32.totalorder %s48, 1
      %p390 = por %p388, %p389
      %p392 = scmp.ne.s32.totalorder %s375, %s391
      %p393 = scmp.eq.s32.totalorder %s48, 0
      %p394 = por %p392, %p393
      %s395 = ssub.s32 %s50, %s57
      %p396 = scmp.eq.s32.totalorder %s395, 0
      %s398 = sadd.s32 %s397, 1
      %s399 = scalar_select %p396, %s397, %s398
      %p402 = pneg %p396
      %p403 = scmp.eq.s32.totalorder %s42, 1
      %p404 = por %p402, %p403
      %p405 = scmp.ne.s32.totalorder %s397, %s400
      %p406 = scmp.eq.s32.totalorder %s42, 0
      %p407 = por %p405, %p406
      %p408 = scmp.ne.s32.totalorder %s397, %s400
      %p409 = scmp.eq.s32.totalorder %s47, 1
      %p410 = por %p408, %p409
      %p411 = scmp.ne.s32.totalorder %s400, %s401
      %p412 = scmp.eq.s32.totalorder %s47, 0
      %p413 = por %p411, %p412
      %p414 = scmp.ne.s32.totalorder %s400, %s401
      %p415 = scmp.eq.s32.totalorder %s48, 1
      %p416 = por %p414, %p415
      %p418 = scmp.ne.s32.totalorder %s401, %s417
      %p419 = scmp.eq.s32.totalorder %s48, 0
      %p420 = por %p418, %p419
      %s422 = sadd.s32 %s421, 1
      %p425 = scmp.eq.s32.totalorder %s42, 1
      %p426 = scmp.ne.s32.totalorder %s421, %s423
      %p427 = scmp.eq.s32.totalorder %s42, 0
      %p428 = por %p426, %p427
      %p429 = scmp.ne.s32.totalorder %s421, %s423
      %p430 = scmp.eq.s32.totalorder %s47, 1
      %p431 = por %p429, %p430
      %p432 = scmp.ne.s32.totalorder %s423, %s424
      %p433 = scmp.eq.s32.totalorder %s47, 0
      %p434 = por %p432, %p433
      %p435 = scmp.ne.s32.totalorder %s423, %s424
      %p436 = scmp.eq.s32.totalorder %s48, 1
      %p437 = por %p435, %p436
      %p439 = scmp.ne.s32.totalorder %s424, %s438
      %p440 = scmp.eq.s32.totalorder %s48, 0
      %p441 = por %p439, %p440
      %s443 = sadd.s32 %s442, 1
      %p446 = scmp.eq.s32.totalorder %s42, 1
      %p447 = scmp.ne.s32.totalorder %s442, %s444
      %p448 = scmp.eq.s32.totalorder %s42, 0
      %p449 = por %p447, %p448
      %p450 = scmp.ne.s32.totalorder %s442, %s444
      %p451 = scmp.eq.s32.totalorder %s47, 1
      %p452 = por %p450, %p451
      %p453 = scmp.ne.s32.totalorder %s444, %s445
      %p454 = scmp.eq.s32.totalorder %s47, 0
      %p455 = por %p453, %p454
      %p456 = scmp.ne.s32.totalorder %s444, %s445
      %p457 = scmp.eq.s32.totalorder %s48, 1
      %p458 = por %p456, %p457
      %p460 = scmp.ne.s32.totalorder %s445, %s459
      %p461 = scmp.eq.s32.totalorder %s48, 0
      %p462 = por %p460, %p461
      %s464 = sadd.s32 %s463, 1
      %p467 = scmp.eq.s32.totalorder %s42, 1
      %p468 = scmp.ne.s32.totalorder %s463, %s465
      %p469 = scmp.eq.s32.totalorder %s42, 0
      %p470 = por %p468, %p469
      %p471 = scmp.ne.s32.totalorder %s463, %s465
      %p472 = scmp.eq.s32.totalorder %s47, 1
      %p473 = por %p471, %p472
      %p474 = scmp.ne.s32.totalorder %s465, %s466
      %p475 = scmp.eq.s32.totalorder %s47, 0
      %p476 = por %p474, %p475
      %p477 = scmp.ne.s32.totalorder %s465, %s466
      %p478 = scmp.eq.s32.totalorder %s48, 1
      %p479 = por %p477, %p478
      %p481 = scmp.ne.s32.totalorder %s466, %s480
      %p482 = scmp.eq.s32.totalorder %s48, 0
      %p483 = por %p481, %p482
      %s485 = sadd.s32 %s484, 1
      %p488 = scmp.eq.s32.totalorder %s42, 1
      %p489 = scmp.ne.s32.totalorder %s484, %s486
      %p490 = scmp.eq.s32.totalorder %s42, 0
      %p491 = por %p489, %p490
      %p492 = scmp.ne.s32.totalorder %s484, %s486
      %p493 = scmp.eq.s32.totalorder %s47, 1
      %p494 = por %p492, %p493
      %p495 = scmp.ne.s32.totalorder %s486, %s487
      %p496 = scmp.eq.s32.totalorder %s47, 0
      %p497 = por %p495, %p496
      %p498 = scmp.ne.s32.totalorder %s486, %s487
      %p499 = scmp.eq.s32.totalorder %s48, 1
      %p500 = por %p498, %p499
      %p502 = scmp.ne.s32.totalorder %s487, %s501
      %p503 = scmp.eq.s32.totalorder %s48, 0
      %p504 = por %p502, %p503
      %s505 = ssub.s32 %s49, %s61
      %p506 = scmp.eq.s32.totalorder %s505, 0
      %s508 = sadd.s32 %s507, 1
      %s509 = scalar_select %p506, %s507, %s508
      %p512 = pneg %p506
      %p513 = scmp.eq.s32.totalorder %s42, 1
      %p514 = por %p512, %p513
      %p515 = scmp.ne.s32.totalorder %s507, %s510
      %p516 = scmp.eq.s32.totalorder %s42, 0
      %p517 = por %p515, %p516
      %p518 = scmp.ne.s32.totalorder %s507, %s510
      %p519 = scmp.eq.s32.totalorder %s47, 1
      %p520 = por %p518, %p519
      %p521 = scmp.ne.s32.totalorder %s510, %s511
      %p522 = scmp.eq.s32.totalorder %s47, 0
      %p523 = por %p521, %p522
      %p524 = scmp.ne.s32.totalorder %s510, %s511
      %p525 = scmp.eq.s32.totalorder %s48, 1
      %p526 = por %p524, %p525
      %p528 = scmp.ne.s32.totalorder %s511, %s527
      %p529 = scmp.eq.s32.totalorder %s48, 0
      %p530 = por %p528, %p529
      %p531 = scmp.le.s32.totalorder 1, %s42
      %p532 = scmp.lt.s32.totalorder %s42, 3
      %p533 = pnand %p531, %p532
      %p534 = pneg %p533
      // Predicated region
      $region9: #{tpu_custom_call.1} parent=5 // pred_check
        _
      $region10: #{tpu_custom_call.1} parent=5 // pred_check_branch
        %536 = sbr.rel (%p533) target = $region12
      $region11: #{tpu_custom_call.1} parent=5 // pred_region
        %s537 = ssub.s32 %s42, 1
        // Predicated region
        $region13: #{tpu_custom_call.1} parent=11 // pred_check
          %p538 = pneg %p80
        $region14: #{tpu_custom_call.1} parent=11 // pred_check_branch
          %540 = sbr.rel (%p538) target = $region16
        $region15: #{tpu_custom_call.1} parent=11 // pred_region
          %s541 = smul.u32 8, %s51
          %p542 = scmp.lt.s32.totalorder %s541, 7
          %s543 = scalar_select %p542, %s541, 7
          %s544 = smul.addr %s543, 2
          %s545 = smul.addr %s544, 4
          %s546 = scalar_lea.vmem %s0, %s545
          %s547 = smul.u32 8, %s51
        $region16: #{tpu_custom_call.1} parent=11 // pred_fallthru
          _
        // Predicated region
        $region17: #{tpu_custom_call.1} parent=11 // pred_check
          %p548 = pneg %p101
        $region18: #{tpu_custom_call.1} parent=11 // pred_check_branch
          %550 = sbr.rel (%p548) target = $region20
        $region19: #{tpu_custom_call.1} parent=11 // pred_region
          %s552 = ssub.s32 1024, 1024
          %553 = vsyncadd [#allocation4], %s552
          %s554 = sshll.u32 [#allocation3], 4
          %s555 = int_to_ptr.vmem [resolvable:$true] %s554
          %560 = dma.hbm_to_vmem [thread:$0]  %s1, 1024, %s555, [#allocation4], 64, 64, 4
        $region20: #{tpu_custom_call.1} parent=11 // pred_fallthru
          _
        // Predicated region
        $region21: #{tpu_custom_call.1} parent=11 // pred_check
          %p561 = pneg %p434
        $region22: #{tpu_custom_call.1} parent=11 // pred_check_branch
          %563 = sbr.rel (%p561) target = $region24
        $region23: #{tpu_custom_call.1} parent=11 // pred_region
          %s565 = ssub.s32 16, 16
          %566 = vsyncadd [#allocation22], %s565
          %s568 = sshll.u32 [#allocation21], 4
          %s569 = int_to_ptr.vmem [resolvable:$true] %s568
          %571 = dma.hbm_to_vmem [thread:$0]  %s14, 16, %s569, [#allocation22]
        $region24: #{tpu_custom_call.1} parent=11 // pred_fallthru
          _
        // Predicated region
        $region25: #{tpu_custom_call.1} parent=11 // pred_check
          %p572 = pneg %p455
        $region26: #{tpu_custom_call.1} parent=11 // pred_check_branch
          %574 = sbr.rel (%p572) target = $region28
        $region27: #{tpu_custom_call.1} parent=11 // pred_region
          %s576 = ssub.s32 16, 16
          %577 = vsyncadd [#allocation22], %s576
          %s579 = sshll.u32 [#allocation23], 4
          %s580 = int_to_ptr.vmem [resolvable:$true] %s579
          %582 = dma.hbm_to_vmem [thread:$0]  %s15, 16, %s580, [#allocation22]
        $region28: #{tpu_custom_call.1} parent=11 // pred_fallthru
          _
        // Predicated region
        $region29: #{tpu_custom_call.1} parent=11 // pred_check
          %p583 = pneg %p476
        $region30: #{tpu_custom_call.1} parent=11 // pred_check_branch
          %585 = sbr.rel (%p583) target = $region32
        $region31: #{tpu_custom_call.1} parent=11 // pred_region
          _
        $region32: #{tpu_custom_call.1} parent=11 // pred_fallthru
          _
        // Predicated region
        $region33: #{tpu_custom_call.1} parent=11 // pred_check
          %p586 = pneg %p497
        $region34: #{tpu_custom_call.1} parent=11 // pred_check_branch
          %588 = sbr.rel (%p586) target = $region36
        $region35: #{tpu_custom_call.1} parent=11 // pred_region
          _
        $region36: #{tpu_custom_call.1} parent=11 // pred_fallthru
          _
      $region12: #{tpu_custom_call.1} parent=5 // pred_fallthru
        _
      %p589 = scmp.lt.s32.totalorder %s42, 2
      // Predicated region
      $region37: #{tpu_custom_call.1} parent=5 // pred_check
        %p590 = pneg %p589
      $region38: #{tpu_custom_call.1} parent=5 // pred_check_branch
        %592 = sbr.rel (%p590) target = $region40
      $region39: #{tpu_custom_call.1} parent=5 // pred_region
        // Predicated region
        $region41: #{tpu_custom_call.1} parent=39 // pred_check
          %p593 = pneg %p121
        $region42: #{tpu_custom_call.1} parent=39 // pred_check_branch
          %595 = sbr.rel (%p593) target = $region44
        $region43: #{tpu_custom_call.1} parent=39 // pred_region
          %s596 = sand.u32 %s42, 1
          %s597 = scalar_lea.sflag [#allocation7], %s596
          %s598 = sand.u32 %s111, 1
          %s599 = scalar_lea.vmem [#allocation6], %s598
          %s601 = ssub.s32 16, 16
          %602 = vsyncadd %s597, %s601
          %s603 = smul.addr %s50, 16
          %s604 = scalar_lea.hbm %s2, %s603
          %s606 = sshll.u32 %s599, 4
          %s607 = int_to_ptr.vmem [resolvable:$true] %s606
          %609 = dma.hbm_to_vmem [thread:$0]  %s604, 16, %s607, %s597
        $region44: #{tpu_custom_call.1} parent=39 // pred_fallthru
          _
        // Predicated region
        $region45: #{tpu_custom_call.1} parent=39 // pred_check
          %p610 = pneg %p147
        $region46: #{tpu_custom_call.1} parent=39 // pred_check_branch
          %612 = sbr.rel (%p610) target = $region48
        $region47: #{tpu_custom_call.1} parent=39 // pred_region
          %s613 = sand.u32 %s42, 1
          %s614 = scalar_lea.sflag [#allocation7], %s613
          %s615 = sand.u32 %s137, 1
          %s616 = scalar_lea.vmem [#allocation8], %s615
          %s618 = ssub.s32 16, 16
          %619 = vsyncadd %s614, %s618
          %s620 = smul.addr %s50, 16
          %s621 = scalar_lea.hbm %s3, %s620
          %s623 = sshll.u32 %s616, 4
          %s624 = int_to_ptr.vmem [resolvable:$true] %s623
          %626 = dma.hbm_to_vmem [thread:$0]  %s621, 16, %s624, %s614
        $region48: #{tpu_custom_call.1} parent=39 // pred_fallthru
          _
        // Predicated region
        $region49: #{tpu_custom_call.1} parent=39 // pred_check
          %p627 = pneg %p173
        $region50: #{tpu_custom_call.1} parent=39 // pred_check_branch
          %629 = sbr.rel (%p627) target = $region52
        $region51: #{tpu_custom_call.1} parent=39 // pred_region
          %s630 = sand.u32 %s42, 1
          %s631 = scalar_lea.sflag [#allocation10], %s630
          %s632 = sand.u32 %s163, 1
          %s633 = smul.addr %s632, 8
          %s634 = scalar_lea.vmem [#allocation9], %s633
          %s636 = ssub.s32 128, 128
          %637 = vsyncadd %s631, %s636
          %s638 = smul.addr %s50, 2
          %s639 = smul.addr %s638, 64
          %s640 = scalar_lea.hbm %s4, %s639
          %s641 = sshll.u32 %s634, 4
          %s642 = int_to_ptr.vmem [resolvable:$true] %s641
          %647 = dma.hbm_to_vmem [thread:$0]  %s640, 128, %s642, %s631, 64, 64, 4
        $region52: #{tpu_custom_call.1} parent=39 // pred_fallthru
          _
        // Predicated region
        $region53: #{tpu_custom_call.1} parent=39 // pred_check
          %p648 = pneg %p199
        $region54: #{tpu_custom_call.1} parent=39 // pred_check_branch
          %650 = sbr.rel (%p648) target = $region56
        $region55: #{tpu_custom_call.1} parent=39 // pred_region
          %p651 = scmp.lt.s32.totalorder %s50, 1
          %s652 = scalar_select %p651, %s50, 1
          %s653 = smul.addr %s652, 2
          %s654 = smul.addr %s653, 8
          %s655 = scalar_lea.vmem %s5, %s654
        $region56: #{tpu_custom_call.1} parent=39 // pred_fallthru
          _
        // Predicated region
        $region57: #{tpu_custom_call.1} parent=39 // pred_check
          %p656 = pneg %p225
        $region58: #{tpu_custom_call.1} parent=39 // pred_check_branch
          %658 = sbr.rel (%p656) target = $region60
        $region59: #{tpu_custom_call.1} parent=39 // pred_region
          %s659 = sand.u32 %s42, 1
          %s660 = scalar_lea.sflag [#allocation10], %s659
          %s661 = sand.u32 %s215, 1
          %s662 = smul.addr %s661, 8
          %s663 = scalar_lea.vmem [#allocation11], %s662
          %s665 = ssub.s32 128, 128
          %666 = vsyncadd %s660, %s665
          %s667 = smul.addr %s50, 2
          %s668 = smul.addr %s667, 64
          %s669 = scalar_lea.hbm %s6, %s668
          %s670 = sshll.u32 %s663, 4
          %s671 = int_to_ptr.vmem [resolvable:$true] %s670
          %676 = dma.hbm_to_vmem [thread:$0]  %s669, 128, %s671, %s660, 64, 64, 4
        $region60: #{tpu_custom_call.1} parent=39 // pred_fallthru
          _
        // Predicated region
        $region61: #{tpu_custom_call.1} parent=39 // pred_check
          %p677 = pneg %p251
        $region62: #{tpu_custom_call.1} parent=39 // pred_check_branch
          %679 = sbr.rel (%p677) target = $region64
        $region63: #{tpu_custom_call.1} parent=39 // pred_region
          %p680 = scmp.lt.s32.totalorder %s50, 1
          %s681 = scalar_select %p680, %s50, 1
          %s682 = smul.addr %s681, 2
          %s683 = smul.addr %s682, 8
          %s684 = scalar_lea.vmem %s7, %s683
        $region64: #{tpu_custom_call.1} parent=39 // pred_fallthru
          _
        // Predicated region
        $region65: #{tpu_custom_call.1} parent=39 // pred_check
          %p685 = pneg %p277
        $region66: #{tpu_custom_call.1} parent=39 // pred_check_branch
          %687 = sbr.rel (%p685) target = $region68
        $region67: #{tpu_custom_call.1} parent=39 // pred_region
          %s688 = sand.u32 %s42, 1
          %s689 = scalar_lea.sflag [#allocation13], %s688
          %s690 = sand.u32 %s267, 1
          %s691 = scalar_lea.vmem [#allocation12], %s690
          %s693 = ssub.s32 16, 16
          %694 = vsyncadd %s689, %s693
          %s695 = smul.addr %s50, 16
          %s696 = scalar_lea.hbm %s8, %s695
          %s698 = sshll.u32 %s691, 4
          %s699 = int_to_ptr.vmem [resolvable:$true] %s698
          %701 = dma.hbm_to_vmem [thread:$0]  %s696, 16, %s699, %s689
        $region68: #{tpu_custom_call.1} parent=39 // pred_fallthru
          _
        // Predicated region
        $region69: #{tpu_custom_call.1} parent=39 // pred_check
          %p702 = pneg %p303
        $region70: #{tpu_custom_call.1} parent=39 // pred_check_branch
          %704 = sbr.rel (%p702) target = $region72
        $region71: #{tpu_custom_call.1} parent=39 // pred_region
          %s705 = sand.u32 %s42, 1
          %s706 = scalar_lea.sflag [#allocation13], %s705
          %s707 = sand.u32 %s293, 1
          %s708 = scalar_lea.vmem [#allocation14], %s707
          %s710 = ssub.s32 16, 16
          %711 = vsyncadd %s706, %s710
          %s712 = smul.addr %s50, 16
          %s713 = scalar_lea.hbm %s9, %s712
          %s715 = sshll.u32 %s708, 4
          %s716 = int_to_ptr.vmem [resolvable:$true] %s715
          %718 = dma.hbm_to_vmem [thread:$0]  %s713, 16, %s716, %s706
        $region72: #{tpu_custom_call.1} parent=39 // pred_fallthru
          _
        // Predicated region
        $region73: #{tpu_custom_call.1} parent=39 // pred_check
          %p719 = pneg %p329
        $region74: #{tpu_custom_call.1} parent=39 // pred_check_branch
          %721 = sbr.rel (%p719) target = $region76
        $region75: #{tpu_custom_call.1} parent=39 // pred_region
          %s722 = sand.u32 %s42, 1
          %s723 = scalar_lea.sflag [#allocation16], %s722
          %s724 = sand.u32 %s319, 1
          %s725 = smul.addr %s724, 64
          %s726 = scalar_lea.vmem [#allocation15], %s725
          %s728 = ssub.s32 1024, 1024
          %729 = vsyncadd %s723, %s728
          %s730 = smul.addr %s50, 16
          %s731 = smul.addr %s730, 64
          %s732 = scalar_lea.hbm %s10, %s731
          %s733 = sshll.u32 %s726, 4
          %s734 = int_to_ptr.vmem [resolvable:$true] %s733
          %739 = dma.hbm_to_vmem [thread:$0]  %s732, 1024, %s734, %s723, 64, 64, 4
        $region76: #{tpu_custom_call.1} parent=39 // pred_fallthru
          _
        // Predicated region
        $region77: #{tpu_custom_call.1} parent=39 // pred_check
          %p740 = pneg %p355
        $region78: #{tpu_custom_call.1} parent=39 // pred_check_branch
          %742 = sbr.rel (%p740) target = $region80
        $region79: #{tpu_custom_call.1} parent=39 // pred_region
          %s743 = sand.u32 %s42, 1
          %s744 = scalar_lea.sflag [#allocation16], %s743
          %s745 = sand.u32 %s345, 1
          %s746 = scalar_lea.vmem [#allocation17], %s745
          %s748 = ssub.s32 16, 16
          %749 = vsyncadd %s744, %s748
          %s750 = smul.addr %s50, 16
          %s751 = scalar_lea.hbm %s11, %s750
          %s753 = sshll.u32 %s746, 4
          %s754 = int_to_ptr.vmem [resolvable:$true] %s753
          %756 = dma.hbm_to_vmem [thread:$0]  %s751, 16, %s754, %s744
        $region80: #{tpu_custom_call.1} parent=39 // pred_fallthru
          _
        // Predicated region
        $region81: #{tpu_custom_call.1} parent=39 // pred_check
          %p757 = pneg %p381
        $region82: #{tpu_custom_call.1} parent=39 // pred_check_branch
          %759 = sbr.rel (%p757) target = $region84
        $region83: #{tpu_custom_call.1} parent=39 // pred_region
          %s760 = sand.u32 %s42, 1
          %s761 = scalar_lea.sflag [#allocation19], %s760
          %s762 = sand.u32 %s371, 1
          %s763 = smul.addr %s762, 64
          %s764 = scalar_lea.vmem [#allocation18], %s763
          %s766 = ssub.s32 1024, 1024
          %767 = vsyncadd %s761, %s766
          %s768 = smul.addr %s50, 16
          %s769 = smul.addr %s768, 64
          %s770 = scalar_lea.hbm %s12, %s769
          %s771 = sshll.u32 %s764, 4
          %s772 = int_to_ptr.vmem [resolvable:$true] %s771
          %777 = dma.hbm_to_vmem [thread:$0]  %s770, 1024, %s772, %s761, 64, 64, 4
        $region84: #{tpu_custom_call.1} parent=39 // pred_fallthru
          _
        // Predicated region
        $region85: #{tpu_custom_call.1} parent=39 // pred_check
          %p778 = pneg %p407
        $region86: #{tpu_custom_call.1} parent=39 // pred_check_branch
          %780 = sbr.rel (%p778) target = $region88
        $region87: #{tpu_custom_call.1} parent=39 // pred_region
          %s781 = sand.u32 %s42, 1
          %s782 = scalar_lea.sflag [#allocation19], %s781
          %s783 = sand.u32 %s397, 1
          %s784 = scalar_lea.vmem [#allocation20], %s783
          %s786 = ssub.s32 16, 16
          %787 = vsyncadd %s782, %s786
          %s788 = smul.addr %s50, 16
          %s789 = scalar_lea.hbm %s13, %s788
          %s791 = sshll.u32 %s784, 4
          %s792 = int_to_ptr.vmem [resolvable:$true] %s791
          %794 = dma.hbm_to_vmem [thread:$0]  %s789, 16, %s792, %s782
        $region88: #{tpu_custom_call.1} parent=39 // pred_fallthru
          _
      $region40: #{tpu_custom_call.1} parent=5 // pred_fallthru
        _
      %p795 = scmp.le.s32.totalorder 1, %s42
      %p796 = scmp.lt.s32.totalorder %s42, 3
      %p797 = pnand %p795, %p796
      %p798 = pneg %p797
      // Predicated region
      $region89: #{tpu_custom_call.1} parent=5 // pred_check
        _
      $region90: #{tpu_custom_call.1} parent=5 // pred_check_branch
        %800 = sbr.rel (%p797) target = $region92
      $region91: #{tpu_custom_call.1} parent=5 // pred_region
        %s801 = ssub.s32 %s42, 1
        // Predicated region
        $region93: #{tpu_custom_call.1} parent=91 // pred_check
          %p802 = pneg %p101
        $region94: #{tpu_custom_call.1} parent=91 // pred_check_branch
          %804 = sbr.rel (%p802) target = $region96
        $region95: #{tpu_custom_call.1} parent=91 // pred_region
          %805 = dma.done [#allocation4], 1024
        $region96: #{tpu_custom_call.1} parent=91 // pred_fallthru
          _
        %s806 = sand.u32 %s47, 1
        %s807 = scalar_lea.sflag [#allocation7], %s806
        %s808 = sand.u32 %s114, 1
        %s809 = scalar_lea.vmem [#allocation6], %s808
        // Predicated region
        $region97: #{tpu_custom_call.1} parent=91 // pred_check
          %p810 = pneg %p127
        $region98: #{tpu_custom_call.1} parent=91 // pred_check_branch
          %812 = sbr.rel (%p810) target = $region100
        $region99: #{tpu_custom_call.1} parent=91 // pred_region
          %813 = dma.done %s807, 16
        $region100: #{tpu_custom_call.1} parent=91 // pred_fallthru
          _
        %s814 = sand.u32 %s47, 1
        %s815 = scalar_lea.sflag [#allocation7], %s814
        %s816 = sand.u32 %s140, 1
        %s817 = scalar_lea.vmem [#allocation8], %s816
        // Predicated region
        $region101: #{tpu_custom_call.1} parent=91 // pred_check
          %p818 = pneg %p153
        $region102: #{tpu_custom_call.1} parent=91 // pred_check_branch
          %820 = sbr.rel (%p818) target = $region104
        $region103: #{tpu_custom_call.1} parent=91 // pred_region
          %821 = dma.done %s815, 16
        $region104: #{tpu_custom_call.1} parent=91 // pred_fallthru
          _
        %s822 = sand.u32 %s47, 1
        %s823 = scalar_lea.sflag [#allocation10], %s822
        %s824 = sand.u32 %s166, 1
        %s825 = smul.addr %s824, 8
        %s826 = scalar_lea.vmem [#allocation9], %s825
        // Predicated region
        $region105: #{tpu_custom_call.1} parent=91 // pred_check
          %p827 = pneg %p179
        $region106: #{tpu_custom_call.1} parent=91 // pred_check_branch
          %829 = sbr.rel (%p827) target = $region108
        $region107: #{tpu_custom_call.1} parent=91 // pred_region
          %830 = dma.done %s823, 128
        $region108: #{tpu_custom_call.1} parent=91 // pred_fallthru
          _
        %s831 = sand.u32 %s47, 1
        %s832 = scalar_lea.sflag [#allocation10], %s831
        %s833 = sand.u32 %s218, 1
        %s834 = smul.addr %s833, 8
        %s835 = scalar_lea.vmem [#allocation11], %s834
        // Predicated region
        $region109: #{tpu_custom_call.1} parent=91 // pred_check
          %p836 = pneg %p231
        $region110: #{tpu_custom_call.1} parent=91 // pred_check_branch
          %838 = sbr.rel (%p836) target = $region112
        $region111: #{tpu_custom_call.1} parent=91 // pred_region
          %839 = dma.done %s832, 128
        $region112: #{tpu_custom_call.1} parent=91 // pred_fallthru
          _
        %s840 = sand.u32 %s47, 1
        %s841 = scalar_lea.sflag [#allocation13], %s840
        %s842 = sand.u32 %s270, 1
        %s843 = scalar_lea.vmem [#allocation12], %s842
        // Predicated region
        $region113: #{tpu_custom_call.1} parent=91 // pred_check
          %p844 = pneg %p283
        $region114: #{tpu_custom_call.1} parent=91 // pred_check_branch
          %846 = sbr.rel (%p844) target = $region116
        $region115: #{tpu_custom_call.1} parent=91 // pred_region
          %847 = dma.done %s841, 16
        $region116: #{tpu_custom_call.1} parent=91 // pred_fallthru
          _
        %s848 = sand.u32 %s47, 1
        %s849 = scalar_lea.sflag [#allocation13], %s848
        %s850 = sand.u32 %s296, 1
        %s851 = scalar_lea.vmem [#allocation14], %s850
        // Predicated region
        $region117: #{tpu_custom_call.1} parent=91 // pred_check
          %p852 = pneg %p309
        $region118: #{tpu_custom_call.1} parent=91 // pred_check_branch
          %854 = sbr.rel (%p852) target = $region120
        $region119: #{tpu_custom_call.1} parent=91 // pred_region
          %855 = dma.done %s849, 16
        $region120: #{tpu_custom_call.1} parent=91 // pred_fallthru
          _
        %s856 = sand.u32 %s47, 1
        %s857 = scalar_lea.sflag [#allocation16], %s856
        %s858 = sand.u32 %s322, 1
        %s859 = smul.addr %s858, 64
        %s860 = scalar_lea.vmem [#allocation15], %s859
        // Predicated region
        $region121: #{tpu_custom_call.1} parent=91 // pred_check
          %p861 = pneg %p335
        $region122: #{tpu_custom_call.1} parent=91 // pred_check_branch
          %863 = sbr.rel (%p861) target = $region124
        $region123: #{tpu_custom_call.1} parent=91 // pred_region
          %864 = dma.done %s857, 1024
        $region124: #{tpu_custom_call.1} parent=91 // pred_fallthru
          _
        %s865 = sand.u32 %s47, 1
        %s866 = scalar_lea.sflag [#allocation16], %s865
        %s867 = sand.u32 %s348, 1
        %s868 = scalar_lea.vmem [#allocation17], %s867
        // Predicated region
        $region125: #{tpu_custom_call.1} parent=91 // pred_check
          %p869 = pneg %p361
        $region126: #{tpu_custom_call.1} parent=91 // pred_check_branch
          %871 = sbr.rel (%p869) target = $region128
        $region127: #{tpu_custom_call.1} parent=91 // pred_region
          %872 = dma.done %s866, 16
        $region128: #{tpu_custom_call.1} parent=91 // pred_fallthru
          _
        %s873 = sand.u32 %s47, 1
        %s874 = scalar_lea.sflag [#allocation19], %s873
        %s875 = sand.u32 %s374, 1
        %s876 = smul.addr %s875, 64
        %s877 = scalar_lea.vmem [#allocation18], %s876
        // Predicated region
        $region129: #{tpu_custom_call.1} parent=91 // pred_check
          %p878 = pneg %p387
        $region130: #{tpu_custom_call.1} parent=91 // pred_check_branch
          %880 = sbr.rel (%p878) target = $region132
        $region131: #{tpu_custom_call.1} parent=91 // pred_region
          %881 = dma.done %s874, 1024
        $region132: #{tpu_custom_call.1} parent=91 // pred_fallthru
          _
        %s882 = sand.u32 %s47, 1
        %s883 = scalar_lea.sflag [#allocation19], %s882
        %s884 = sand.u32 %s400, 1
        %s885 = scalar_lea.vmem [#allocation20], %s884
        // Predicated region
        $region133: #{tpu_custom_call.1} parent=91 // pred_check
          %p886 = pneg %p413
        $region134: #{tpu_custom_call.1} parent=91 // pred_check_branch
          %888 = sbr.rel (%p886) target = $region136
        $region135: #{tpu_custom_call.1} parent=91 // pred_region
          %889 = dma.done %s883, 16
        $region136: #{tpu_custom_call.1} parent=91 // pred_fallthru
          _
        // Predicated region
        $region137: #{tpu_custom_call.1} parent=91 // pred_check
          %p890 = pneg %p434
        $region138: #{tpu_custom_call.1} parent=91 // pred_check_branch
          %892 = sbr.rel (%p890) target = $region140
        $region139: #{tpu_custom_call.1} parent=91 // pred_region
          %893 = dma.done [#allocation22], 16
        $region140: #{tpu_custom_call.1} parent=91 // pred_fallthru
          _
        // Predicated region
        $region141: #{tpu_custom_call.1} parent=91 // pred_check
          %p894 = pneg %p455
        $region142: #{tpu_custom_call.1} parent=91 // pred_check_branch
          %896 = sbr.rel (%p894) target = $region144
        $region143: #{tpu_custom_call.1} parent=91 // pred_region
          %897 = dma.done [#allocation22], 16
        $region144: #{tpu_custom_call.1} parent=91 // pred_fallthru
          _
        %s898 = smul.u32 8, %s51
        %p899 = scmp.lt.s32.totalorder %s898, 7
        %s900 = scalar_select %p899, %s898, 7
        %s901 = smul.addr %s900, 2
        %s902 = smul.addr %s901, 4
        %s903 = scalar_lea.vmem %s0, %s902
        %p904 = pneg %p80
        %p905 = pneg %p77
        %p906 = pneg %p101
        %p907 = pneg %p98
        %s908 = sand.u32 %s47, 1
        %s909 = scalar_lea.sflag [#allocation7], %s908
        %s910 = sand.u32 %s114, 1
        %s911 = scalar_lea.vmem [#allocation6], %s910
        %p912 = pneg %p127
        %p913 = pneg %p124
        %s914 = sand.u32 %s47, 1
        %s915 = scalar_lea.sflag [#allocation7], %s914
        %s916 = sand.u32 %s140, 1
        %s917 = scalar_lea.vmem [#allocation8], %s916
        %p918 = pneg %p153
        %p919 = pneg %p150
        %s920 = sand.u32 %s47, 1
        %s921 = scalar_lea.sflag [#allocation10], %s920
        %s922 = sand.u32 %s166, 1
        %s923 = smul.addr %s922, 8
        %s924 = scalar_lea.vmem [#allocation9], %s923
        %p925 = pneg %p179
        %p926 = pneg %p176
        %p927 = scmp.lt.s32.totalorder %s52, 1
        %s928 = scalar_select %p927, %s52, 1
        %s929 = smul.addr %s928, 2
        %s930 = smul.addr %s929, 8
        %s931 = scalar_lea.vmem %s5, %s930
        %p932 = pneg %p205
        %p933 = pneg %p202
        %s934 = sand.u32 %s47, 1
        %s935 = scalar_lea.sflag [#allocation10], %s934
        %s936 = sand.u32 %s218, 1
        %s937 = smul.addr %s936, 8
        %s938 = scalar_lea.vmem [#allocation11], %s937
        %p939 = pneg %p231
        %p940 = pneg %p228
        %p941 = scmp.lt.s32.totalorder %s52, 1
        %s942 = scalar_select %p941, %s52, 1
        %s943 = smul.addr %s942, 2
        %s944 = smul.addr %s943, 8
        %s945 = scalar_lea.vmem %s7, %s944
        %p946 = pneg %p257
        %p947 = pneg %p254
        %s948 = sand.u32 %s47, 1
        %s949 = scalar_lea.sflag [#allocation13], %s948
        %s950 = sand.u32 %s270, 1
        %s951 = scalar_lea.vmem [#allocation12], %s950
        %p952 = pneg %p283
        %p953 = pneg %p280
        %s954 = sand.u32 %s47, 1
        %s955 = scalar_lea.sflag [#allocation13], %s954
        %s956 = sand.u32 %s296, 1
        %s957 = scalar_lea.vmem [#allocation14], %s956
        %p958 = pneg %p309
        %p959 = pneg %p306
        %s960 = sand.u32 %s47, 1
        %s961 = scalar_lea.sflag [#allocation16], %s960
        %s962 = sand.u32 %s322, 1
        %s963 = smul.addr %s962, 64
        %s964 = scalar_lea.vmem [#allocation15], %s963
        %p965 = pneg %p335
        %p966 = pneg %p332
        %s967 = sand.u32 %s47, 1
        %s968 = scalar_lea.sflag [#allocation16], %s967
        %s969 = sand.u32 %s348, 1
        %s970 = scalar_lea.vmem [#allocation17], %s969
        %p971 = pneg %p361
        %p972 = pneg %p358
        %s973 = sand.u32 %s47, 1
        %s974 = scalar_lea.sflag [#allocation19], %s973
        %s975 = sand.u32 %s374, 1
        %s976 = smul.addr %s975, 64
        %s977 = scalar_lea.vmem [#allocation18], %s976
        %p978 = pneg %p387
        %p979 = pneg %p384
        %s980 = sand.u32 %s47, 1
        %s981 = scalar_lea.sflag [#allocation19], %s980
        %s982 = sand.u32 %s400, 1
        %s983 = scalar_lea.vmem [#allocation20], %s982
        %p984 = pneg %p413
        %p985 = pneg %p410
        %p986 = pneg %p434
        %p987 = pneg %p431
        %p988 = pneg %p455
        %p989 = pneg %p452
        %p990 = pneg %p476
        %p991 = pneg %p473
        %p992 = pneg %p497
        %p993 = pneg %p494
        %p994 = pneg %p523
        %p995 = pneg %p520
        %s996 = smul.u32 8, %s51
        %p997 = scmp.lt.s32.totalorder %s996, 7
        %s998 = scalar_select %p997, %s996, 7
        %s999 = smul.addr %s998, 2
        %s1000 = smul.addr %s999, 4
        %s1001 = scalar_lea.vmem %s0, %s1000
        %s1002 = smul.u32 8, %s51
        %p1003 = scmp.lt.s32.totalorder %s52, 1
        %s1004 = scalar_select %p1003, %s52, 1
        %s1005 = smul.addr %s1004, 2
        %s1006 = smul.addr %s1005, 8
        %s1007 = scalar_lea.vmem %s5, %s1006
        %p1008 = scmp.lt.s32.totalorder %s52, 1
        %s1009 = scalar_select %p1008, %s52, 1
        %s1010 = smul.addr %s1009, 2
        %s1011 = smul.addr %s1010, 8
        %s1012 = scalar_lea.vmem %s7, %s1011
        %v1014 = vlaneseq
        %v1015 = vand.u32 %v1014, 127
        %vm1016 = vcmp.lt.s32.totalorder %v1015, 32
        %p1017 = scmp.eq.s32.totalorder %s52, 0
        // Predicated region
        $region145: #{tpu_custom_call.1} parent=91 // pred_check
          %p1018 = pneg %p1017
        $region146: #{tpu_custom_call.1} parent=91 // pred_check_branch
          %1020 = sbr.rel (%p1018) target = $region148
        $region147: #{tpu_custom_call.1} parent=91 // pred_region
          %v1021 = vld [vmem:[%s1001] sm:$0xf]
          %v1022 = vld [vmem:[%s1001 + $0x4] sm:$0xf]
          %v1023 = vld [vmem:[%s1001 + $0x8] sm:$0xf]
          %v1024 = vld [vmem:[%s1001 + $0xc] sm:$0xf]
          %v1025 = vld [vmem:[%s1001 + $0x10] sm:$0xf]
          %v1026 = vld [vmem:[%s1001 + $0x14] sm:$0xf]
          %v1027 = vld [vmem:[%s1001 + $0x18] sm:$0xf]
          %v1028 = vld [vmem:[%s1001 + $0x1c] sm:$0xf]
          %v1029 = vld [vmem:[%s1001 + $0x20] sm:$0xf]
          %v1030 = vld [vmem:[%s1001 + $0x24] sm:$0xf]
          %v1031 = vld [vmem:[%s1001 + $0x28] sm:$0xf]
          %v1032 = vld [vmem:[%s1001 + $0x2c] sm:$0xf]
          %v1033 = vld [vmem:[%s1001 + $0x30] sm:$0xf]
          %v1034 = vld [vmem:[%s1001 + $0x34] sm:$0xf]
          %v1035 = vld [vmem:[%s1001 + $0x38] sm:$0xf]
          %v1036 = vld [vmem:[%s1001 + $0x3c] sm:$0xf]
          %v1037 = vld [vmem:[#allocation3] sm:$0xf]
          %v1038 = vld [vmem:[#allocation3 + $0x4] sm:$0xf]
          %v1039 = vld [vmem:[#allocation3 + $0x8] sm:$0xf]
          %v1040 = vld [vmem:[#allocation3 + $0xc] sm:$0xf]
          %v1041 = vld [vmem:[#allocation3 + $0x10] sm:$0xf]
          %v1042 = vld [vmem:[#allocation3 + $0x14] sm:$0xf]
          %v1043 = vld [vmem:[#allocation3 + $0x18] sm:$0xf]
          %v1044 = vld [vmem:[#allocation3 + $0x1c] sm:$0xf]
          %v1045 = vld [vmem:[#allocation3 + $0x20] sm:$0xf]
          %v1046 = vld [vmem:[#allocation3 + $0x24] sm:$0xf]
          %v1047 = vld [vmem:[#allocation3 + $0x28] sm:$0xf]
          %v1048 = vld [vmem:[#allocation3 + $0x2c] sm:$0xf]
          %v1049 = vld [vmem:[#allocation3 + $0x30] sm:$0xf]
          %v1050 = vld [vmem:[#allocation3 + $0x34] sm:$0xf]
          %v1051 = vld [vmem:[#allocation3 + $0x38] sm:$0xf]
          %v1052 = vld [vmem:[#allocation3 + $0x3c] sm:$0xf]
          %v1069 = vunpack.c.l.b16 %v1021
          %v1070 = vunpack.c.l.b16 %v1022
          %v1071 = vunpack.c.l.b16 %v1023
          %v1072 = vunpack.c.l.b16 %v1024
          %v1073 = vunpack.c.l.b16 %v1025
          %v1074 = vunpack.c.l.b16 %v1026
          %v1075 = vunpack.c.l.b16 %v1027
          %v1076 = vunpack.c.l.b16 %v1028
          %v1077 = vunpack.c.l.b16 %v1029
          %v1078 = vunpack.c.l.b16 %v1030
          %v1079 = vunpack.c.l.b16 %v1031
          %v1080 = vunpack.c.l.b16 %v1032
          %v1081 = vunpack.c.l.b16 %v1033
          %v1082 = vunpack.c.l.b16 %v1034
          %v1083 = vunpack.c.l.b16 %v1035
          %v1084 = vunpack.c.l.b16 %v1036
          %v1085 = vpack.c.b16 %v1070, %v1069
          %v1086 = vpack.c.b16 %v1072, %v1071
          %v1087 = vpack.c.b16 %v1074, %v1073
          %v1088 = vpack.c.b16 %v1076, %v1075
          %v1089 = vpack.c.b16 %v1078, %v1077
          %v1090 = vpack.c.b16 %v1080, %v1079
          %v1091 = vpack.c.b16 %v1082, %v1081
          %v1092 = vpack.c.b16 %v1084, %v1083
          %v1117 = vunpack.c.l.b16 %v1037
          %v1118 = vunpack.c.l.b16 %v1038
          %v1119 = vunpack.c.l.b16 %v1039
          %v1120 = vunpack.c.l.b16 %v1040
          %v1121 = vunpack.c.l.b16 %v1041
          %v1122 = vunpack.c.l.b16 %v1042
          %v1123 = vunpack.c.l.b16 %v1043
          %v1124 = vunpack.c.l.b16 %v1044
          %v1125 = vunpack.c.l.b16 %v1045
          %v1126 = vunpack.c.l.b16 %v1046
          %v1127 = vunpack.c.l.b16 %v1047
          %v1128 = vunpack.c.l.b16 %v1048
          %v1129 = vunpack.c.l.b16 %v1049
          %v1130 = vunpack.c.l.b16 %v1050
          %v1131 = vunpack.c.l.b16 %v1051
          %v1132 = vunpack.c.l.b16 %v1052
          %v1133 = vpack.c.b16 %v1118, %v1117
          %v1134 = vpack.c.b16 %v1120, %v1119
          %v1135 = vpack.c.b16 %v1122, %v1121
          %v1136 = vpack.c.b16 %v1124, %v1123
          %v1137 = vpack.c.b16 %v1126, %v1125
          %v1138 = vpack.c.b16 %v1128, %v1127
          %v1139 = vpack.c.b16 %v1130, %v1129
          %v1140 = vpack.c.b16 %v1132, %v1131
          %1149 = vmatprep.subr.bf16.mxu0 0
          %1150 = vmatpush1.bf16.msra.mxu0 %v1133
          %1151 = vmatprep.subr.bf16.mxu0 0
          %1152 = vmatpush1.bf16.msra.mxu0 %v1134
          %1153 = vmatprep.subr.bf16.mxu0 0
          %1154 = vmatpush1.bf16.msra.mxu0 %v1135
          %1155 = vmatprep.subr.bf16.mxu0 0
          %1156 = vmatpush1.bf16.msra.mxu0 %v1136
          %1157 = vmatprep.subr.bf16.mxu0 0
          %1158 = vmatpush1.bf16.msra.mxu0 %v1137
          %1159 = vmatprep.subr.bf16.mxu0 0
          %1160 = vmatpush1.bf16.msra.mxu0 %v1138
          %1161 = vmatprep.subr.bf16.mxu0 0
          %1162 = vmatpush1.bf16.msra.mxu0 %v1139
          %1163 = vmatprep.subr.bf16.mxu0 0
          %1164 = vmatpush1.bf16.msra.mxu0 %v1140
          %1165 = vmatprep.subr.bf16.mxu0 0
          %1166 = vmatpush1.bf16.msra.mxu0 0
          %1167 = vmatprep.subr.bf16.mxu0 0
          %1168 = vmatpush1.bf16.msra.mxu0 0
          %1169 = vmatprep.subr.bf16.mxu0 0
          %1170 = vmatpush1.bf16.msra.mxu0 0
          %1171 = vmatprep.subr.bf16.mxu0 0
          %1172 = vmatpush1.bf16.msra.mxu0 0
          %1173 = vmatprep.subr.bf16.mxu0 0
          %1174 = vmatpush1.bf16.msra.mxu0 0
          %1175 = vmatprep.subr.bf16.mxu0 0
          %1176 = vmatpush1.bf16.msra.mxu0 0
          %1177 = vmatprep.subr.bf16.mxu0 0
          %1178 = vmatpush1.bf16.msra.mxu0 0
          %1179 = vmatprep.subr.bf16.mxu0 0
          %1180 = vmatpush1.bf16.msra.mxu0 0
          %1181 = vmatprep.mubr.bf16.mxu0 0
          %1182 = vmatmul.mubr.bf16.gmra.mrb[0].mxu0 %v1085
          %v1183 = vpop.f32.mrb[0].mxu0
          %v1184 = vadd.f32 0.0, %v1183
          %v1185 = vpop.f32.mrb[0].mxu0
          %v1186 = vpop.f32.mrb[0].mxu0
          %v1187 = vadd.f32 0.0, %v1186
          %v1188 = vpop.f32.mrb[0].mxu0
          %1189 = vmatprep.mubr.bf16.mxu0 0
          %1190 = vmatmul.mubr.bf16.gmra.mrb[0].mxu0 %v1086
          %v1191 = vpop.f32.mrb[0].mxu0
          %v1192 = vadd.f32 0.0, %v1191
          %v1193 = vpop.f32.mrb[0].mxu0
          %v1194 = vpop.f32.mrb[0].mxu0
          %v1195 = vadd.f32 0.0, %v1194
          %v1196 = vpop.f32.mrb[0].mxu0
          %1197 = vmatprep.mubr.bf16.mxu0 0
          %1198 = vmatmul.mubr.bf16.gmra.mrb[0].mxu0 %v1087
          %v1199 = vpop.f32.mrb[0].mxu0
          %v1200 = vadd.f32 0.0, %v1199
          %v1201 = vpop.f32.mrb[0].mxu0
          %v1202 = vpop.f32.mrb[0].mxu0
          %v1203 = vadd.f32 0.0, %v1202
          %v1204 = vpop.f32.mrb[0].mxu0
          %1205 = vmatprep.mubr.bf16.mxu0 0
          %1206 = vmatmul.mubr.bf16.gmra.mrb[0].mxu0 %v1088
          %v1207 = vpop.f32.mrb[0].mxu0
          %v1208 = vadd.f32 0.0, %v1207
          %v1209 = vpop.f32.mrb[0].mxu0
          %v1210 = vpop.f32.mrb[0].mxu0
          %v1211 = vadd.f32 0.0, %v1210
          %v1212 = vpop.f32.mrb[0].mxu0
          %1213 = vmatprep.mubr.bf16.mxu0 0
          %1214 = vmatmul.mubr.bf16.gmra.mrb[0].mxu0 %v1089
          %v1215 = vpop.f32.mrb[0].mxu0
          %v1216 = vadd.f32 0.0, %v1215
          %v1217 = vpop.f32.mrb[0].mxu0
          %v1218 = vpop.f32.mrb[0].mxu0
          %v1219 = vadd.f32 0.0, %v1218
          %v1220 = vpop.f32.mrb[0].mxu0
          %1221 = vmatprep.mubr.bf16.mxu0 0
          %1222 = vmatmul.mubr.bf16.gmra.mrb[0].mxu0 %v1090
          %v1223 = vpop.f32.mrb[0].mxu0
          %v1224 = vadd.f32 0.0, %v1223
          %v1225 = vpop.f32.mrb[0].mxu0
          %v1226 = vpop.f32.mrb[0].mxu0
          %v1227 = vadd.f32 0.0, %v1226
          %v1228 = vpop.f32.mrb[0].mxu0
          %1229 = vmatprep.mubr.bf16.mxu0 0
          %1230 = vmatmul.mubr.bf16.gmra.mrb[0].mxu0 %v1091
          %v1231 = vpop.f32.mrb[0].mxu0
          %v1232 = vadd.f32 0.0, %v1231
          %v1233 = vpop.f32.mrb[0].mxu0
          %v1234 = vpop.f32.mrb[0].mxu0
          %v1235 = vadd.f32 0.0, %v1234
          %v1236 = vpop.f32.mrb[0].mxu0
          %1237 = vmatprep.mubr.bf16.mxu0 0
          %1238 = vmatmul.mubr.bf16.gmra.mrb[0].mxu0 %v1092
          %v1239 = vpop.f32.mrb[0].mxu0
          %v1240 = vadd.f32 0.0, %v1239
          %v1241 = vpop.f32.mrb[0].mxu0
          %v1242 = vpop.f32.mrb[0].mxu0
          %v1243 = vadd.f32 0.0, %v1242
          %v1244 = vpop.f32.mrb[0].mxu0
          %1245 = vdwg.mxu0
          %1246 = vst [vmem:[#allocation2] sm:$0xff] %v1184
          %1247 = vst [vmem:[#allocation2 + $0x8] sm:$0xff] %v1187
          %1248 = vst [vmem:[#allocation2 + $0x10] sm:$0xff] %v1192
          %1249 = vst [vmem:[#allocation2 + $0x18] sm:$0xff] %v1195
          %1250 = vst [vmem:[#allocation2 + $0x20] sm:$0xff] %v1200
          %1251 = vst [vmem:[#allocation2 + $0x28] sm:$0xff] %v1203
          %1252 = vst [vmem:[#allocation2 + $0x30] sm:$0xff] %v1208
          %1253 = vst [vmem:[#allocation2 + $0x38] sm:$0xff] %v1211
          %1254 = vst [vmem:[#allocation2 + $0x40] sm:$0xff] %v1216
          %1255 = vst [vmem:[#allocation2 + $0x48] sm:$0xff] %v1219
          %1256 = vst [vmem:[#allocation2 + $0x50] sm:$0xff] %v1224
          %1257 = vst [vmem:[#allocation2 + $0x58] sm:$0xff] %v1227
          %1258 = vst [vmem:[#allocation2 + $0x60] sm:$0xff] %v1232
          %1259 = vst [vmem:[#allocation2 + $0x68] sm:$0xff] %v1235
          %1260 = vst [vmem:[#allocation2 + $0x70] sm:$0xff] %v1240
          %1261 = vst [vmem:[#allocation2 + $0x78] sm:$0xff] %v1243
        $region148: #{tpu_custom_call.1} parent=91 // pred_fallthru
          _
        %v1262 = vld [vmem:[#allocation2] sm:$0xff]
        %v1263 = vld [vmem:[#allocation2 + $0x8] sm:$0xff]
        %v1264 = vld [vmem:[#allocation2 + $0x10] sm:$0xff]
        %v1265 = vld [vmem:[#allocation2 + $0x18] sm:$0xff]
        %v1266 = vld [vmem:[#allocation2 + $0x20] sm:$0xff]
        %v1267 = vld [vmem:[#allocation2 + $0x28] sm:$0xff]
        %v1268 = vld [vmem:[#allocation2 + $0x30] sm:$0xff]
        %v1269 = vld [vmem:[#allocation2 + $0x38] sm:$0xff]
        %v1270 = vld [vmem:[#allocation2 + $0x40] sm:$0xff]
        %v1271 = vld [vmem:[#allocation2 + $0x48] sm:$0xff]
        %v1272 = vld [vmem:[#allocation2 + $0x50] sm:$0xff]
        %v1273 = vld [vmem:[#allocation2 + $0x58] sm:$0xff]
        %v1274 = vld [vmem:[#allocation2 + $0x60] sm:$0xff]
        %v1275 = vld [vmem:[#allocation2 + $0x68] sm:$0xff]
        %v1276 = vld [vmem:[#allocation2 + $0x70] sm:$0xff]
        %v1277 = vld [vmem:[#allocation2 + $0x78] sm:$0xff]
        %v1278 = vld [vmem:[%s809] sm:$0x1]
        %v1279 = vld [vmem:[%s817] sm:$0x1]
        %v1280 = vsel %vm1016, 1, 0
        %vm1281 = vcmp.eq.s32.totalorder %v1280, 1
        %v1282 = vsel %vm1281, %v1262, 0.0
        %v1283 = vsel %vm1281, %v1263, 0.0
        %v1284 = vsel %vm1281, %v1264, 0.0
        %v1285 = vsel %vm1281, %v1265, 0.0
        %v1286 = vsel %vm1281, %v1266, 0.0
        %v1287 = vsel %vm1281, %v1267, 0.0
        %v1288 = vsel %vm1281, %v1268, 0.0
        %v1289 = vsel %vm1281, %v1269, 0.0
        %v1290 = vsel %vm1281, %v1270, 0.0
        %v1291 = vsel %vm1281, %v1271, 0.0
        %v1292 = vsel %vm1281, %v1272, 0.0
        %v1293 = vsel %vm1281, %v1273, 0.0
        %v1294 = vsel %vm1281, %v1274, 0.0
        %v1295 = vsel %vm1281, %v1275, 0.0
        %v1296 = vsel %vm1281, %v1276, 0.0
        %v1297 = vsel %vm1281, %v1277, 0.0
        %1298 = vadd.xlane.f32.xlu0 %v1282
        %v1299 = vpop.xlane.xlu0 %1298
        %1300 = vadd.xlane.f32.xlu0 %v1283
        %v1301 = vpop.xlane.xlu0 %1300
        %1302 = vadd.xlane.f32.xlu0 %v1284
        %v1303 = vpop.xlane.xlu0 %1302
        %1304 = vadd.xlane.f32.xlu0 %v1285
        %v1305 = vpop.xlane.xlu0 %1304
        %1306 = vadd.xlane.f32.xlu0 %v1286
        %v1307 = vpop.xlane.xlu0 %1306
        %1308 = vadd.xlane.f32.xlu0 %v1287
        %v1309 = vpop.xlane.xlu0 %1308
        %1310 = vadd.xlane.f32.xlu0 %v1288
        %v1311 = vpop.xlane.xlu0 %1310
        %1312 = vadd.xlane.f32.xlu0 %v1289
        %v1313 = vpop.xlane.xlu0 %1312
        %1314 = vadd.xlane.f32.xlu0 %v1290
        %v1315 = vpop.xlane.xlu0 %1314
        %1316 = vadd.xlane.f32.xlu0 %v1291
        %v1317 = vpop.xlane.xlu0 %1316
        %1318 = vadd.xlane.f32.xlu0 %v1292
        %v1319 = vpop.xlane.xlu0 %1318
        %1320 = vadd.xlane.f32.xlu0 %v1293
        %v1321 = vpop.xlane.xlu0 %1320
        %1322 = vadd.xlane.f32.xlu0 %v1294
        %v1323 = vpop.xlane.xlu0 %1322
        %1324 = vadd.xlane.f32.xlu0 %v1295
        %v1325 = vpop.xlane.xlu0 %1324
        %1326 = vadd.xlane.f32.xlu0 %v1296
        %v1327 = vpop.xlane.xlu0 %1326
        %1328 = vadd.xlane.f32.xlu0 %v1297
        %v1329 = vpop.xlane.xlu0 %1328
        %v1330 = vmul.f32 %v1299, 0.03125
        %v1331 = vmul.f32 %v1301, 0.03125
        %v1332 = vmul.f32 %v1303, 0.03125
        %v1333 = vmul.f32 %v1305, 0.03125
        %v1334 = vmul.f32 %v1307, 0.03125
        %v1335 = vmul.f32 %v1309, 0.03125
        %v1336 = vmul.f32 %v1311, 0.03125
        %v1337 = vmul.f32 %v1313, 0.03125
        %v1338 = vmul.f32 %v1315, 0.03125
        %v1339 = vmul.f32 %v1317, 0.03125
        %v1340 = vmul.f32 %v1319, 0.03125
        %v1341 = vmul.f32 %v1321, 0.03125
        %v1342 = vmul.f32 %v1323, 0.03125
        %v1343 = vmul.f32 %v1325, 0.03125
        %v1344 = vmul.f32 %v1327, 0.03125
        %v1345 = vmul.f32 %v1329, 0.03125
        %v1346 = vsub.f32 %v1262, %v1330
        %v1347 = vsub.f32 %v1263, %v1331
        %v1348 = vsub.f32 %v1264, %v1332
        %v1349 = vsub.f32 %v1265, %v1333
        %v1350 = vsub.f32 %v1266, %v1334
        %v1351 = vsub.f32 %v1267, %v1335
        %v1352 = vsub.f32 %v1268, %v1336
        %v1353 = vsub.f32 %v1269, %v1337
        %v1354 = vsub.f32 %v1270, %v1338
        %v1355 = vsub.f32 %v1271, %v1339
        %v1356 = vsub.f32 %v1272, %v1340
        %v1357 = vsub.f32 %v1273, %v1341
        %v1358 = vsub.f32 %v1274, %v1342
        %v1359 = vsub.f32 %v1275, %v1343
        %v1360 = vsub.f32 %v1276, %v1344
        %v1361 = vsub.f32 %v1277, %v1345
        %v1362 = vsel %vm1281, %v1346, 0.0
        %v1363 = vsel %vm1281, %v1347, 0.0
        %v1364 = vsel %vm1281, %v1348, 0.0
        %v1365 = vsel %vm1281, %v1349, 0.0
        %v1366 = vsel %vm1281, %v1350, 0.0
        %v1367 = vsel %vm1281, %v1351, 0.0
        %v1368 = vsel %vm1281, %v1352, 0.0
        %v1369 = vsel %vm1281, %v1353, 0.0
        %v1370 = vsel %vm1281, %v1354, 0.0
        %v1371 = vsel %vm1281, %v1355, 0.0
        %v1372 = vsel %vm1281, %v1356, 0.0
        %v1373 = vsel %vm1281, %v1357, 0.0
        %v1374 = vsel %vm1281, %v1358, 0.0
        %v1375 = vsel %vm1281, %v1359, 0.0
        %v1376 = vsel %vm1281, %v1360, 0.0
        %v1377 = vsel %vm1281, %v1361, 0.0
        %v1378 = vmul.f32 %v1362, %v1362
        %v1379 = vmul.f32 %v1363, %v1363
        %v1380 = vmul.f32 %v1364, %v1364
        %v1381 = vmul.f32 %v1365, %v1365
        %v1382 = vmul.f32 %v1366, %v1366
        %v1383 = vmul.f32 %v1367, %v1367
        %v1384 = vmul.f32 %v1368, %v1368
        %v1385 = vmul.f32 %v1369, %v1369
        %v1386 = vmul.f32 %v1370, %v1370
        %v1387 = vmul.f32 %v1371, %v1371
        %v1388 = vmul.f32 %v1372, %v1372
        %v1389 = vmul.f32 %v1373, %v1373
        %v1390 = vmul.f32 %v1374, %v1374
        %v1391 = vmul.f32 %v1375, %v1375
        %v1392 = vmul.f32 %v1376, %v1376
        %v1393 = vmul.f32 %v1377, %v1377
        %1394 = vadd.xlane.f32.xlu0 %v1378
        %v1395 = vpop.xlane.xlu0 %1394
        %1396 = vadd.xlane.f32.xlu0 %v1379
        %v1397 = vpop.xlane.xlu0 %1396
        %1398 = vadd.xlane.f32.xlu0 %v1380
        %v1399 = vpop.xlane.xlu0 %1398
        %1400 = vadd.xlane.f32.xlu0 %v1381
        %v1401 = vpop.xlane.xlu0 %1400
        %1402 = vadd.xlane.f32.xlu0 %v1382
        %v1403 = vpop.xlane.xlu0 %1402
        %1404 = vadd.xlane.f32.xlu0 %v1383
        %v1405 = vpop.xlane.xlu0 %1404
        %1406 = vadd.xlane.f32.xlu0 %v1384
        %v1407 = vpop.xlane.xlu0 %1406
        %1408 = vadd.xlane.f32.xlu0 %v1385
        %v1409 = vpop.xlane.xlu0 %1408
        %1410 = vadd.xlane.f32.xlu0 %v1386
        %v1411 = vpop.xlane.xlu0 %1410
        %1412 = vadd.xlane.f32.xlu0 %v1387
        %v1413 = vpop.xlane.xlu0 %1412
        %1414 = vadd.xlane.f32.xlu0 %v1388
        %v1415 = vpop.xlane.xlu0 %1414
        %1416 = vadd.xlane.f32.xlu0 %v1389
        %v1417 = vpop.xlane.xlu0 %1416
        %1418 = vadd.xlane.f32.xlu0 %v1390
        %v1419 = vpop.xlane.xlu0 %1418
        %1420 = vadd.xlane.f32.xlu0 %v1391
        %v1421 = vpop.xlane.xlu0 %1420
        %1422 = vadd.xlane.f32.xlu0 %v1392
        %v1423 = vpop.xlane.xlu0 %1422
        %1424 = vadd.xlane.f32.xlu0 %v1393
        %v1425 = vpop.xlane.xlu0 %1424
        %v1426 = vmul.f32 %v1395, 0.03125
        %v1427 = vmul.f32 %v1397, 0.03125
        %v1428 = vmul.f32 %v1399, 0.03125
        %v1429 = vmul.f32 %v1401, 0.03125
        %v1430 = vmul.f32 %v1403, 0.03125
        %v1431 = vmul.f32 %v1405, 0.03125
        %v1432 = vmul.f32 %v1407, 0.03125
        %v1433 = vmul.f32 %v1409, 0.03125
        %v1434 = vmul.f32 %v1411, 0.03125
        %v1435 = vmul.f32 %v1413, 0.03125
        %v1436 = vmul.f32 %v1415, 0.03125
        %v1437 = vmul.f32 %v1417, 0.03125
        %v1438 = vmul.f32 %v1419, 0.03125
        %v1439 = vmul.f32 %v1421, 0.03125
        %v1440 = vmul.f32 %v1423, 0.03125
        %v1441 = vmul.f32 %v1425, 0.03125
        %v1442 = vadd.f32 %v1426, 1e-05
        %v1443 = vadd.f32 %v1427, 1e-05
        %v1444 = vadd.f32 %v1428, 1e-05
        %v1445 = vadd.f32 %v1429, 1e-05
        %v1446 = vadd.f32 %v1430, 1e-05
        %v1447 = vadd.f32 %v1431, 1e-05
        %v1448 = vadd.f32 %v1432, 1e-05
        %v1449 = vadd.f32 %v1433, 1e-05
        %v1450 = vadd.f32 %v1434, 1e-05
        %v1451 = vadd.f32 %v1435, 1e-05
        %v1452 = vadd.f32 %v1436, 1e-05
        %v1453 = vadd.f32 %v1437, 1e-05
        %v1454 = vadd.f32 %v1438, 1e-05
        %v1455 = vadd.f32 %v1439, 1e-05
        %v1456 = vadd.f32 %v1440, 1e-05
        %v1457 = vadd.f32 %v1441, 1e-05
        %v1458 = vrsqrt.pop %v1442
        %v1459 = vrsqrt.pop %v1443
        %v1460 = vrsqrt.pop %v1444
        %v1461 = vrsqrt.pop %v1445
        %v1462 = vrsqrt.pop %v1446
        %v1463 = vrsqrt.pop %v1447
        %v1464 = vrsqrt.pop %v1448
        %v1465 = vrsqrt.pop %v1449
        %v1466 = vrsqrt.pop %v1450
        %v1467 = vrsqrt.pop %v1451
        %v1468 = vrsqrt.pop %v1452
        %v1469 = vrsqrt.pop %v1453
        %v1470 = vrsqrt.pop %v1454
        %v1471 = vrsqrt.pop %v1455
        %v1472 = vrsqrt.pop %v1456
        %v1473 = vrsqrt.pop %v1457
        %v1474 = vmul.f32 %v1346, %v1458
        %v1475 = vmul.f32 %v1347, %v1459
        %v1476 = vmul.f32 %v1348, %v1460
        %v1477 = vmul.f32 %v1349, %v1461
        %v1478 = vmul.f32 %v1350, %v1462
        %v1479 = vmul.f32 %v1351, %v1463
        %v1480 = vmul.f32 %v1352, %v1464
        %v1481 = vmul.f32 %v1353, %v1465
        %v1482 = vmul.f32 %v1354, %v1466
        %v1483 = vmul.f32 %v1355, %v1467
        %v1484 = vmul.f32 %v1356, %v1468
        %v1485 = vmul.f32 %v1357, %v1469
        %v1486 = vmul.f32 %v1358, %v1470
        %v1487 = vmul.f32 %v1359, %v1471
        %v1488 = vmul.f32 %v1360, %v1472
        %v1489 = vmul.f32 %v1361, %v1473
        %v1491 = vlaneseq
        %v1492 = vshrl.u32 %v1491, 7
        %v1493 = vsub.s32 0, %v1492
        %v1494 = vrot.slane %v1278, %v1493
        %v1496 = vmul.f32 %v1474, %v1494
        %v1497 = vmul.f32 %v1475, %v1494
        %v1498 = vmul.f32 %v1476, %v1494
        %v1499 = vmul.f32 %v1477, %v1494
        %v1500 = vmul.f32 %v1478, %v1494
        %v1501 = vmul.f32 %v1479, %v1494
        %v1502 = vmul.f32 %v1480, %v1494
        %v1503 = vmul.f32 %v1481, %v1494
        %v1504 = vmul.f32 %v1482, %v1494
        %v1505 = vmul.f32 %v1483, %v1494
        %v1506 = vmul.f32 %v1484, %v1494
        %v1507 = vmul.f32 %v1485, %v1494
        %v1508 = vmul.f32 %v1486, %v1494
        %v1509 = vmul.f32 %v1487, %v1494
        %v1510 = vmul.f32 %v1488, %v1494
        %v1511 = vmul.f32 %v1489, %v1494
        %v1513 = vlaneseq
        %v1514 = vshrl.u32 %v1513, 7
        %v1515 = vsub.s32 0, %v1514
        %v1516 = vrot.slane %v1279, %v1515
        %v1518 = vadd.f32 %v1496, %v1516
        %v1519 = vadd.f32 %v1497, %v1516
        %v1520 = vadd.f32 %v1498, %v1516
        %v1521 = vadd.f32 %v1499, %v1516
        %v1522 = vadd.f32 %v1500, %v1516
        %v1523 = vadd.f32 %v1501, %v1516
        %v1524 = vadd.f32 %v1502, %v1516
        %v1525 = vadd.f32 %v1503, %v1516
        %v1526 = vadd.f32 %v1504, %v1516
        %v1527 = vadd.f32 %v1505, %v1516
        %v1528 = vadd.f32 %v1506, %v1516
        %v1529 = vadd.f32 %v1507, %v1516
        %v1530 = vadd.f32 %v1508, %v1516
        %v1531 = vadd.f32 %v1509, %v1516
        %v1532 = vadd.f32 %v1510, %v1516
        %v1533 = vadd.f32 %v1511, %v1516
        %v1534 = vpack.c.bf16 %v1519, %v1518
        %v1535 = vpack.c.bf16 %v1521, %v1520
        %v1536 = vpack.c.bf16 %v1523, %v1522
        %v1537 = vpack.c.bf16 %v1525, %v1524
        %v1538 = vpack.c.bf16 %v1527, %v1526
        %v1539 = vpack.c.bf16 %v1529, %v1528
        %v1540 = vpack.c.bf16 %v1531, %v1530
        %v1541 = vpack.c.bf16 %v1533, %v1532
        %v1542 = vld [vmem:[%s826] sm:$0xf]
        %v1543 = vld [vmem:[%s826 + $0x4] sm:$0xf]
        %v1544 = vld [vmem:[%s1007] sm:$0xff]
        %v1545 = vld [vmem:[%s1007 + $0x8] sm:$0xff]
        %1547 = vset.pattern.permute.xlu0 0
        %1548 = vperm.xlu0 %1547, %v1544
        %v1549 = vpop.permute.xlu0 %1548
        %1552 = vset.pattern.permute.xlu0 0
        %1553 = vperm.xlu0 %1552, %v1545
        %v1554 = vpop.permute.xlu0 %1553
        %v1558 = vunpack.c.l.b16 %v1542
        %v1559 = vunpack.c.l.b16 %v1543
        %v1560 = vpack.c.b16 %v1559, %v1558
        %vm1561 = vcmask 130048
        %v1563 = vsel %vm1561, %v1560, 0
        %1565 = vmatprep.subr.bf16.mxu0 0
        %1566 = vmatpush1.bf16.msra.mxu0 %v1534
        %1567 = vmatprep.subr.bf16.mxu0 0
        %1568 = vmatpush1.bf16.msra.mxu0 0
        %1569 = vmatprep.subr.bf16.mxu0 0
        %1570 = vmatpush1.bf16.msra.mxu0 0
        %1571 = vmatprep.subr.bf16.mxu0 0
        %1572 = vmatpush1.bf16.msra.mxu0 0
        %1573 = vmatprep.subr.bf16.mxu0 0
        %1574 = vmatpush1.bf16.msra.mxu0 0
        %1575 = vmatprep.subr.bf16.mxu0 0
        %1576 = vmatpush1.bf16.msra.mxu0 0
        %1577 = vmatprep.subr.bf16.mxu0 0
        %1578 = vmatpush1.bf16.msra.mxu0 0
        %1579 = vmatprep.subr.bf16.mxu0 0
        %1580 = vmatpush1.bf16.msra.mxu0 0
        %1581 = vmatprep.subr.bf16.mxu0 0
        %1582 = vmatpush1.bf16.msra.mxu0 0
        %1583 = vmatprep.subr.bf16.mxu0 0
        %1584 = vmatpush1.bf16.msra.mxu0 0
        %1585 = vmatprep.subr.bf16.mxu0 0
        %1586 = vmatpush1.bf16.msra.mxu0 0
        %1587 = vmatprep.subr.bf16.mxu0 0
        %1588 = vmatpush1.bf16.msra.mxu0 0
        %1589 = vmatprep.subr.bf16.mxu0 0
        %1590 = vmatpush1.bf16.msra.mxu0 0
        %1591 = vmatprep.subr.bf16.mxu0 0
        %1592 = vmatpush1.bf16.msra.mxu0 0
        %1593 = vmatprep.subr.bf16.mxu0 0
        %1594 = vmatpush1.bf16.msra.mxu0 0
        %1595 = vmatprep.subr.bf16.mxu0 0
        %1596 = vmatpush1.bf16.msra.mxu0 0
        %1597 = vmatprep.mubr.bf16.mxu0 0
        %1598 = vmatmul.mubr.bf16.gmra.mrb[0].mxu0 %v1563
        %v1599 = vpop.f32.mrb[0].mxu0
        %v1600 = vadd.f32 %v1549, %v1599
        %v1601 = vpop.f32.mrb[0].mxu0
        %v1602 = vpop.f32.mrb[0].mxu0
        %v1603 = vadd.f32 %v1554, %v1602
        %v1604 = vpop.f32.mrb[0].mxu0
        %1605 = vdwg.mxu0
        %1606 = vmatprep.subr.bf16.mxu0 0
        %1607 = vmatpush1.bf16.msra.mxu0 %v1535
        %1608 = vmatprep.subr.bf16.mxu0 0
        %1609 = vmatpush1.bf16.msra.mxu0 0
        %1610 = vmatprep.subr.bf16.mxu0 0
        %1611 = vmatpush1.bf16.msra.mxu0 0
        %1612 = vmatprep.subr.bf16.mxu0 0
        %1613 = vmatpush1.bf16.msra.mxu0 0
        %1614 = vmatprep.subr.bf16.mxu0 0
        %1615 = vmatpush1.bf16.msra.mxu0 0
        %1616 = vmatprep.subr.bf16.mxu0 0
        %1617 = vmatpush1.bf16.msra.mxu0 0
        %1618 = vmatprep.subr.bf16.mxu0 0
        %1619 = vmatpush1.bf16.msra.mxu0 0
        %1620 = vmatprep.subr.bf16.mxu0 0
        %1621 = vmatpush1.bf16.msra.mxu0 0
        %1622 = vmatprep.subr.bf16.mxu0 0
        %1623 = vmatpush1.bf16.msra.mxu0 0
        %1624 = vmatprep.subr.bf16.mxu0 0
        %1625 = vmatpush1.bf16.msra.mxu0 0
        %1626 = vmatprep.subr.bf16.mxu0 0
        %1627 = vmatpush1.bf16.msra.mxu0 0
        %1628 = vmatprep.subr.bf16.mxu0 0
        %1629 = vmatpush1.bf16.msra.mxu0 0
        %1630 = vmatprep.subr.bf16.mxu0 0
        %1631 = vmatpush1.bf16.msra.mxu0 0
        %1632 = vmatprep.subr.bf16.mxu0 0
        %1633 = vmatpush1.bf16.msra.mxu0 0
        %1634 = vmatprep.subr.bf16.mxu0 0
        %1635 = vmatpush1.bf16.msra.mxu0 0
        %1636 = vmatprep.subr.bf16.mxu0 0
        %1637 = vmatpush1.bf16.msra.mxu0 0
        %1638 = vmatprep.mubr.bf16.mxu0 0
        %1639 = vmatmul.mubr.bf16.gmra.mrb[0].mxu0 %v1563
        %v1640 = vpop.f32.mrb[0].mxu0
        %v1641 = vadd.f32 %v1549, %v1640
        %v1642 = vpop.f32.mrb[0].mxu0
        %v1643 = vpop.f32.mrb[0].mxu0
        %v1644 = vadd.f32 %v1554, %v1643
        %v1645 = vpop.f32.mrb[0].mxu0
        %1646 = vdwg.mxu0
        %1647 = vmatprep.subr.bf16.mxu0 0
        %1648 = vmatpush1.bf16.msra.mxu0 %v1536
        %1649 = vmatprep.subr.bf16.mxu0 0
        %1650 = vmatpush1.bf16.msra.mxu0 0
        %1651 = vmatprep.subr.bf16.mxu0 0
        %1652 = vmatpush1.bf16.msra.mxu0 0
        %1653 = vmatprep.subr.bf16.mxu0 0
        %1654 = vmatpush1.bf16.msra.mxu0 0
        %1655 = vmatprep.subr.bf16.mxu0 0
        %1656 = vmatpush1.bf16.msra.mxu0 0
        %1657 = vmatprep.subr.bf16.mxu0 0
        %1658 = vmatpush1.bf16.msra.mxu0 0
        %1659 = vmatprep.subr.bf16.mxu0 0
        %1660 = vmatpush1.bf16.msra.mxu0 0
        %1661 = vmatprep.subr.bf16.mxu0 0
        %1662 = vmatpush1.bf16.msra.mxu0 0
        %1663 = vmatprep.subr.bf16.mxu0 0
        %1664 = vmatpush1.bf16.msra.mxu0 0
        %1665 = vmatprep.subr.bf16.mxu0 0
        %1666 = vmatpush1.bf16.msra.mxu0 0
        %1667 = vmatprep.subr.bf16.mxu0 0
        %1668 = vmatpush1.bf16.msra.mxu0 0
        %1669 = vmatprep.subr.bf16.mxu0 0
        %1670 = vmatpush1.bf16.msra.mxu0 0
        %1671 = vmatprep.subr.bf16.mxu0 0
        %1672 = vmatpush1.bf16.msra.mxu0 0
        %1673 = vmatprep.subr.bf16.mxu0 0
        %1674 = vmatpush1.bf16.msra.mxu0 0
        %1675 = vmatprep.subr.bf16.mxu0 0
        %1676 = vmatpush1.bf16.msra.mxu0 0
        %1677 = vmatprep.subr.bf16.mxu0 0
        %1678 = vmatpush1.bf16.msra.mxu0 0
        %1679 = vmatprep.mubr.bf16.mxu0 0
        %1680 = vmatmul.mubr.bf16.gmra.mrb[0].mxu0 %v1563
        %v1681 = vpop.f32.mrb[0].mxu0
        %v1682 = vadd.f32 %v1549, %v1681
        %v1683 = vpop.f32.mrb[0].mxu0
        %v1684 = vpop.f32.mrb[0].mxu0
        %v1685 = vadd.f32 %v1554, %v1684
        %v1686 = vpop.f32.mrb[0].mxu0
        %1687 = vdwg.mxu0
        %1688 = vmatprep.subr.bf16.mxu0 0
        %1689 = vmatpush1.bf16.msra.mxu0 %v1537
        %1690 = vmatprep.subr.bf16.mxu0 0
        %1691 = vmatpush1.bf16.msra.mxu0 0
        %1692 = vmatprep.subr.bf16.mxu0 0
        %1693 = vmatpush1.bf16.msra.mxu0 0
        %1694 = vmatprep.subr.bf16.mxu0 0
        %1695 = vmatpush1.bf16.msra.mxu0 0
        %1696 = vmatprep.subr.bf16.mxu0 0
        %1697 = vmatpush1.bf16.msra.mxu0 0
        %1698 = vmatprep.subr.bf16.mxu0 0
        %1699 = vmatpush1.bf16.msra.mxu0 0
        %1700 = vmatprep.subr.bf16.mxu0 0
        %1701 = vmatpush1.bf16.msra.mxu0 0
        %1702 = vmatprep.subr.bf16.mxu0 0
        %1703 = vmatpush1.bf16.msra.mxu0 0
        %1704 = vmatprep.subr.bf16.mxu0 0
        %1705 = vmatpush1.bf16.msra.mxu0 0
        %1706 = vmatprep.subr.bf16.mxu0 0
        %1707 = vmatpush1.bf16.msra.mxu0 0
        %1708 = vmatprep.subr.bf16.mxu0 0
        %1709 = vmatpush1.bf16.msra.mxu0 0
        %1710 = vmatprep.subr.bf16.mxu0 0
        %1711 = vmatpush1.bf16.msra.mxu0 0
        %1712 = vmatprep.subr.bf16.mxu0 0
        %1713 = vmatpush1.bf16.msra.mxu0 0
        %1714 = vmatprep.subr.bf16.mxu0 0
        %1715 = vmatpush1.bf16.msra.mxu0 0
        %1716 = vmatprep.subr.bf16.mxu0 0
        %1717 = vmatpush1.bf16.msra.mxu0 0
        %1718 = vmatprep.subr.bf16.mxu0 0
        %1719 = vmatpush1.bf16.msra.mxu0 0
        %1720 = vmatprep.mubr.bf16.mxu0 0
        %1721 = vmatmul.mubr.bf16.gmra.mrb[0].mxu0 %v1563
        %v1722 = vpop.f32.mrb[0].mxu0
        %v1723 = vadd.f32 %v1549, %v1722
        %v1724 = vpop.f32.mrb[0].mxu0
        %v1725 = vpop.f32.mrb[0].mxu0
        %v1726 = vadd.f32 %v1554, %v1725
        %v1727 = vpop.f32.mrb[0].mxu0
        %1728 = vdwg.mxu0
        %1729 = vmatprep.subr.bf16.mxu0 0
        %1730 = vmatpush1.bf16.msra.mxu0 %v1538
        %1731 = vmatprep.subr.bf16.mxu0 0
        %1732 = vmatpush1.bf16.msra.mxu0 0
        %1733 = vmatprep.subr.bf16.mxu0 0
        %1734 = vmatpush1.bf16.msra.mxu0 0
        %1735 = vmatprep.subr.bf16.mxu0 0
        %1736 = vmatpush1.bf16.msra.mxu0 0
        %1737 = vmatprep.subr.bf16.mxu0 0
        %1738 = vmatpush1.bf16.msra.mxu0 0
        %1739 = vmatprep.subr.bf16.mxu0 0
        %1740 = vmatpush1.bf16.msra.mxu0 0
        %1741 = vmatprep.subr.bf16.mxu0 0
        %1742 = vmatpush1.bf16.msra.mxu0 0
        %1743 = vmatprep.subr.bf16.mxu0 0
        %1744 = vmatpush1.bf16.msra.mxu0 0
        %1745 = vmatprep.subr.bf16.mxu0 0
        %1746 = vmatpush1.bf16.msra.mxu0 0
        %1747 = vmatprep.subr.bf16.mxu0 0
        %1748 = vmatpush1.bf16.msra.mxu0 0
        %1749 = vmatprep.subr.bf16.mxu0 0
        %1750 = vmatpush1.bf16.msra.mxu0 0
        %1751 = vmatprep.subr.bf16.mxu0 0
        %1752 = vmatpush1.bf16.msra.mxu0 0
        %1753 = vmatprep.subr.bf16.mxu0 0
        %1754 = vmatpush1.bf16.msra.mxu0 0
        %1755 = vmatprep.subr.bf16.mxu0 0
        %1756 = vmatpush1.bf16.msra.mxu0 0
        %1757 = vmatprep.subr.bf16.mxu0 0
        %1758 = vmatpush1.bf16.msra.mxu0 0
        %1759 = vmatprep.subr.bf16.mxu0 0
        %1760 = vmatpush1.bf16.msra.mxu0 0
        %1761 = vmatprep.mubr.bf16.mxu0 0
        %1762 = vmatmul.mubr.bf16.gmra.mrb[0].mxu0 %v1563
        %v1763 = vpop.f32.mrb[0].mxu0
        %v1764 = vadd.f32 %v1549, %v1763
        %v1765 = vpop.f32.mrb[0].mxu0
        %v1766 = vpop.f32.mrb[0].mxu0
        %v1767 = vadd.f32 %v1554, %v1766
        %v1768 = vpop.f32.mrb[0].mxu0
        %1769 = vdwg.mxu0
        %1770 = vmatprep.subr.bf16.mxu0 0
        %1771 = vmatpush1.bf16.msra.mxu0 %v1539
        %1772 = vmatprep.subr.bf16.mxu0 0
        %1773 = vmatpush1.bf16.msra.mxu0 0
        %1774 = vmatprep.subr.bf16.mxu0 0
        %1775 = vmatpush1.bf16.msra.mxu0 0
        %1776 = vmatprep.subr.bf16.mxu0 0
        %1777 = vmatpush1.bf16.msra.mxu0 0
        %1778 = vmatprep.subr.bf16.mxu0 0
        %1779 = vmatpush1.bf16.msra.mxu0 0
        %1780 = vmatprep.subr.bf16.mxu0 0
        %1781 = vmatpush1.bf16.msra.mxu0 0
        %1782 = vmatprep.subr.bf16.mxu0 0
        %1783 = vmatpush1.bf16.msra.mxu0 0
        %1784 = vmatprep.subr.bf16.mxu0 0
        %1785 = vmatpush1.bf16.msra.mxu0 0
        %1786 = vmatprep.subr.bf16.mxu0 0
        %1787 = vmatpush1.bf16.msra.mxu0 0
        %1788 = vmatprep.subr.bf16.mxu0 0
        %1789 = vmatpush1.bf16.msra.mxu0 0
        %1790 = vmatprep.subr.bf16.mxu0 0
        %1791 = vmatpush1.bf16.msra.mxu0 0
        %1792 = vmatprep.subr.bf16.mxu0 0
        %1793 = vmatpush1.bf16.msra.mxu0 0
        %1794 = vmatprep.subr.bf16.mxu0 0
        %1795 = vmatpush1.bf16.msra.mxu0 0
        %1796 = vmatprep.subr.bf16.mxu0 0
        %1797 = vmatpush1.bf16.msra.mxu0 0
        %1798 = vmatprep.subr.bf16.mxu0 0
        %1799 = vmatpush1.bf16.msra.mxu0 0
        %1800 = vmatprep.subr.bf16.mxu0 0
        %1801 = vmatpush1.bf16.msra.mxu0 0
        %1802 = vmatprep.mubr.bf16.mxu0 0
        %1803 = vmatmul.mubr.bf16.gmra.mrb[0].mxu0 %v1563
        %v1804 = vpop.f32.mrb[0].mxu0
        %v1805 = vadd.f32 %v1549, %v1804
        %v1806 = vpop.f32.mrb[0].mxu0
        %v1807 = vpop.f32.mrb[0].mxu0
        %v1808 = vadd.f32 %v1554, %v1807
        %v1809 = vpop.f32.mrb[0].mxu0
        %1810 = vdwg.mxu0
        %1811 = vmatprep.subr.bf16.mxu0 0
        %1812 = vmatpush1.bf16.msra.mxu0 %v1540
        %1813 = vmatprep.subr.bf16.mxu0 0
        %1814 = vmatpush1.bf16.msra.mxu0 0
        %1815 = vmatprep.subr.bf16.mxu0 0
        %1816 = vmatpush1.bf16.msra.mxu0 0
        %1817 = vmatprep.subr.bf16.mxu0 0
        %1818 = vmatpush1.bf16.msra.mxu0 0
        %1819 = vmatprep.subr.bf16.mxu0 0
        %1820 = vmatpush1.bf16.msra.mxu0 0
        %1821 = vmatprep.subr.bf16.mxu0 0
        %1822 = vmatpush1.bf16.msra.mxu0 0
        %1823 = vmatprep.subr.bf16.mxu0 0
        %1824 = vmatpush1.bf16.msra.mxu0 0
        %1825 = vmatprep.subr.bf16.mxu0 0
        %1826 = vmatpush1.bf16.msra.mxu0 0
        %1827 = vmatprep.subr.bf16.mxu0 0
        %1828 = vmatpush1.bf16.msra.mxu0 0
        %1829 = vmatprep.subr.bf16.mxu0 0
        %1830 = vmatpush1.bf16.msra.mxu0 0
        %1831 = vmatprep.subr.bf16.mxu0 0
        %1832 = vmatpush1.bf16.msra.mxu0 0
        %1833 = vmatprep.subr.bf16.mxu0 0
        %1834 = vmatpush1.bf16.msra.mxu0 0
        %1835 = vmatprep.subr.bf16.mxu0 0
        %1836 = vmatpush1.bf16.msra.mxu0 0
        %1837 = vmatprep.subr.bf16.mxu0 0
        %1838 = vmatpush1.bf16.msra.mxu0 0
        %1839 = vmatprep.subr.bf16.mxu0 0
        %1840 = vmatpush1.bf16.msra.mxu0 0
        %1841 = vmatprep.subr.bf16.mxu0 0
        %1842 = vmatpush1.bf16.msra.mxu0 0
        %1843 = vmatprep.mubr.bf16.mxu0 0
        %1844 = vmatmul.mubr.bf16.gmra.mrb[0].mxu0 %v1563
        %v1845 = vpop.f32.mrb[0].mxu0
        %v1846 = vadd.f32 %v1549, %v1845
        %v1847 = vpop.f32.mrb[0].mxu0
        %v1848 = vpop.f32.mrb[0].mxu0
        %v1849 = vadd.f32 %v1554, %v1848
        %v1850 = vpop.f32.mrb[0].mxu0
        %1851 = vdwg.mxu0
        %1852 = vmatprep.subr.bf16.mxu0 0
        %1853 = vmatpush1.bf16.msra.mxu0 %v1541
        %1854 = vmatprep.subr.bf16.mxu0 0
        %1855 = vmatpush1.bf16.msra.mxu0 0
        %1856 = vmatprep.subr.bf16.mxu0 0
        %1857 = vmatpush1.bf16.msra.mxu0 0
        %1858 = vmatprep.subr.bf16.mxu0 0
        %1859 = vmatpush1.bf16.msra.mxu0 0
        %1860 = vmatprep.subr.bf16.mxu0 0
        %1861 = vmatpush1.bf16.msra.mxu0 0
        %1862 = vmatprep.subr.bf16.mxu0 0
        %1863 = vmatpush1.bf16.msra.mxu0 0
        %1864 = vmatprep.subr.bf16.mxu0 0
        %1865 = vmatpush1.bf16.msra.mxu0 0
        %1866 = vmatprep.subr.bf16.mxu0 0
        %1867 = vmatpush1.bf16.msra.mxu0 0
        %1868 = vmatprep.subr.bf16.mxu0 0
        %1869 = vmatpush1.bf16.msra.mxu0 0
        %1870 = vmatprep.subr.bf16.mxu0 0
        %1871 = vmatpush1.bf16.msra.mxu0 0
        %1872 = vmatprep.subr.bf16.mxu0 0
        %1873 = vmatpush1.bf16.msra.mxu0 0
        %1874 = vmatprep.subr.bf16.mxu0 0
        %1875 = vmatpush1.bf16.msra.mxu0 0
        %1876 = vmatprep.subr.bf16.mxu0 0
        %1877 = vmatpush1.bf16.msra.mxu0 0
        %1878 = vmatprep.subr.bf16.mxu0 0
        %1879 = vmatpush1.bf16.msra.mxu0 0
        %1880 = vmatprep.subr.bf16.mxu0 0
        %1881 = vmatpush1.bf16.msra.mxu0 0
        %1882 = vmatprep.subr.bf16.mxu0 0
        %1883 = vmatpush1.bf16.msra.mxu0 0
        %1884 = vmatprep.mubr.bf16.mxu0 0
        %1885 = vmatmul.mubr.bf16.gmra.mrb[0].mxu0 %v1563
        %v1886 = vpop.f32.mrb[0].mxu0
        %v1887 = vadd.f32 %v1549, %v1886
        %v1888 = vpop.f32.mrb[0].mxu0
        %v1889 = vpop.f32.mrb[0].mxu0
        %v1890 = vadd.f32 %v1554, %v1889
        %v1891 = vpop.f32.mrb[0].mxu0
        %1892 = vdwg.mxu0
        %v1893 = vmul.f32 %v1600, 0.5
        %v1894 = vmul.f32 %v1603, 0.5
        %v1895 = vmul.f32 %v1641, 0.5
        %v1896 = vmul.f32 %v1644, 0.5
        %v1897 = vmul.f32 %v1682, 0.5
        %v1898 = vmul.f32 %v1685, 0.5
        %v1899 = vmul.f32 %v1723, 0.5
        %v1900 = vmul.f32 %v1726, 0.5
        %v1901 = vmul.f32 %v1764, 0.5
        %v1902 = vmul.f32 %v1767, 0.5
        %v1903 = vmul.f32 %v1805, 0.5
        %v1904 = vmul.f32 %v1808, 0.5
        %v1905 = vmul.f32 %v1846, 0.5
        %v1906 = vmul.f32 %v1849, 0.5
        %v1907 = vmul.f32 %v1887, 0.5
        %v1908 = vmul.f32 %v1890, 0.5
        %v1909 = vmul.f32 %v1600, 0.70710677
        %v1910 = vmul.f32 %v1603, 0.70710677
        %v1911 = vmul.f32 %v1641, 0.70710677
        %v1912 = vmul.f32 %v1644, 0.70710677
        %v1913 = vmul.f32 %v1682, 0.70710677
        %v1914 = vmul.f32 %v1685, 0.70710677
        %v1915 = vmul.f32 %v1723, 0.70710677
        %v1916 = vmul.f32 %v1726, 0.70710677
        %v1917 = vmul.f32 %v1764, 0.70710677
        %v1918 = vmul.f32 %v1767, 0.70710677
        %v1919 = vmul.f32 %v1805, 0.70710677
        %v1920 = vmul.f32 %v1808, 0.70710677
        %v1921 = vmul.f32 %v1846, 0.70710677
        %v1922 = vmul.f32 %v1849, 0.70710677
        %v1923 = vmul.f32 %v1887, 0.70710677
        %v1924 = vmul.f32 %v1890, 0.70710677
        %v1925 = verf.f32.pop %v1909
        %v1926 = verf.f32.pop %v1910
        %v1927 = verf.f32.pop %v1911
        %v1928 = verf.f32.pop %v1912
        %v1929 = verf.f32.pop %v1913
        %v1930 = verf.f32.pop %v1914
        %v1931 = verf.f32.pop %v1915
        %v1932 = verf.f32.pop %v1916
        %v1933 = verf.f32.pop %v1917
        %v1934 = verf.f32.pop %v1918
        %v1935 = verf.f32.pop %v1919
        %v1936 = verf.f32.pop %v1920
        %v1937 = verf.f32.pop %v1921
        %v1938 = verf.f32.pop %v1922
        %v1939 = verf.f32.pop %v1923
        %v1940 = verf.f32.pop %v1924
        %v1941 = vadd.f32 %v1925, 1.0
        %v1942 = vadd.f32 %v1926, 1.0
        %v1943 = vadd.f32 %v1927, 1.0
        %v1944 = vadd.f32 %v1928, 1.0
        %v1945 = vadd.f32 %v1929, 1.0
        %v1946 = vadd.f32 %v1930, 1.0
        %v1947 = vadd.f32 %v1931, 1.0
        %v1948 = vadd.f32 %v1932, 1.0
        %v1949 = vadd.f32 %v1933, 1.0
        %v1950 = vadd.f32 %v1934, 1.0
        %v1951 = vadd.f32 %v1935, 1.0
        %v1952 = vadd.f32 %v1936, 1.0
        %v1953 = vadd.f32 %v1937, 1.0
        %v1954 = vadd.f32 %v1938, 1.0
        %v1955 = vadd.f32 %v1939, 1.0
        %v1956 = vadd.f32 %v1940, 1.0
        %v1957 = vmul.f32 %v1893, %v1941
        %v1958 = vmul.f32 %v1894, %v1942
        %v1959 = vmul.f32 %v1895, %v1943
        %v1960 = vmul.f32 %v1896, %v1944
        %v1961 = vmul.f32 %v1897, %v1945
        %v1962 = vmul.f32 %v1898, %v1946
        %v1963 = vmul.f32 %v1899, %v1947
        %v1964 = vmul.f32 %v1900, %v1948
        %v1965 = vmul.f32 %v1901, %v1949
        %v1966 = vmul.f32 %v1902, %v1950
        %v1967 = vmul.f32 %v1903, %v1951
        %v1968 = vmul.f32 %v1904, %v1952
        %v1969 = vmul.f32 %v1905, %v1953
        %v1970 = vmul.f32 %v1906, %v1954
        %v1971 = vmul.f32 %v1907, %v1955
        %v1972 = vmul.f32 %v1908, %v1956
        %v1973 = vld [vmem:[%s835] sm:$0xf]
        %v1974 = vld [vmem:[%s835 + $0x4] sm:$0xf]
        %v1975 = vpack.c.bf16 %v1958, %v1957
        %v1976 = vpack.c.bf16 %v1960, %v1959
        %v1977 = vpack.c.bf16 %v1962, %v1961
        %v1978 = vpack.c.bf16 %v1964, %v1963
        %v1979 = vpack.c.bf16 %v1966, %v1965
        %v1980 = vpack.c.bf16 %v1968, %v1967
        %v1981 = vpack.c.bf16 %v1970, %v1969
        %v1982 = vpack.c.bf16 %v1972, %v1971
        %v1983 = vld [vmem:[%s1012] sm:$0xff]
        %v1984 = vld [vmem:[%s1012 + $0x8] sm:$0xff]
        %1986 = vset.pattern.permute.xlu0 0
        %1987 = vperm.xlu0 %1986, %v1983
        %v1988 = vpop.permute.xlu0 %1987
        %1991 = vset.pattern.permute.xlu0 0
        %1992 = vperm.xlu0 %1991, %v1984
        %v1993 = vpop.permute.xlu0 %1992
        %v1997 = vunpack.c.l.b16 %v1973
        %v1998 = vunpack.c.l.b16 %v1974
        %v1999 = vpack.c.b16 %v1998, %v1997
        %v2001 = vsel %vm1561, %v1999, 0
        %2003 = vmatprep.subr.bf16.mxu0 0
        %2004 = vmatpush1.bf16.msra.mxu0 %v1975
        %2005 = vmatprep.subr.bf16.mxu0 0
        %2006 = vmatpush1.bf16.msra.mxu0 0
        %2007 = vmatprep.subr.bf16.mxu0 0
        %2008 = vmatpush1.bf16.msra.mxu0 0
        %2009 = vmatprep.subr.bf16.mxu0 0
        %2010 = vmatpush1.bf16.msra.mxu0 0
        %2011 = vmatprep.subr.bf16.mxu0 0
        %2012 = vmatpush1.bf16.msra.mxu0 0
        %2013 = vmatprep.subr.bf16.mxu0 0
        %2014 = vmatpush1.bf16.msra.mxu0 0
        %2015 = vmatprep.subr.bf16.mxu0 0
        %2016 = vmatpush1.bf16.msra.mxu0 0
        %2017 = vmatprep.subr.bf16.mxu0 0
        %2018 = vmatpush1.bf16.msra.mxu0 0
        %2019 = vmatprep.subr.bf16.mxu0 0
        %2020 = vmatpush1.bf16.msra.mxu0 0
        %2021 = vmatprep.subr.bf16.mxu0 0
        %2022 = vmatpush1.bf16.msra.mxu0 0
        %2023 = vmatprep.subr.bf16.mxu0 0
        %2024 = vmatpush1.bf16.msra.mxu0 0
        %2025 = vmatprep.subr.bf16.mxu0 0
        %2026 = vmatpush1.bf16.msra.mxu0 0
        %2027 = vmatprep.subr.bf16.mxu0 0
        %2028 = vmatpush1.bf16.msra.mxu0 0
        %2029 = vmatprep.subr.bf16.mxu0 0
        %2030 = vmatpush1.bf16.msra.mxu0 0
        %2031 = vmatprep.subr.bf16.mxu0 0
        %2032 = vmatpush1.bf16.msra.mxu0 0
        %2033 = vmatprep.subr.bf16.mxu0 0
        %2034 = vmatpush1.bf16.msra.mxu0 0
        %2035 = vmatprep.mubr.bf16.mxu0 0
        %2036 = vmatmul.mubr.bf16.gmra.mrb[0].mxu0 %v2001
        %v2037 = vpop.f32.mrb[0].mxu0
        %v2038 = vadd.f32 %v1988, %v2037
        %v2039 = vpop.f32.mrb[0].mxu0
        %v2040 = vpop.f32.mrb[0].mxu0
        %v2041 = vadd.f32 %v1993, %v2040
        %v2042 = vpop.f32.mrb[0].mxu0
        %2043 = vdwg.mxu0
        %2044 = vmatprep.subr.bf16.mxu0 0
        %2045 = vmatpush1.bf16.msra.mxu0 %v1976
        %2046 = vmatprep.subr.bf16.mxu0 0
        %2047 = vmatpush1.bf16.msra.mxu0 0
        %2048 = vmatprep.subr.bf16.mxu0 0
        %2049 = vmatpush1.bf16.msra.mxu0 0
        %2050 = vmatprep.subr.bf16.mxu0 0
        %2051 = vmatpush1.bf16.msra.mxu0 0
        %2052 = vmatprep.subr.bf16.mxu0 0
        %2053 = vmatpush1.bf16.msra.mxu0 0
        %2054 = vmatprep.subr.bf16.mxu0 0
        %2055 = vmatpush1.bf16.msra.mxu0 0
        %2056 = vmatprep.subr.bf16.mxu0 0
        %2057 = vmatpush1.bf16.msra.mxu0 0
        %2058 = vmatprep.subr.bf16.mxu0 0
        %2059 = vmatpush1.bf16.msra.mxu0 0
        %2060 = vmatprep.subr.bf16.mxu0 0
        %2061 = vmatpush1.bf16.msra.mxu0 0
        %2062 = vmatprep.subr.bf16.mxu0 0
        %2063 = vmatpush1.bf16.msra.mxu0 0
        %2064 = vmatprep.subr.bf16.mxu0 0
        %2065 = vmatpush1.bf16.msra.mxu0 0
        %2066 = vmatprep.subr.bf16.mxu0 0
        %2067 = vmatpush1.bf16.msra.mxu0 0
        %2068 = vmatprep.subr.bf16.mxu0 0
        %2069 = vmatpush1.bf16.msra.mxu0 0
        %2070 = vmatprep.subr.bf16.mxu0 0
        %2071 = vmatpush1.bf16.msra.mxu0 0
        %2072 = vmatprep.subr.bf16.mxu0 0
        %2073 = vmatpush1.bf16.msra.mxu0 0
        %2074 = vmatprep.subr.bf16.mxu0 0
        %2075 = vmatpush1.bf16.msra.mxu0 0
        %2076 = vmatprep.mubr.bf16.mxu0 0
        %2077 = vmatmul.mubr.bf16.gmra.mrb[0].mxu0 %v2001
        %v2078 = vpop.f32.mrb[0].mxu0
        %v2079 = vadd.f32 %v1988, %v2078
        %v2080 = vpop.f32.mrb[0].mxu0
        %v2081 = vpop.f32.mrb[0].mxu0
        %v2082 = vadd.f32 %v1993, %v2081
        %v2083 = vpop.f32.mrb[0].mxu0
        %2084 = vdwg.mxu0
        %2085 = vmatprep.subr.bf16.mxu0 0
        %2086 = vmatpush1.bf16.msra.mxu0 %v1977
        %2087 = vmatprep.subr.bf16.mxu0 0
        %2088 = vmatpush1.bf16.msra.mxu0 0
        %2089 = vmatprep.subr.bf16.mxu0 0
        %2090 = vmatpush1.bf16.msra.mxu0 0
        %2091 = vmatprep.subr.bf16.mxu0 0
        %2092 = vmatpush1.bf16.msra.mxu0 0
        %2093 = vmatprep.subr.bf16.mxu0 0
        %2094 = vmatpush1.bf16.msra.mxu0 0
        %2095 = vmatprep.subr.bf16.mxu0 0
        %2096 = vmatpush1.bf16.msra.mxu0 0
        %2097 = vmatprep.subr.bf16.mxu0 0
        %2098 = vmatpush1.bf16.msra.mxu0 0
        %2099 = vmatprep.subr.bf16.mxu0 0
        %2100 = vmatpush1.bf16.msra.mxu0 0
        %2101 = vmatprep.subr.bf16.mxu0 0
        %2102 = vmatpush1.bf16.msra.mxu0 0
        %2103 = vmatprep.subr.bf16.mxu0 0
        %2104 = vmatpush1.bf16.msra.mxu0 0
        %2105 = vmatprep.subr.bf16.mxu0 0
        %2106 = vmatpush1.bf16.msra.mxu0 0
        %2107 = vmatprep.subr.bf16.mxu0 0
        %2108 = vmatpush1.bf16.msra.mxu0 0
        %2109 = vmatprep.subr.bf16.mxu0 0
        %2110 = vmatpush1.bf16.msra.mxu0 0
        %2111 = vmatprep.subr.bf16.mxu0 0
        %2112 = vmatpush1.bf16.msra.mxu0 0
        %2113 = vmatprep.subr.bf16.mxu0 0
        %2114 = vmatpush1.bf16.msra.mxu0 0
        %2115 = vmatprep.subr.bf16.mxu0 0
        %2116 = vmatpush1.bf16.msra.mxu0 0
        %2117 = vmatprep.mubr.bf16.mxu0 0
        %2118 = vmatmul.mubr.bf16.gmra.mrb[0].mxu0 %v2001
        %v2119 = vpop.f32.mrb[0].mxu0
        %v2120 = vadd.f32 %v1988, %v2119
        %v2121 = vpop.f32.mrb[0].mxu0
        %v2122 = vpop.f32.mrb[0].mxu0
        %v2123 = vadd.f32 %v1993, %v2122
        %v2124 = vpop.f32.mrb[0].mxu0
        %2125 = vdwg.mxu0
        %2126 = vmatprep.subr.bf16.mxu0 0
        %2127 = vmatpush1.bf16.msra.mxu0 %v1978
        %2128 = vmatprep.subr.bf16.mxu0 0
        %2129 = vmatpush1.bf16.msra.mxu0 0
        %2130 = vmatprep.subr.bf16.mxu0 0
        %2131 = vmatpush1.bf16.msra.mxu0 0
        %2132 = vmatprep.subr.bf16.mxu0 0
        %2133 = vmatpush1.bf16.msra.mxu0 0
        %2134 = vmatprep.subr.bf16.mxu0 0
        %2135 = vmatpush1.bf16.msra.mxu0 0
        %2136 = vmatprep.subr.bf16.mxu0 0
        %2137 = vmatpush1.bf16.msra.mxu0 0
        %2138 = vmatprep.subr.bf16.mxu0 0
        %2139 = vmatpush1.bf16.msra.mxu0 0
        %2140 = vmatprep.subr.bf16.mxu0 0
        %2141 = vmatpush1.bf16.msra.mxu0 0
        %2142 = vmatprep.subr.bf16.mxu0 0
        %2143 = vmatpush1.bf16.msra.mxu0 0
        %2144 = vmatprep.subr.bf16.mxu0 0
        %2145 = vmatpush1.bf16.msra.mxu0 0
        %2146 = vmatprep.subr.bf16.mxu0 0
        %2147 = vmatpush1.bf16.msra.mxu0 0
        %2148 = vmatprep.subr.bf16.mxu0 0
        %2149 = vmatpush1.bf16.msra.mxu0 0
        %2150 = vmatprep.subr.bf16.mxu0 0
        %2151 = vmatpush1.bf16.msra.mxu0 0
        %2152 = vmatprep.subr.bf16.mxu0 0
        %2153 = vmatpush1.bf16.msra.mxu0 0
        %2154 = vmatprep.subr.bf16.mxu0 0
        %2155 = vmatpush1.bf16.msra.mxu0 0
        %2156 = vmatprep.subr.bf16.mxu0 0
        %2157 = vmatpush1.bf16.msra.mxu0 0
        %2158 = vmatprep.mubr.bf16.mxu0 0
        %2159 = vmatmul.mubr.bf16.gmra.mrb[0].mxu0 %v2001
        %v2160 = vpop.f32.mrb[0].mxu0
        %v2161 = vadd.f32 %v1988, %v2160
        %v2162 = vpop.f32.mrb[0].mxu0
        %v2163 = vpop.f32.mrb[0].mxu0
        %v2164 = vadd.f32 %v1993, %v2163
        %v2165 = vpop.f32.mrb[0].mxu0
        %2166 = vdwg.mxu0
        %2167 = vmatprep.subr.bf16.mxu0 0
        %2168 = vmatpush1.bf16.msra.mxu0 %v1979
        %2169 = vmatprep.subr.bf16.mxu0 0
        %2170 = vmatpush1.bf16.msra.mxu0 0
        %2171 = vmatprep.subr.bf16.mxu0 0
        %2172 = vmatpush1.bf16.msra.mxu0 0
        %2173 = vmatprep.subr.bf16.mxu0 0
        %2174 = vmatpush1.bf16.msra.mxu0 0
        %2175 = vmatprep.subr.bf16.mxu0 0
        %2176 = vmatpush1.bf16.msra.mxu0 0
        %2177 = vmatprep.subr.bf16.mxu0 0
        %2178 = vmatpush1.bf16.msra.mxu0 0
        %2179 = vmatprep.subr.bf16.mxu0 0
        %2180 = vmatpush1.bf16.msra.mxu0 0
        %2181 = vmatprep.subr.bf16.mxu0 0
        %2182 = vmatpush1.bf16.msra.mxu0 0
        %2183 = vmatprep.subr.bf16.mxu0 0
        %2184 = vmatpush1.bf16.msra.mxu0 0
        %2185 = vmatprep.subr.bf16.mxu0 0
        %2186 = vmatpush1.bf16.msra.mxu0 0
        %2187 = vmatprep.subr.bf16.mxu0 0
        %2188 = vmatpush1.bf16.msra.mxu0 0
        %2189 = vmatprep.subr.bf16.mxu0 0
        %2190 = vmatpush1.bf16.msra.mxu0 0
        %2191 = vmatprep.subr.bf16.mxu0 0
        %2192 = vmatpush1.bf16.msra.mxu0 0
        %2193 = vmatprep.subr.bf16.mxu0 0
        %2194 = vmatpush1.bf16.msra.mxu0 0
        %2195 = vmatprep.subr.bf16.mxu0 0
        %2196 = vmatpush1.bf16.msra.mxu0 0
        %2197 = vmatprep.subr.bf16.mxu0 0
        %2198 = vmatpush1.bf16.msra.mxu0 0
        %2199 = vmatprep.mubr.bf16.mxu0 0
        %2200 = vmatmul.mubr.bf16.gmra.mrb[0].mxu0 %v2001
        %v2201 = vpop.f32.mrb[0].mxu0
        %v2202 = vadd.f32 %v1988, %v2201
        %v2203 = vpop.f32.mrb[0].mxu0
        %v2204 = vpop.f32.mrb[0].mxu0
        %v2205 = vadd.f32 %v1993, %v2204
        %v2206 = vpop.f32.mrb[0].mxu0
        %2207 = vdwg.mxu0
        %2208 = vmatprep.subr.bf16.mxu0 0
        %2209 = vmatpush1.bf16.msra.mxu0 %v1980
        %2210 = vmatprep.subr.bf16.mxu0 0
        %2211 = vmatpush1.bf16.msra.mxu0 0
        %2212 = vmatprep.subr.bf16.mxu0 0
        %2213 = vmatpush1.bf16.msra.mxu0 0
        %2214 = vmatprep.subr.bf16.mxu0 0
        %2215 = vmatpush1.bf16.msra.mxu0 0
        %2216 = vmatprep.subr.bf16.mxu0 0
        %2217 = vmatpush1.bf16.msra.mxu0 0
        %2218 = vmatprep.subr.bf16.mxu0 0
        %2219 = vmatpush1.bf16.msra.mxu0 0
        %2220 = vmatprep.subr.bf16.mxu0 0
        %2221 = vmatpush1.bf16.msra.mxu0 0
        %2222 = vmatprep.subr.bf16.mxu0 0
        %2223 = vmatpush1.bf16.msra.mxu0 0
        %2224 = vmatprep.subr.bf16.mxu0 0
        %2225 = vmatpush1.bf16.msra.mxu0 0
        %2226 = vmatprep.subr.bf16.mxu0 0
        %2227 = vmatpush1.bf16.msra.mxu0 0
        %2228 = vmatprep.subr.bf16.mxu0 0
        %2229 = vmatpush1.bf16.msra.mxu0 0
        %2230 = vmatprep.subr.bf16.mxu0 0
        %2231 = vmatpush1.bf16.msra.mxu0 0
        %2232 = vmatprep.subr.bf16.mxu0 0
        %2233 = vmatpush1.bf16.msra.mxu0 0
        %2234 = vmatprep.subr.bf16.mxu0 0
        %2235 = vmatpush1.bf16.msra.mxu0 0
        %2236 = vmatprep.subr.bf16.mxu0 0
        %2237 = vmatpush1.bf16.msra.mxu0 0
        %2238 = vmatprep.subr.bf16.mxu0 0
        %2239 = vmatpush1.bf16.msra.mxu0 0
        %2240 = vmatprep.mubr.bf16.mxu0 0
        %2241 = vmatmul.mubr.bf16.gmra.mrb[0].mxu0 %v2001
        %v2242 = vpop.f32.mrb[0].mxu0
        %v2243 = vadd.f32 %v1988, %v2242
        %v2244 = vpop.f32.mrb[0].mxu0
        %v2245 = vpop.f32.mrb[0].mxu0
        %v2246 = vadd.f32 %v1993, %v2245
        %v2247 = vpop.f32.mrb[0].mxu0
        %2248 = vdwg.mxu0
        %2249 = vmatprep.subr.bf16.mxu0 0
        %2250 = vmatpush1.bf16.msra.mxu0 %v1981
        %2251 = vmatprep.subr.bf16.mxu0 0
        %2252 = vmatpush1.bf16.msra.mxu0 0
        %2253 = vmatprep.subr.bf16.mxu0 0
        %2254 = vmatpush1.bf16.msra.mxu0 0
        %2255 = vmatprep.subr.bf16.mxu0 0
        %2256 = vmatpush1.bf16.msra.mxu0 0
        %2257 = vmatprep.subr.bf16.mxu0 0
        %2258 = vmatpush1.bf16.msra.mxu0 0
        %2259 = vmatprep.subr.bf16.mxu0 0
        %2260 = vmatpush1.bf16.msra.mxu0 0
        %2261 = vmatprep.subr.bf16.mxu0 0
        %2262 = vmatpush1.bf16.msra.mxu0 0
        %2263 = vmatprep.subr.bf16.mxu0 0
        %2264 = vmatpush1.bf16.msra.mxu0 0
        %2265 = vmatprep.subr.bf16.mxu0 0
        %2266 = vmatpush1.bf16.msra.mxu0 0
        %2267 = vmatprep.subr.bf16.mxu0 0
        %2268 = vmatpush1.bf16.msra.mxu0 0
        %2269 = vmatprep.subr.bf16.mxu0 0
        %2270 = vmatpush1.bf16.msra.mxu0 0
        %2271 = vmatprep.subr.bf16.mxu0 0
        %2272 = vmatpush1.bf16.msra.mxu0 0
        %2273 = vmatprep.subr.bf16.mxu0 0
        %2274 = vmatpush1.bf16.msra.mxu0 0
        %2275 = vmatprep.subr.bf16.mxu0 0
        %2276 = vmatpush1.bf16.msra.mxu0 0
        %2277 = vmatprep.subr.bf16.mxu0 0
        %2278 = vmatpush1.bf16.msra.mxu0 0
        %2279 = vmatprep.subr.bf16.mxu0 0
        %2280 = vmatpush1.bf16.msra.mxu0 0
        %2281 = vmatprep.mubr.bf16.mxu0 0
        %2282 = vmatmul.mubr.bf16.gmra.mrb[0].mxu0 %v2001
        %v2283 = vpop.f32.mrb[0].mxu0
        %v2284 = vadd.f32 %v1988, %v2283
        %v2285 = vpop.f32.mrb[0].mxu0
        %v2286 = vpop.f32.mrb[0].mxu0
        %v2287 = vadd.f32 %v1993, %v2286
        %v2288 = vpop.f32.mrb[0].mxu0
        %2289 = vdwg.mxu0
        %2290 = vmatprep.subr.bf16.mxu0 0
        %2291 = vmatpush1.bf16.msra.mxu0 %v1982
        %2292 = vmatprep.subr.bf16.mxu0 0
        %2293 = vmatpush1.bf16.msra.mxu0 0
        %2294 = vmatprep.subr.bf16.mxu0 0
        %2295 = vmatpush1.bf16.msra.mxu0 0
        %2296 = vmatprep.subr.bf16.mxu0 0
        %2297 = vmatpush1.bf16.msra.mxu0 0
        %2298 = vmatprep.subr.bf16.mxu0 0
        %2299 = vmatpush1.bf16.msra.mxu0 0
        %2300 = vmatprep.subr.bf16.mxu0 0
        %2301 = vmatpush1.bf16.msra.mxu0 0
        %2302 = vmatprep.subr.bf16.mxu0 0
        %2303 = vmatpush1.bf16.msra.mxu0 0
        %2304 = vmatprep.subr.bf16.mxu0 0
        %2305 = vmatpush1.bf16.msra.mxu0 0
        %2306 = vmatprep.subr.bf16.mxu0 0
        %2307 = vmatpush1.bf16.msra.mxu0 0
        %2308 = vmatprep.subr.bf16.mxu0 0
        %2309 = vmatpush1.bf16.msra.mxu0 0
        %2310 = vmatprep.subr.bf16.mxu0 0
        %2311 = vmatpush1.bf16.msra.mxu0 0
        %2312 = vmatprep.subr.bf16.mxu0 0
        %2313 = vmatpush1.bf16.msra.mxu0 0
        %2314 = vmatprep.subr.bf16.mxu0 0
        %2315 = vmatpush1.bf16.msra.mxu0 0
        %2316 = vmatprep.subr.bf16.mxu0 0
        %2317 = vmatpush1.bf16.msra.mxu0 0
        %2318 = vmatprep.subr.bf16.mxu0 0
        %2319 = vmatpush1.bf16.msra.mxu0 0
        %2320 = vmatprep.subr.bf16.mxu0 0
        %2321 = vmatpush1.bf16.msra.mxu0 0
        %2322 = vmatprep.mubr.bf16.mxu0 0
        %2323 = vmatmul.mubr.bf16.gmra.mrb[0].mxu0 %v2001
        %v2324 = vpop.f32.mrb[0].mxu0
        %v2325 = vadd.f32 %v1988, %v2324
        %v2326 = vpop.f32.mrb[0].mxu0
        %v2327 = vpop.f32.mrb[0].mxu0
        %v2328 = vadd.f32 %v1993, %v2327
        %v2329 = vpop.f32.mrb[0].mxu0
        %2330 = vdwg.mxu0
        %v2331 = vsel %vm1281, %v2038, 0.0
        %v2332 = vsel %vm1281, %v2041, 0.0
        %v2333 = vsel %vm1281, %v2079, 0.0
        %v2334 = vsel %vm1281, %v2082, 0.0
        %v2335 = vsel %vm1281, %v2120, 0.0
        %v2336 = vsel %vm1281, %v2123, 0.0
        %v2337 = vsel %vm1281, %v2161, 0.0
        %v2338 = vsel %vm1281, %v2164, 0.0
        %v2339 = vsel %vm1281, %v2202, 0.0
        %v2340 = vsel %vm1281, %v2205, 0.0
        %v2341 = vsel %vm1281, %v2243, 0.0
        %v2342 = vsel %vm1281, %v2246, 0.0
        %v2343 = vsel %vm1281, %v2284, 0.0
        %v2344 = vsel %vm1281, %v2287, 0.0
        %v2345 = vsel %vm1281, %v2325, 0.0
        %v2346 = vsel %vm1281, %v2328, 0.0
        %v2347 = vadd.f32 %v1262, %v2331
        %v2348 = vadd.f32 %v1263, %v2332
        %v2349 = vadd.f32 %v1264, %v2333
        %v2350 = vadd.f32 %v1265, %v2334
        %v2351 = vadd.f32 %v1266, %v2335
        %v2352 = vadd.f32 %v1267, %v2336
        %v2353 = vadd.f32 %v1268, %v2337
        %v2354 = vadd.f32 %v1269, %v2338
        %v2355 = vadd.f32 %v1270, %v2339
        %v2356 = vadd.f32 %v1271, %v2340
        %v2357 = vadd.f32 %v1272, %v2341
        %v2358 = vadd.f32 %v1273, %v2342
        %v2359 = vadd.f32 %v1274, %v2343
        %v2360 = vadd.f32 %v1275, %v2344
        %v2361 = vadd.f32 %v1276, %v2345
        %v2362 = vadd.f32 %v1277, %v2346
        %v2363 = vld [vmem:[%s843] sm:$0x1]
        %v2364 = vld [vmem:[%s851] sm:$0x1]
        %v2365 = vsel %vm1281, %v2347, 0.0
        %v2366 = vsel %vm1281, %v2348, 0.0
        %v2367 = vsel %vm1281, %v2349, 0.0
        %v2368 = vsel %vm1281, %v2350, 0.0
        %v2369 = vsel %vm1281, %v2351, 0.0
        %v2370 = vsel %vm1281, %v2352, 0.0
        %v2371 = vsel %vm1281, %v2353, 0.0
        %v2372 = vsel %vm1281, %v2354, 0.0
        %v2373 = vsel %vm1281, %v2355, 0.0
        %v2374 = vsel %vm1281, %v2356, 0.0
        %v2375 = vsel %vm1281, %v2357, 0.0
        %v2376 = vsel %vm1281, %v2358, 0.0
        %v2377 = vsel %vm1281, %v2359, 0.0
        %v2378 = vsel %vm1281, %v2360, 0.0
        %v2379 = vsel %vm1281, %v2361, 0.0
        %v2380 = vsel %vm1281, %v2362, 0.0
        %2381 = vadd.xlane.f32.xlu0 %v2365
        %v2382 = vpop.xlane.xlu0 %2381
        %2383 = vadd.xlane.f32.xlu0 %v2366
        %v2384 = vpop.xlane.xlu0 %2383
        %2385 = vadd.xlane.f32.xlu0 %v2367
        %v2386 = vpop.xlane.xlu0 %2385
        %2387 = vadd.xlane.f32.xlu0 %v2368
        %v2388 = vpop.xlane.xlu0 %2387
        %2389 = vadd.xlane.f32.xlu0 %v2369
        %v2390 = vpop.xlane.xlu0 %2389
        %2391 = vadd.xlane.f32.xlu0 %v2370
        %v2392 = vpop.xlane.xlu0 %2391
        %2393 = vadd.xlane.f32.xlu0 %v2371
        %v2394 = vpop.xlane.xlu0 %2393
        %2395 = vadd.xlane.f32.xlu0 %v2372
        %v2396 = vpop.xlane.xlu0 %2395
        %2397 = vadd.xlane.f32.xlu0 %v2373
        %v2398 = vpop.xlane.xlu0 %2397
        %2399 = vadd.xlane.f32.xlu0 %v2374
        %v2400 = vpop.xlane.xlu0 %2399
        %2401 = vadd.xlane.f32.xlu0 %v2375
        %v2402 = vpop.xlane.xlu0 %2401
        %2403 = vadd.xlane.f32.xlu0 %v2376
        %v2404 = vpop.xlane.xlu0 %2403
        %2405 = vadd.xlane.f32.xlu0 %v2377
        %v2406 = vpop.xlane.xlu0 %2405
        %2407 = vadd.xlane.f32.xlu0 %v2378
        %v2408 = vpop.xlane.xlu0 %2407
        %2409 = vadd.xlane.f32.xlu0 %v2379
        %v2410 = vpop.xlane.xlu0 %2409
        %2411 = vadd.xlane.f32.xlu0 %v2380
        %v2412 = vpop.xlane.xlu0 %2411
        %v2413 = vmul.f32 %v2382, 0.03125
        %v2414 = vmul.f32 %v2384, 0.03125
        %v2415 = vmul.f32 %v2386, 0.03125
        %v2416 = vmul.f32 %v2388, 0.03125
        %v2417 = vmul.f32 %v2390, 0.03125
        %v2418 = vmul.f32 %v2392, 0.03125
        %v2419 = vmul.f32 %v2394, 0.03125
        %v2420 = vmul.f32 %v2396, 0.03125
        %v2421 = vmul.f32 %v2398, 0.03125
        %v2422 = vmul.f32 %v2400, 0.03125
        %v2423 = vmul.f32 %v2402, 0.03125
        %v2424 = vmul.f32 %v2404, 0.03125
        %v2425 = vmul.f32 %v2406, 0.03125
        %v2426 = vmul.f32 %v2408, 0.03125
        %v2427 = vmul.f32 %v2410, 0.03125
        %v2428 = vmul.f32 %v2412, 0.03125
        %v2429 = vsub.f32 %v2347, %v2413
        %v2430 = vsub.f32 %v2348, %v2414
        %v2431 = vsub.f32 %v2349, %v2415
        %v2432 = vsub.f32 %v2350, %v2416
        %v2433 = vsub.f32 %v2351, %v2417
        %v2434 = vsub.f32 %v2352, %v2418
        %v2435 = vsub.f32 %v2353, %v2419
        %v2436 = vsub.f32 %v2354, %v2420
        %v2437 = vsub.f32 %v2355, %v2421
        %v2438 = vsub.f32 %v2356, %v2422
        %v2439 = vsub.f32 %v2357, %v2423
        %v2440 = vsub.f32 %v2358, %v2424
        %v2441 = vsub.f32 %v2359, %v2425
        %v2442 = vsub.f32 %v2360, %v2426
        %v2443 = vsub.f32 %v2361, %v2427
        %v2444 = vsub.f32 %v2362, %v2428
        %v2445 = vsel %vm1281, %v2429, 0.0
        %v2446 = vsel %vm1281, %v2430, 0.0
        %v2447 = vsel %vm1281, %v2431, 0.0
        %v2448 = vsel %vm1281, %v2432, 0.0
        %v2449 = vsel %vm1281, %v2433, 0.0
        %v2450 = vsel %vm1281, %v2434, 0.0
        %v2451 = vsel %vm1281, %v2435, 0.0
        %v2452 = vsel %vm1281, %v2436, 0.0
        %v2453 = vsel %vm1281, %v2437, 0.0
        %v2454 = vsel %vm1281, %v2438, 0.0
        %v2455 = vsel %vm1281, %v2439, 0.0
        %v2456 = vsel %vm1281, %v2440, 0.0
        %v2457 = vsel %vm1281, %v2441, 0.0
        %v2458 = vsel %vm1281, %v2442, 0.0
        %v2459 = vsel %vm1281, %v2443, 0.0
        %v2460 = vsel %vm1281, %v2444, 0.0
        %v2461 = vmul.f32 %v2445, %v2445
        %v2462 = vmul.f32 %v2446, %v2446
        %v2463 = vmul.f32 %v2447, %v2447
        %v2464 = vmul.f32 %v2448, %v2448
        %v2465 = vmul.f32 %v2449, %v2449
        %v2466 = vmul.f32 %v2450, %v2450
        %v2467 = vmul.f32 %v2451, %v2451
        %v2468 = vmul.f32 %v2452, %v2452
        %v2469 = vmul.f32 %v2453, %v2453
        %v2470 = vmul.f32 %v2454, %v2454
        %v2471 = vmul.f32 %v2455, %v2455
        %v2472 = vmul.f32 %v2456, %v2456
        %v2473 = vmul.f32 %v2457, %v2457
        %v2474 = vmul.f32 %v2458, %v2458
        %v2475 = vmul.f32 %v2459, %v2459
        %v2476 = vmul.f32 %v2460, %v2460
        %2477 = vadd.xlane.f32.xlu0 %v2461
        %v2478 = vpop.xlane.xlu0 %2477
        %2479 = vadd.xlane.f32.xlu0 %v2462
        %v2480 = vpop.xlane.xlu0 %2479
        %2481 = vadd.xlane.f32.xlu0 %v2463
        %v2482 = vpop.xlane.xlu0 %2481
        %2483 = vadd.xlane.f32.xlu0 %v2464
        %v2484 = vpop.xlane.xlu0 %2483
        %2485 = vadd.xlane.f32.xlu0 %v2465
        %v2486 = vpop.xlane.xlu0 %2485
        %2487 = vadd.xlane.f32.xlu0 %v2466
        %v2488 = vpop.xlane.xlu0 %2487
        %2489 = vadd.xlane.f32.xlu0 %v2467
        %v2490 = vpop.xlane.xlu0 %2489
        %2491 = vadd.xlane.f32.xlu0 %v2468
        %v2492 = vpop.xlane.xlu0 %2491
        %2493 = vadd.xlane.f32.xlu0 %v2469
        %v2494 = vpop.xlane.xlu0 %2493
        %2495 = vadd.xlane.f32.xlu0 %v2470
        %v2496 = vpop.xlane.xlu0 %2495
        %2497 = vadd.xlane.f32.xlu0 %v2471
        %v2498 = vpop.xlane.xlu0 %2497
        %2499 = vadd.xlane.f32.xlu0 %v2472
        %v2500 = vpop.xlane.xlu0 %2499
        %2501 = vadd.xlane.f32.xlu0 %v2473
        %v2502 = vpop.xlane.xlu0 %2501
        %2503 = vadd.xlane.f32.xlu0 %v2474
        %v2504 = vpop.xlane.xlu0 %2503
        %2505 = vadd.xlane.f32.xlu0 %v2475
        %v2506 = vpop.xlane.xlu0 %2505
        %2507 = vadd.xlane.f32.xlu0 %v2476
        %v2508 = vpop.xlane.xlu0 %2507
        %v2509 = vmul.f32 %v2478, 0.03125
        %v2510 = vmul.f32 %v2480, 0.03125
        %v2511 = vmul.f32 %v2482, 0.03125
        %v2512 = vmul.f32 %v2484, 0.03125
        %v2513 = vmul.f32 %v2486, 0.03125
        %v2514 = vmul.f32 %v2488, 0.03125
        %v2515 = vmul.f32 %v2490, 0.03125
        %v2516 = vmul.f32 %v2492, 0.03125
        %v2517 = vmul.f32 %v2494, 0.03125
        %v2518 = vmul.f32 %v2496, 0.03125
        %v2519 = vmul.f32 %v2498, 0.03125
        %v2520 = vmul.f32 %v2500, 0.03125
        %v2521 = vmul.f32 %v2502, 0.03125
        %v2522 = vmul.f32 %v2504, 0.03125
        %v2523 = vmul.f32 %v2506, 0.03125
        %v2524 = vmul.f32 %v2508, 0.03125
        %v2525 = vadd.f32 %v2509, 1e-05
        %v2526 = vadd.f32 %v2510, 1e-05
        %v2527 = vadd.f32 %v2511, 1e-05
        %v2528 = vadd.f32 %v2512, 1e-05
        %v2529 = vadd.f32 %v2513, 1e-05
        %v2530 = vadd.f32 %v2514, 1e-05
        %v2531 = vadd.f32 %v2515, 1e-05
        %v2532 = vadd.f32 %v2516, 1e-05
        %v2533 = vadd.f32 %v2517, 1e-05
        %v2534 = vadd.f32 %v2518, 1e-05
        %v2535 = vadd.f32 %v2519, 1e-05
        %v2536 = vadd.f32 %v2520, 1e-05
        %v2537 = vadd.f32 %v2521, 1e-05
        %v2538 = vadd.f32 %v2522, 1e-05
        %v2539 = vadd.f32 %v2523, 1e-05
        %v2540 = vadd.f32 %v2524, 1e-05
        %v2541 = vrsqrt.pop %v2525
        %v2542 = vrsqrt.pop %v2526
        %v2543 = vrsqrt.pop %v2527
        %v2544 = vrsqrt.pop %v2528
        %v2545 = vrsqrt.pop %v2529
        %v2546 = vrsqrt.pop %v2530
        %v2547 = vrsqrt.pop %v2531
        %v2548 = vrsqrt.pop %v2532
        %v2549 = vrsqrt.pop %v2533
        %v2550 = vrsqrt.pop %v2534
        %v2551 = vrsqrt.pop %v2535
        %v2552 = vrsqrt.pop %v2536
        %v2553 = vrsqrt.pop %v2537
        %v2554 = vrsqrt.pop %v2538
        %v2555 = vrsqrt.pop %v2539
        %v2556 = vrsqrt.pop %v2540
        %v2557 = vmul.f32 %v2429, %v2541
        %v2558 = vmul.f32 %v2430, %v2542
        %v2559 = vmul.f32 %v2431, %v2543
        %v2560 = vmul.f32 %v2432, %v2544
        %v2561 = vmul.f32 %v2433, %v2545
        %v2562 = vmul.f32 %v2434, %v2546
        %v2563 = vmul.f32 %v2435, %v2547
        %v2564 = vmul.f32 %v2436, %v2548
        %v2565 = vmul.f32 %v2437, %v2549
        %v2566 = vmul.f32 %v2438, %v2550
        %v2567 = vmul.f32 %v2439, %v2551
        %v2568 = vmul.f32 %v2440, %v2552
        %v2569 = vmul.f32 %v2441, %v2553
        %v2570 = vmul.f32 %v2442, %v2554
        %v2571 = vmul.f32 %v2443, %v2555
        %v2572 = vmul.f32 %v2444, %v2556
        %v2574 = vlaneseq
        %v2575 = vshrl.u32 %v2574, 7
        %v2576 = vsub.s32 0, %v2575
        %v2577 = vrot.slane %v2363, %v2576
        %v2579 = vmul.f32 %v2557, %v2577
        %v2580 = vmul.f32 %v2558, %v2577
        %v2581 = vmul.f32 %v2559, %v2577
        %v2582 = vmul.f32 %v2560, %v2577
        %v2583 = vmul.f32 %v2561, %v2577
        %v2584 = vmul.f32 %v2562, %v2577
        %v2585 = vmul.f32 %v2563, %v2577
        %v2586 = vmul.f32 %v2564, %v2577
        %v2587 = vmul.f32 %v2565, %v2577
        %v2588 = vmul.f32 %v2566, %v2577
        %v2589 = vmul.f32 %v2567, %v2577
        %v2590 = vmul.f32 %v2568, %v2577
        %v2591 = vmul.f32 %v2569, %v2577
        %v2592 = vmul.f32 %v2570, %v2577
        %v2593 = vmul.f32 %v2571, %v2577
        %v2594 = vmul.f32 %v2572, %v2577
        %v2596 = vlaneseq
        %v2597 = vshrl.u32 %v2596, 7
        %v2598 = vsub.s32 0, %v2597
        %v2599 = vrot.slane %v2364, %v2598
        %v2601 = vadd.f32 %v2579, %v2599
        %v2602 = vadd.f32 %v2580, %v2599
        %v2603 = vadd.f32 %v2581, %v2599
        %v2604 = vadd.f32 %v2582, %v2599
        %v2605 = vadd.f32 %v2583, %v2599
        %v2606 = vadd.f32 %v2584, %v2599
        %v2607 = vadd.f32 %v2585, %v2599
        %v2608 = vadd.f32 %v2586, %v2599
        %v2609 = vadd.f32 %v2587, %v2599
        %v2610 = vadd.f32 %v2588, %v2599
        %v2611 = vadd.f32 %v2589, %v2599
        %v2612 = vadd.f32 %v2590, %v2599
        %v2613 = vadd.f32 %v2591, %v2599
        %v2614 = vadd.f32 %v2592, %v2599
        %v2615 = vadd.f32 %v2593, %v2599
        %v2616 = vadd.f32 %v2594, %v2599
        %v2617 = vpack.c.bf16 %v2602, %v2601
        %v2618 = vpack.c.bf16 %v2604, %v2603
        %v2619 = vpack.c.bf16 %v2606, %v2605
        %v2620 = vpack.c.bf16 %v2608, %v2607
        %v2621 = vpack.c.bf16 %v2610, %v2609
        %v2622 = vpack.c.bf16 %v2612, %v2611
        %v2623 = vpack.c.bf16 %v2614, %v2613
        %v2624 = vpack.c.bf16 %v2616, %v2615
        %v2625 = vld [vmem:[%s860] sm:$0xf]
        %v2626 = vld [vmem:[%s860 + $0x4] sm:$0xf]
        %v2627 = vld [vmem:[%s860 + $0x8] sm:$0xf]
        %v2628 = vld [vmem:[%s860 + $0xc] sm:$0xf]
        %v2629 = vld [vmem:[%s860 + $0x10] sm:$0xf]
        %v2630 = vld [vmem:[%s860 + $0x14] sm:$0xf]
        %v2631 = vld [vmem:[%s860 + $0x18] sm:$0xf]
        %v2632 = vld [vmem:[%s860 + $0x1c] sm:$0xf]
        %v2633 = vld [vmem:[%s860 + $0x20] sm:$0xf]
        %v2634 = vld [vmem:[%s860 + $0x24] sm:$0xf]
        %v2635 = vld [vmem:[%s860 + $0x28] sm:$0xf]
        %v2636 = vld [vmem:[%s860 + $0x2c] sm:$0xf]
        %v2637 = vld [vmem:[%s860 + $0x30] sm:$0xf]
        %v2638 = vld [vmem:[%s860 + $0x34] sm:$0xf]
        %v2639 = vld [vmem:[%s860 + $0x38] sm:$0xf]
        %v2640 = vld [vmem:[%s860 + $0x3c] sm:$0xf]
        %v2641 = vld [vmem:[%s868] sm:$0x1]
        %v2643 = vlaneseq
        %v2644 = vshrl.u32 %v2643, 7
        %v2645 = vsub.s32 0, %v2644
        %v2646 = vrot.slane %v2641, %v2645
        %v2664 = vunpack.c.l.b16 %v2625
        %v2665 = vunpack.c.l.b16 %v2626
        %v2666 = vunpack.c.l.b16 %v2627
        %v2667 = vunpack.c.l.b16 %v2628
        %v2668 = vunpack.c.l.b16 %v2629
        %v2669 = vunpack.c.l.b16 %v2630
        %v2670 = vunpack.c.l.b16 %v2631
        %v2671 = vunpack.c.l.b16 %v2632
        %v2672 = vunpack.c.l.b16 %v2633
        %v2673 = vunpack.c.l.b16 %v2634
        %v2674 = vunpack.c.l.b16 %v2635
        %v2675 = vunpack.c.l.b16 %v2636
        %v2676 = vunpack.c.l.b16 %v2637
        %v2677 = vunpack.c.l.b16 %v2638
        %v2678 = vunpack.c.l.b16 %v2639
        %v2679 = vunpack.c.l.b16 %v2640
        %v2680 = vpack.c.b16 %v2665, %v2664
        %v2681 = vpack.c.b16 %v2667, %v2666
        %v2682 = vpack.c.b16 %v2669, %v2668
        %v2683 = vpack.c.b16 %v2671, %v2670
        %v2684 = vpack.c.b16 %v2673, %v2672
        %v2685 = vpack.c.b16 %v2675, %v2674
        %v2686 = vpack.c.b16 %v2677, %v2676
        %v2687 = vpack.c.b16 %v2679, %v2678
        %2696 = vmatprep.subr.bf16.mxu0 0
        %2697 = vmatpush1.bf16.msra.mxu0 %v2680
        %2698 = vmatprep.subr.bf16.mxu0 0
        %2699 = vmatpush1.bf16.msra.mxu0 %v2681
        %2700 = vmatprep.subr.bf16.mxu0 0
        %2701 = vmatpush1.bf16.msra.mxu0 %v2682
        %2702 = vmatprep.subr.bf16.mxu0 0
        %2703 = vmatpush1.bf16.msra.mxu0 %v2683
        %2704 = vmatprep.subr.bf16.mxu0 0
        %2705 = vmatpush1.bf16.msra.mxu0 %v2684
        %2706 = vmatprep.subr.bf16.mxu0 0
        %2707 = vmatpush1.bf16.msra.mxu0 %v2685
        %2708 = vmatprep.subr.bf16.mxu0 0
        %2709 = vmatpush1.bf16.msra.mxu0 %v2686
        %2710 = vmatprep.subr.bf16.mxu0 0
        %2711 = vmatpush1.bf16.msra.mxu0 %v2687
        %2712 = vmatprep.subr.bf16.mxu0 0
        %2713 = vmatpush1.bf16.msra.mxu0 0
        %2714 = vmatprep.subr.bf16.mxu0 0
        %2715 = vmatpush1.bf16.msra.mxu0 0
        %2716 = vmatprep.subr.bf16.mxu0 0
        %2717 = vmatpush1.bf16.msra.mxu0 0
        %2718 = vmatprep.subr.bf16.mxu0 0
        %2719 = vmatpush1.bf16.msra.mxu0 0
        %2720 = vmatprep.subr.bf16.mxu0 0
        %2721 = vmatpush1.bf16.msra.mxu0 0
        %2722 = vmatprep.subr.bf16.mxu0 0
        %2723 = vmatpush1.bf16.msra.mxu0 0
        %2724 = vmatprep.subr.bf16.mxu0 0
        %2725 = vmatpush1.bf16.msra.mxu0 0
        %2726 = vmatprep.subr.bf16.mxu0 0
        %2727 = vmatpush1.bf16.msra.mxu0 0
        %2728 = vmatprep.mubr.bf16.mxu0 0
        %2729 = vmatmul.mubr.bf16.gmra.mrb[0].mxu0 %v2617
        %v2730 = vpop.f32.mrb[0].mxu0
        %v2731 = vadd.f32 %v2646, %v2730
        %v2732 = vpop.f32.mrb[0].mxu0
        %v2733 = vpop.f32.mrb[0].mxu0
        %v2734 = vadd.f32 %v2646, %v2733
        %v2735 = vpop.f32.mrb[0].mxu0
        %2736 = vmatprep.mubr.bf16.mxu0 0
        %2737 = vmatmul.mubr.bf16.gmra.mrb[0].mxu0 %v2618
        %v2738 = vpop.f32.mrb[0].mxu0
        %v2739 = vadd.f32 %v2646, %v2738
        %v2740 = vpop.f32.mrb[0].mxu0
        %v2741 = vpop.f32.mrb[0].mxu0
        %v2742 = vadd.f32 %v2646, %v2741
        %v2743 = vpop.f32.mrb[0].mxu0
        %2744 = vmatprep.mubr.bf16.mxu0 0
        %2745 = vmatmul.mubr.bf16.gmra.mrb[0].mxu0 %v2619
        %v2746 = vpop.f32.mrb[0].mxu0
        %v2747 = vadd.f32 %v2646, %v2746
        %v2748 = vpop.f32.mrb[0].mxu0
        %v2749 = vpop.f32.mrb[0].mxu0
        %v2750 = vadd.f32 %v2646, %v2749
        %v2751 = vpop.f32.mrb[0].mxu0
        %2752 = vmatprep.mubr.bf16.mxu0 0
        %2753 = vmatmul.mubr.bf16.gmra.mrb[0].mxu0 %v2620
        %v2754 = vpop.f32.mrb[0].mxu0
        %v2755 = vadd.f32 %v2646, %v2754
        %v2756 = vpop.f32.mrb[0].mxu0
        %v2757 = vpop.f32.mrb[0].mxu0
        %v2758 = vadd.f32 %v2646, %v2757
        %v2759 = vpop.f32.mrb[0].mxu0
        %2760 = vmatprep.mubr.bf16.mxu0 0
        %2761 = vmatmul.mubr.bf16.gmra.mrb[0].mxu0 %v2621
        %v2762 = vpop.f32.mrb[0].mxu0
        %v2763 = vadd.f32 %v2646, %v2762
        %v2764 = vpop.f32.mrb[0].mxu0
        %v2765 = vpop.f32.mrb[0].mxu0
        %v2766 = vadd.f32 %v2646, %v2765
        %v2767 = vpop.f32.mrb[0].mxu0
        %2768 = vmatprep.mubr.bf16.mxu0 0
        %2769 = vmatmul.mubr.bf16.gmra.mrb[0].mxu0 %v2622
        %v2770 = vpop.f32.mrb[0].mxu0
        %v2771 = vadd.f32 %v2646, %v2770
        %v2772 = vpop.f32.mrb[0].mxu0
        %v2773 = vpop.f32.mrb[0].mxu0
        %v2774 = vadd.f32 %v2646, %v2773
        %v2775 = vpop.f32.mrb[0].mxu0
        %2776 = vmatprep.mubr.bf16.mxu0 0
        %2777 = vmatmul.mubr.bf16.gmra.mrb[0].mxu0 %v2623
        %v2778 = vpop.f32.mrb[0].mxu0
        %v2779 = vadd.f32 %v2646, %v2778
        %v2780 = vpop.f32.mrb[0].mxu0
        %v2781 = vpop.f32.mrb[0].mxu0
        %v2782 = vadd.f32 %v2646, %v2781
        %v2783 = vpop.f32.mrb[0].mxu0
        %2784 = vmatprep.mubr.bf16.mxu0 0
        %2785 = vmatmul.mubr.bf16.gmra.mrb[0].mxu0 %v2624
        %v2786 = vpop.f32.mrb[0].mxu0
        %v2787 = vadd.f32 %v2646, %v2786
        %v2788 = vpop.f32.mrb[0].mxu0
        %v2789 = vpop.f32.mrb[0].mxu0
        %v2790 = vadd.f32 %v2646, %v2789
        %v2791 = vpop.f32.mrb[0].mxu0
        %2792 = vdwg.mxu0
        %v2793 = vmul.f32 %v2731, 0.5
        %v2794 = vmul.f32 %v2734, 0.5
        %v2795 = vmul.f32 %v2739, 0.5
        %v2796 = vmul.f32 %v2742, 0.5
        %v2797 = vmul.f32 %v2747, 0.5
        %v2798 = vmul.f32 %v2750, 0.5
        %v2799 = vmul.f32 %v2755, 0.5
        %v2800 = vmul.f32 %v2758, 0.5
        %v2801 = vmul.f32 %v2763, 0.5
        %v2802 = vmul.f32 %v2766, 0.5
        %v2803 = vmul.f32 %v2771, 0.5
        %v2804 = vmul.f32 %v2774, 0.5
        %v2805 = vmul.f32 %v2779, 0.5
        %v2806 = vmul.f32 %v2782, 0.5
        %v2807 = vmul.f32 %v2787, 0.5
        %v2808 = vmul.f32 %v2790, 0.5
        %v2809 = vmul.f32 %v2731, 0.70710677
        %v2810 = vmul.f32 %v2734, 0.70710677
        %v2811 = vmul.f32 %v2739, 0.70710677
        %v2812 = vmul.f32 %v2742, 0.70710677
        %v2813 = vmul.f32 %v2747, 0.70710677
        %v2814 = vmul.f32 %v2750, 0.70710677
        %v2815 = vmul.f32 %v2755, 0.70710677
        %v2816 = vmul.f32 %v2758, 0.70710677
        %v2817 = vmul.f32 %v2763, 0.70710677
        %v2818 = vmul.f32 %v2766, 0.70710677
        %v2819 = vmul.f32 %v2771, 0.70710677
        %v2820 = vmul.f32 %v2774, 0.70710677
        %v2821 = vmul.f32 %v2779, 0.70710677
        %v2822 = vmul.f32 %v2782, 0.70710677
        %v2823 = vmul.f32 %v2787, 0.70710677
        %v2824 = vmul.f32 %v2790, 0.70710677
        %v2825 = verf.f32.pop %v2809
        %v2826 = verf.f32.pop %v2810
        %v2827 = verf.f32.pop %v2811
        %v2828 = verf.f32.pop %v2812
        %v2829 = verf.f32.pop %v2813
        %v2830 = verf.f32.pop %v2814
        %v2831 = verf.f32.pop %v2815
        %v2832 = verf.f32.pop %v2816
        %v2833 = verf.f32.pop %v2817
        %v2834 = verf.f32.pop %v2818
        %v2835 = verf.f32.pop %v2819
        %v2836 = verf.f32.pop %v2820
        %v2837 = verf.f32.pop %v2821
        %v2838 = verf.f32.pop %v2822
        %v2839 = verf.f32.pop %v2823
        %v2840 = verf.f32.pop %v2824
        %v2841 = vadd.f32 %v2825, 1.0
        %v2842 = vadd.f32 %v2826, 1.0
        %v2843 = vadd.f32 %v2827, 1.0
        %v2844 = vadd.f32 %v2828, 1.0
        %v2845 = vadd.f32 %v2829, 1.0
        %v2846 = vadd.f32 %v2830, 1.0
        %v2847 = vadd.f32 %v2831, 1.0
        %v2848 = vadd.f32 %v2832, 1.0
        %v2849 = vadd.f32 %v2833, 1.0
        %v2850 = vadd.f32 %v2834, 1.0
        %v2851 = vadd.f32 %v2835, 1.0
        %v2852 = vadd.f32 %v2836, 1.0
        %v2853 = vadd.f32 %v2837, 1.0
        %v2854 = vadd.f32 %v2838, 1.0
        %v2855 = vadd.f32 %v2839, 1.0
        %v2856 = vadd.f32 %v2840, 1.0
        %v2857 = vmul.f32 %v2793, %v2841
        %v2858 = vmul.f32 %v2794, %v2842
        %v2859 = vmul.f32 %v2795, %v2843
        %v2860 = vmul.f32 %v2796, %v2844
        %v2861 = vmul.f32 %v2797, %v2845
        %v2862 = vmul.f32 %v2798, %v2846
        %v2863 = vmul.f32 %v2799, %v2847
        %v2864 = vmul.f32 %v2800, %v2848
        %v2865 = vmul.f32 %v2801, %v2849
        %v2866 = vmul.f32 %v2802, %v2850
        %v2867 = vmul.f32 %v2803, %v2851
        %v2868 = vmul.f32 %v2804, %v2852
        %v2869 = vmul.f32 %v2805, %v2853
        %v2870 = vmul.f32 %v2806, %v2854
        %v2871 = vmul.f32 %v2807, %v2855
        %v2872 = vmul.f32 %v2808, %v2856
        %v2873 = vpack.c.bf16 %v2858, %v2857
        %v2874 = vpack.c.bf16 %v2860, %v2859
        %v2875 = vpack.c.bf16 %v2862, %v2861
        %v2876 = vpack.c.bf16 %v2864, %v2863
        %v2877 = vpack.c.bf16 %v2866, %v2865
        %v2878 = vpack.c.bf16 %v2868, %v2867
        %v2879 = vpack.c.bf16 %v2870, %v2869
        %v2880 = vpack.c.bf16 %v2872, %v2871
        %v2881 = vld [vmem:[%s877] sm:$0xf]
        %v2882 = vld [vmem:[%s877 + $0x4] sm:$0xf]
        %v2883 = vld [vmem:[%s877 + $0x8] sm:$0xf]
        %v2884 = vld [vmem:[%s877 + $0xc] sm:$0xf]
        %v2885 = vld [vmem:[%s877 + $0x10] sm:$0xf]
        %v2886 = vld [vmem:[%s877 + $0x14] sm:$0xf]
        %v2887 = vld [vmem:[%s877 + $0x18] sm:$0xf]
        %v2888 = vld [vmem:[%s877 + $0x1c] sm:$0xf]
        %v2889 = vld [vmem:[%s877 + $0x20] sm:$0xf]
        %v2890 = vld [vmem:[%s877 + $0x24] sm:$0xf]
        %v2891 = vld [vmem:[%s877 + $0x28] sm:$0xf]
        %v2892 = vld [vmem:[%s877 + $0x2c] sm:$0xf]
        %v2893 = vld [vmem:[%s877 + $0x30] sm:$0xf]
        %v2894 = vld [vmem:[%s877 + $0x34] sm:$0xf]
        %v2895 = vld [vmem:[%s877 + $0x38] sm:$0xf]
        %v2896 = vld [vmem:[%s877 + $0x3c] sm:$0xf]
        %v2897 = vld [vmem:[%s885] sm:$0x1]
        %v2899 = vlaneseq
        %v2900 = vshrl.u32 %v2899, 7
        %v2901 = vsub.s32 0, %v2900
        %v2902 = vrot.slane %v2897, %v2901
        %v2920 = vunpack.c.l.b16 %v2881
        %v2921 = vunpack.c.l.b16 %v2882
        %v2922 = vunpack.c.l.b16 %v2883
        %v2923 = vunpack.c.l.b16 %v2884
        %v2924 = vunpack.c.l.b16 %v2885
        %v2925 = vunpack.c.l.b16 %v2886
        %v2926 = vunpack.c.l.b16 %v2887
        %v2927 = vunpack.c.l.b16 %v2888
        %v2928 = vunpack.c.l.b16 %v2889
        %v2929 = vunpack.c.l.b16 %v2890
        %v2930 = vunpack.c.l.b16 %v2891
        %v2931 = vunpack.c.l.b16 %v2892
        %v2932 = vunpack.c.l.b16 %v2893
        %v2933 = vunpack.c.l.b16 %v2894
        %v2934 = vunpack.c.l.b16 %v2895
        %v2935 = vunpack.c.l.b16 %v2896
        %v2936 = vpack.c.b16 %v2921, %v2920
        %v2937 = vpack.c.b16 %v2923, %v2922
        %v2938 = vpack.c.b16 %v2925, %v2924
        %v2939 = vpack.c.b16 %v2927, %v2926
        %v2940 = vpack.c.b16 %v2929, %v2928
        %v2941 = vpack.c.b16 %v2931, %v2930
        %v2942 = vpack.c.b16 %v2933, %v2932
        %v2943 = vpack.c.b16 %v2935, %v2934
        %2952 = vmatprep.subr.bf16.mxu0 0
        %2953 = vmatpush1.bf16.msra.mxu0 %v2936
        %2954 = vmatprep.subr.bf16.mxu0 0
        %2955 = vmatpush1.bf16.msra.mxu0 %v2937
        %2956 = vmatprep.subr.bf16.mxu0 0
        %2957 = vmatpush1.bf16.msra.mxu0 %v2938
        %2958 = vmatprep.subr.bf16.mxu0 0
        %2959 = vmatpush1.bf16.msra.mxu0 %v2939
        %2960 = vmatprep.subr.bf16.mxu0 0
        %2961 = vmatpush1.bf16.msra.mxu0 %v2940
        %2962 = vmatprep.subr.bf16.mxu0 0
        %2963 = vmatpush1.bf16.msra.mxu0 %v2941
        %2964 = vmatprep.subr.bf16.mxu0 0
        %2965 = vmatpush1.bf16.msra.mxu0 %v2942
        %2966 = vmatprep.subr.bf16.mxu0 0
        %2967 = vmatpush1.bf16.msra.mxu0 %v2943
        %2968 = vmatprep.subr.bf16.mxu0 0
        %2969 = vmatpush1.bf16.msra.mxu0 0
        %2970 = vmatprep.subr.bf16.mxu0 0
        %2971 = vmatpush1.bf16.msra.mxu0 0
        %2972 = vmatprep.subr.bf16.mxu0 0
        %2973 = vmatpush1.bf16.msra.mxu0 0
        %2974 = vmatprep.subr.bf16.mxu0 0
        %2975 = vmatpush1.bf16.msra.mxu0 0
        %2976 = vmatprep.subr.bf16.mxu0 0
        %2977 = vmatpush1.bf16.msra.mxu0 0
        %2978 = vmatprep.subr.bf16.mxu0 0
        %2979 = vmatpush1.bf16.msra.mxu0 0
        %2980 = vmatprep.subr.bf16.mxu0 0
        %2981 = vmatpush1.bf16.msra.mxu0 0
        %2982 = vmatprep.subr.bf16.mxu0 0
        %2983 = vmatpush1.bf16.msra.mxu0 0
        %2984 = vmatprep.mubr.bf16.mxu0 0
        %2985 = vmatmul.mubr.bf16.gmra.mrb[0].mxu0 %v2873
        %v2986 = vpop.f32.mrb[0].mxu0
        %v2987 = vadd.f32 %v2902, %v2986
        %v2988 = vpop.f32.mrb[0].mxu0
        %v2989 = vpop.f32.mrb[0].mxu0
        %v2990 = vadd.f32 %v2902, %v2989
        %v2991 = vpop.f32.mrb[0].mxu0
        %2992 = vmatprep.mubr.bf16.mxu0 0
        %2993 = vmatmul.mubr.bf16.gmra.mrb[0].mxu0 %v2874
        %v2994 = vpop.f32.mrb[0].mxu0
        %v2995 = vadd.f32 %v2902, %v2994
        %v2996 = vpop.f32.mrb[0].mxu0
        %v2997 = vpop.f32.mrb[0].mxu0
        %v2998 = vadd.f32 %v2902, %v2997
        %v2999 = vpop.f32.mrb[0].mxu0
        %3000 = vmatprep.mubr.bf16.mxu0 0
        %3001 = vmatmul.mubr.bf16.gmra.mrb[0].mxu0 %v2875
        %v3002 = vpop.f32.mrb[0].mxu0
        %v3003 = vadd.f32 %v2902, %v3002
        %v3004 = vpop.f32.mrb[0].mxu0
        %v3005 = vpop.f32.mrb[0].mxu0
        %v3006 = vadd.f32 %v2902, %v3005
        %v3007 = vpop.f32.mrb[0].mxu0
        %3008 = vmatprep.mubr.bf16.mxu0 0
        %3009 = vmatmul.mubr.bf16.gmra.mrb[0].mxu0 %v2876
        %v3010 = vpop.f32.mrb[0].mxu0
        %v3011 = vadd.f32 %v2902, %v3010
        %v3012 = vpop.f32.mrb[0].mxu0
        %v3013 = vpop.f32.mrb[0].mxu0
        %v3014 = vadd.f32 %v2902, %v3013
        %v3015 = vpop.f32.mrb[0].mxu0
        %3016 = vmatprep.mubr.bf16.mxu0 0
        %3017 = vmatmul.mubr.bf16.gmra.mrb[0].mxu0 %v2877
        %v3018 = vpop.f32.mrb[0].mxu0
        %v3019 = vadd.f32 %v2902, %v3018
        %v3020 = vpop.f32.mrb[0].mxu0
        %v3021 = vpop.f32.mrb[0].mxu0
        %v3022 = vadd.f32 %v2902, %v3021
        %v3023 = vpop.f32.mrb[0].mxu0
        %3024 = vmatprep.mubr.bf16.mxu0 0
        %3025 = vmatmul.mubr.bf16.gmra.mrb[0].mxu0 %v2878
        %v3026 = vpop.f32.mrb[0].mxu0
        %v3027 = vadd.f32 %v2902, %v3026
        %v3028 = vpop.f32.mrb[0].mxu0
        %v3029 = vpop.f32.mrb[0].mxu0
        %v3030 = vadd.f32 %v2902, %v3029
        %v3031 = vpop.f32.mrb[0].mxu0
        %3032 = vmatprep.mubr.bf16.mxu0 0
        %3033 = vmatmul.mubr.bf16.gmra.mrb[0].mxu0 %v2879
        %v3034 = vpop.f32.mrb[0].mxu0
        %v3035 = vadd.f32 %v2902, %v3034
        %v3036 = vpop.f32.mrb[0].mxu0
        %v3037 = vpop.f32.mrb[0].mxu0
        %v3038 = vadd.f32 %v2902, %v3037
        %v3039 = vpop.f32.mrb[0].mxu0
        %3040 = vmatprep.mubr.bf16.mxu0 0
        %3041 = vmatmul.mubr.bf16.gmra.mrb[0].mxu0 %v2880
        %v3042 = vpop.f32.mrb[0].mxu0
        %v3043 = vadd.f32 %v2902, %v3042
        %v3044 = vpop.f32.mrb[0].mxu0
        %v3045 = vpop.f32.mrb[0].mxu0
        %v3046 = vadd.f32 %v2902, %v3045
        %v3047 = vpop.f32.mrb[0].mxu0
        %3048 = vdwg.mxu0
        %v3049 = vadd.f32 %v2347, %v2987
        %v3050 = vadd.f32 %v2348, %v2990
        %v3051 = vadd.f32 %v2349, %v2995
        %v3052 = vadd.f32 %v2350, %v2998
        %v3053 = vadd.f32 %v2351, %v3003
        %v3054 = vadd.f32 %v2352, %v3006
        %v3055 = vadd.f32 %v2353, %v3011
        %v3056 = vadd.f32 %v2354, %v3014
        %v3057 = vadd.f32 %v2355, %v3019
        %v3058 = vadd.f32 %v2356, %v3022
        %v3059 = vadd.f32 %v2357, %v3027
        %v3060 = vadd.f32 %v2358, %v3030
        %v3061 = vadd.f32 %v2359, %v3035
        %v3062 = vadd.f32 %v2360, %v3038
        %v3063 = vadd.f32 %v2361, %v3043
        %v3064 = vadd.f32 %v2362, %v3046
        %3065 = vst [vmem:[#allocation2] sm:$0xff] %v3049
        %3066 = vst [vmem:[#allocation2 + $0x8] sm:$0xff] %v3050
        %3067 = vst [vmem:[#allocation2 + $0x10] sm:$0xff] %v3051
        %3068 = vst [vmem:[#allocation2 + $0x18] sm:$0xff] %v3052
        %3069 = vst [vmem:[#allocation2 + $0x20] sm:$0xff] %v3053
        %3070 = vst [vmem:[#allocation2 + $0x28] sm:$0xff] %v3054
        %3071 = vst [vmem:[#allocation2 + $0x30] sm:$0xff] %v3055
        %3072 = vst [vmem:[#allocation2 + $0x38] sm:$0xff] %v3056
        %3073 = vst [vmem:[#allocation2 + $0x40] sm:$0xff] %v3057
        %3074 = vst [vmem:[#allocation2 + $0x48] sm:$0xff] %v3058
        %3075 = vst [vmem:[#allocation2 + $0x50] sm:$0xff] %v3059
        %3076 = vst [vmem:[#allocation2 + $0x58] sm:$0xff] %v3060
        %3077 = vst [vmem:[#allocation2 + $0x60] sm:$0xff] %v3061
        %3078 = vst [vmem:[#allocation2 + $0x68] sm:$0xff] %v3062
        %3079 = vst [vmem:[#allocation2 + $0x70] sm:$0xff] %v3063
        %3080 = vst [vmem:[#allocation2 + $0x78] sm:$0xff] %v3064
        %p3081 = scmp.eq.s32.totalorder %s52, 1
        // Predicated region
        $region149: #{tpu_custom_call.1} parent=91 // pred_check
          %p3082 = pneg %p3081
        $region150: #{tpu_custom_call.1} parent=91 // pred_check_branch
          %3084 = sbr.rel (%p3082) target = $region152
        $region151: #{tpu_custom_call.1} parent=91 // pred_region
          %v3085 = vld [vmem:[#allocation21] sm:$0x1]
          %v3086 = vld [vmem:[#allocation23] sm:$0x1]
          %v3087 = vsel %vm1281, %v3049, 0.0
          %v3088 = vsel %vm1281, %v3050, 0.0
          %v3089 = vsel %vm1281, %v3051, 0.0
          %v3090 = vsel %vm1281, %v3052, 0.0
          %v3091 = vsel %vm1281, %v3053, 0.0
          %v3092 = vsel %vm1281, %v3054, 0.0
          %v3093 = vsel %vm1281, %v3055, 0.0
          %v3094 = vsel %vm1281, %v3056, 0.0
          %v3095 = vsel %vm1281, %v3057, 0.0
          %v3096 = vsel %vm1281, %v3058, 0.0
          %v3097 = vsel %vm1281, %v3059, 0.0
          %v3098 = vsel %vm1281, %v3060, 0.0
          %v3099 = vsel %vm1281, %v3061, 0.0
          %v3100 = vsel %vm1281, %v3062, 0.0
          %v3101 = vsel %vm1281, %v3063, 0.0
          %v3102 = vsel %vm1281, %v3064, 0.0
          %3103 = vadd.xlane.f32.xlu0 %v3087
          %v3104 = vpop.xlane.xlu0 %3103
          %3105 = vadd.xlane.f32.xlu0 %v3088
          %v3106 = vpop.xlane.xlu0 %3105
          %3107 = vadd.xlane.f32.xlu0 %v3089
          %v3108 = vpop.xlane.xlu0 %3107
          %3109 = vadd.xlane.f32.xlu0 %v3090
          %v3110 = vpop.xlane.xlu0 %3109
          %3111 = vadd.xlane.f32.xlu0 %v3091
          %v3112 = vpop.xlane.xlu0 %3111
          %3113 = vadd.xlane.f32.xlu0 %v3092
          %v3114 = vpop.xlane.xlu0 %3113
          %3115 = vadd.xlane.f32.xlu0 %v3093
          %v3116 = vpop.xlane.xlu0 %3115
          %3117 = vadd.xlane.f32.xlu0 %v3094
          %v3118 = vpop.xlane.xlu0 %3117
          %3119 = vadd.xlane.f32.xlu0 %v3095
          %v3120 = vpop.xlane.xlu0 %3119
          %3121 = vadd.xlane.f32.xlu0 %v3096
          %v3122 = vpop.xlane.xlu0 %3121
          %3123 = vadd.xlane.f32.xlu0 %v3097
          %v3124 = vpop.xlane.xlu0 %3123
          %3125 = vadd.xlane.f32.xlu0 %v3098
          %v3126 = vpop.xlane.xlu0 %3125
          %3127 = vadd.xlane.f32.xlu0 %v3099
          %v3128 = vpop.xlane.xlu0 %3127
          %3129 = vadd.xlane.f32.xlu0 %v3100
          %v3130 = vpop.xlane.xlu0 %3129
          %3131 = vadd.xlane.f32.xlu0 %v3101
          %v3132 = vpop.xlane.xlu0 %3131
          %3133 = vadd.xlane.f32.xlu0 %v3102
          %v3134 = vpop.xlane.xlu0 %3133
          %v3135 = vmul.f32 %v3104, 0.03125
          %v3136 = vmul.f32 %v3106, 0.03125
          %v3137 = vmul.f32 %v3108, 0.03125
          %v3138 = vmul.f32 %v3110, 0.03125
          %v3139 = vmul.f32 %v3112, 0.03125
          %v3140 = vmul.f32 %v3114, 0.03125
          %v3141 = vmul.f32 %v3116, 0.03125
          %v3142 = vmul.f32 %v3118, 0.03125
          %v3143 = vmul.f32 %v3120, 0.03125
          %v3144 = vmul.f32 %v3122, 0.03125
          %v3145 = vmul.f32 %v3124, 0.03125
          %v3146 = vmul.f32 %v3126, 0.03125
          %v3147 = vmul.f32 %v3128, 0.03125
          %v3148 = vmul.f32 %v3130, 0.03125
          %v3149 = vmul.f32 %v3132, 0.03125
          %v3150 = vmul.f32 %v3134, 0.03125
          %v3151 = vsub.f32 %v3049, %v3135
          %v3152 = vsub.f32 %v3050, %v3136
          %v3153 = vsub.f32 %v3051, %v3137
          %v3154 = vsub.f32 %v3052, %v3138
          %v3155 = vsub.f32 %v3053, %v3139
          %v3156 = vsub.f32 %v3054, %v3140
          %v3157 = vsub.f32 %v3055, %v3141
          %v3158 = vsub.f32 %v3056, %v3142
          %v3159 = vsub.f32 %v3057, %v3143
          %v3160 = vsub.f32 %v3058, %v3144
          %v3161 = vsub.f32 %v3059, %v3145
          %v3162 = vsub.f32 %v3060, %v3146
          %v3163 = vsub.f32 %v3061, %v3147
          %v3164 = vsub.f32 %v3062, %v3148
          %v3165 = vsub.f32 %v3063, %v3149
          %v3166 = vsub.f32 %v3064, %v3150
          %v3167 = vsel %vm1281, %v3151, 0.0
          %v3168 = vsel %vm1281, %v3152, 0.0
          %v3169 = vsel %vm1281, %v3153, 0.0
          %v3170 = vsel %vm1281, %v3154, 0.0
          %v3171 = vsel %vm1281, %v3155, 0.0
          %v3172 = vsel %vm1281, %v3156, 0.0
          %v3173 = vsel %vm1281, %v3157, 0.0
          %v3174 = vsel %vm1281, %v3158, 0.0
          %v3175 = vsel %vm1281, %v3159, 0.0
          %v3176 = vsel %vm1281, %v3160, 0.0
          %v3177 = vsel %vm1281, %v3161, 0.0
          %v3178 = vsel %vm1281, %v3162, 0.0
          %v3179 = vsel %vm1281, %v3163, 0.0
          %v3180 = vsel %vm1281, %v3164, 0.0
          %v3181 = vsel %vm1281, %v3165, 0.0
          %v3182 = vsel %vm1281, %v3166, 0.0
          %v3183 = vmul.f32 %v3167, %v3167
          %v3184 = vmul.f32 %v3168, %v3168
          %v3185 = vmul.f32 %v3169, %v3169
          %v3186 = vmul.f32 %v3170, %v3170
          %v3187 = vmul.f32 %v3171, %v3171
          %v3188 = vmul.f32 %v3172, %v3172
          %v3189 = vmul.f32 %v3173, %v3173
          %v3190 = vmul.f32 %v3174, %v3174
          %v3191 = vmul.f32 %v3175, %v3175
          %v3192 = vmul.f32 %v3176, %v3176
          %v3193 = vmul.f32 %v3177, %v3177
          %v3194 = vmul.f32 %v3178, %v3178
          %v3195 = vmul.f32 %v3179, %v3179
          %v3196 = vmul.f32 %v3180, %v3180
          %v3197 = vmul.f32 %v3181, %v3181
          %v3198 = vmul.f32 %v3182, %v3182
          %3199 = vadd.xlane.f32.xlu0 %v3183
          %v3200 = vpop.xlane.xlu0 %3199
          %3201 = vadd.xlane.f32.xlu0 %v3184
          %v3202 = vpop.xlane.xlu0 %3201
          %3203 = vadd.xlane.f32.xlu0 %v3185
          %v3204 = vpop.xlane.xlu0 %3203
          %3205 = vadd.xlane.f32.xlu0 %v3186
          %v3206 = vpop.xlane.xlu0 %3205
          %3207 = vadd.xlane.f32.xlu0 %v3187
          %v3208 = vpop.xlane.xlu0 %3207
          %3209 = vadd.xlane.f32.xlu0 %v3188
          %v3210 = vpop.xlane.xlu0 %3209
          %3211 = vadd.xlane.f32.xlu0 %v3189
          %v3212 = vpop.xlane.xlu0 %3211
          %3213 = vadd.xlane.f32.xlu0 %v3190
          %v3214 = vpop.xlane.xlu0 %3213
          %3215 = vadd.xlane.f32.xlu0 %v3191
          %v3216 = vpop.xlane.xlu0 %3215
          %3217 = vadd.xlane.f32.xlu0 %v3192
          %v3218 = vpop.xlane.xlu0 %3217
          %3219 = vadd.xlane.f32.xlu0 %v3193
          %v3220 = vpop.xlane.xlu0 %3219
          %3221 = vadd.xlane.f32.xlu0 %v3194
          %v3222 = vpop.xlane.xlu0 %3221
          %3223 = vadd.xlane.f32.xlu0 %v3195
          %v3224 = vpop.xlane.xlu0 %3223
          %3225 = vadd.xlane.f32.xlu0 %v3196
          %v3226 = vpop.xlane.xlu0 %3225
          %3227 = vadd.xlane.f32.xlu0 %v3197
          %v3228 = vpop.xlane.xlu0 %3227
          %3229 = vadd.xlane.f32.xlu0 %v3198
          %v3230 = vpop.xlane.xlu0 %3229
          %v3231 = vmul.f32 %v3200, 0.03125
          %v3232 = vmul.f32 %v3202, 0.03125
          %v3233 = vmul.f32 %v3204, 0.03125
          %v3234 = vmul.f32 %v3206, 0.03125
          %v3235 = vmul.f32 %v3208, 0.03125
          %v3236 = vmul.f32 %v3210, 0.03125
          %v3237 = vmul.f32 %v3212, 0.03125
          %v3238 = vmul.f32 %v3214, 0.03125
          %v3239 = vmul.f32 %v3216, 0.03125
          %v3240 = vmul.f32 %v3218, 0.03125
          %v3241 = vmul.f32 %v3220, 0.03125
          %v3242 = vmul.f32 %v3222, 0.03125
          %v3243 = vmul.f32 %v3224, 0.03125
          %v3244 = vmul.f32 %v3226, 0.03125
          %v3245 = vmul.f32 %v3228, 0.03125
          %v3246 = vmul.f32 %v3230, 0.03125
          %v3247 = vadd.f32 %v3231, 1e-05
          %v3248 = vadd.f32 %v3232, 1e-05
          %v3249 = vadd.f32 %v3233, 1e-05
          %v3250 = vadd.f32 %v3234, 1e-05
          %v3251 = vadd.f32 %v3235, 1e-05
          %v3252 = vadd.f32 %v3236, 1e-05
          %v3253 = vadd.f32 %v3237, 1e-05
          %v3254 = vadd.f32 %v3238, 1e-05
          %v3255 = vadd.f32 %v3239, 1e-05
          %v3256 = vadd.f32 %v3240, 1e-05
          %v3257 = vadd.f32 %v3241, 1e-05
          %v3258 = vadd.f32 %v3242, 1e-05
          %v3259 = vadd.f32 %v3243, 1e-05
          %v3260 = vadd.f32 %v3244, 1e-05
          %v3261 = vadd.f32 %v3245, 1e-05
          %v3262 = vadd.f32 %v3246, 1e-05
          %v3263 = vrsqrt.pop %v3247
          %v3264 = vrsqrt.pop %v3248
          %v3265 = vrsqrt.pop %v3249
          %v3266 = vrsqrt.pop %v3250
          %v3267 = vrsqrt.pop %v3251
          %v3268 = vrsqrt.pop %v3252
          %v3269 = vrsqrt.pop %v3253
          %v3270 = vrsqrt.pop %v3254
          %v3271 = vrsqrt.pop %v3255
          %v3272 = vrsqrt.pop %v3256
          %v3273 = vrsqrt.pop %v3257
          %v3274 = vrsqrt.pop %v3258
          %v3275 = vrsqrt.pop %v3259
          %v3276 = vrsqrt.pop %v3260
          %v3277 = vrsqrt.pop %v3261
          %v3278 = vrsqrt.pop %v3262
          %v3279 = vmul.f32 %v3151, %v3263
          %v3280 = vmul.f32 %v3152, %v3264
          %v3281 = vmul.f32 %v3153, %v3265
          %v3282 = vmul.f32 %v3154, %v3266
          %v3283 = vmul.f32 %v3155, %v3267
          %v3284 = vmul.f32 %v3156, %v3268
          %v3285 = vmul.f32 %v3157, %v3269
          %v3286 = vmul.f32 %v3158, %v3270
          %v3287 = vmul.f32 %v3159, %v3271
          %v3288 = vmul.f32 %v3160, %v3272
          %v3289 = vmul.f32 %v3161, %v3273
          %v3290 = vmul.f32 %v3162, %v3274
          %v3291 = vmul.f32 %v3163, %v3275
          %v3292 = vmul.f32 %v3164, %v3276
          %v3293 = vmul.f32 %v3165, %v3277
          %v3294 = vmul.f32 %v3166, %v3278
          %v3296 = vlaneseq
          %v3297 = vshrl.u32 %v3296, 7
          %v3298 = vsub.s32 0, %v3297
          %v3299 = vrot.slane %v3085, %v3298
          %v3301 = vmul.f32 %v3279, %v3299
          %v3302 = vmul.f32 %v3280, %v3299
          %v3303 = vmul.f32 %v3281, %v3299
          %v3304 = vmul.f32 %v3282, %v3299
          %v3305 = vmul.f32 %v3283, %v3299
          %v3306 = vmul.f32 %v3284, %v3299
          %v3307 = vmul.f32 %v3285, %v3299
          %v3308 = vmul.f32 %v3286, %v3299
          %v3309 = vmul.f32 %v3287, %v3299
          %v3310 = vmul.f32 %v3288, %v3299
          %v3311 = vmul.f32 %v3289, %v3299
          %v3312 = vmul.f32 %v3290, %v3299
          %v3313 = vmul.f32 %v3291, %v3299
          %v3314 = vmul.f32 %v3292, %v3299
          %v3315 = vmul.f32 %v3293, %v3299
          %v3316 = vmul.f32 %v3294, %v3299
          %v3318 = vlaneseq
          %v3319 = vshrl.u32 %v3318, 7
          %v3320 = vsub.s32 0, %v3319
          %v3321 = vrot.slane %v3086, %v3320
          %v3323 = vadd.f32 %v3301, %v3321
          %v3324 = vadd.f32 %v3302, %v3321
          %v3325 = vadd.f32 %v3303, %v3321
          %v3326 = vadd.f32 %v3304, %v3321
          %v3327 = vadd.f32 %v3305, %v3321
          %v3328 = vadd.f32 %v3306, %v3321
          %v3329 = vadd.f32 %v3307, %v3321
          %v3330 = vadd.f32 %v3308, %v3321
          %v3331 = vadd.f32 %v3309, %v3321
          %v3332 = vadd.f32 %v3310, %v3321
          %v3333 = vadd.f32 %v3311, %v3321
          %v3334 = vadd.f32 %v3312, %v3321
          %v3335 = vadd.f32 %v3313, %v3321
          %v3336 = vadd.f32 %v3314, %v3321
          %v3337 = vadd.f32 %v3315, %v3321
          %v3338 = vadd.f32 %v3316, %v3321
          %v3339 = vadd.f32 %v3323, %v3324
          %v3340 = vrot.slane %v3339, 4
          %v3341 = vadd.f32 %v3339, %v3340
          %v3342 = vrot.slane %v3341, 2
          %v3343 = vadd.f32 %v3341, %v3342
          %v3344 = vrot.slane %v3343, 1
          %v3345 = vadd.f32 %v3343, %v3344
          %v3346 = vadd.f32 %v3325, %v3326
          %v3347 = vrot.slane %v3346, 4
          %v3348 = vadd.f32 %v3346, %v3347
          %v3349 = vrot.slane %v3348, 2
          %v3350 = vadd.f32 %v3348, %v3349
          %v3351 = vrot.slane %v3350, 1
          %v3352 = vadd.f32 %v3350, %v3351
          %v3353 = vadd.f32 %v3327, %v3328
          %v3354 = vrot.slane %v3353, 4
          %v3355 = vadd.f32 %v3353, %v3354
          %v3356 = vrot.slane %v3355, 2
          %v3357 = vadd.f32 %v3355, %v3356
          %v3358 = vrot.slane %v3357, 1
          %v3359 = vadd.f32 %v3357, %v3358
          %v3360 = vadd.f32 %v3329, %v3330
          %v3361 = vrot.slane %v3360, 4
          %v3362 = vadd.f32 %v3360, %v3361
          %v3363 = vrot.slane %v3362, 2
          %v3364 = vadd.f32 %v3362, %v3363
          %v3365 = vrot.slane %v3364, 1
          %v3366 = vadd.f32 %v3364, %v3365
          %v3367 = vadd.f32 %v3331, %v3332
          %v3368 = vrot.slane %v3367, 4
          %v3369 = vadd.f32 %v3367, %v3368
          %v3370 = vrot.slane %v3369, 2
          %v3371 = vadd.f32 %v3369, %v3370
          %v3372 = vrot.slane %v3371, 1
          %v3373 = vadd.f32 %v3371, %v3372
          %v3374 = vadd.f32 %v3333, %v3334
          %v3375 = vrot.slane %v3374, 4
          %v3376 = vadd.f32 %v3374, %v3375
          %v3377 = vrot.slane %v3376, 2
          %v3378 = vadd.f32 %v3376, %v3377
          %v3379 = vrot.slane %v3378, 1
          %v3380 = vadd.f32 %v3378, %v3379
          %v3381 = vadd.f32 %v3335, %v3336
          %v3382 = vrot.slane %v3381, 4
          %v3383 = vadd.f32 %v3381, %v3382
          %v3384 = vrot.slane %v3383, 2
          %v3385 = vadd.f32 %v3383, %v3384
          %v3386 = vrot.slane %v3385, 1
          %v3387 = vadd.f32 %v3385, %v3386
          %v3388 = vadd.f32 %v3337, %v3338
          %v3389 = vrot.slane %v3388, 4
          %v3390 = vadd.f32 %v3388, %v3389
          %v3391 = vrot.slane %v3390, 2
          %v3392 = vadd.f32 %v3390, %v3391
          %v3393 = vrot.slane %v3392, 1
          %v3394 = vadd.f32 %v3392, %v3393
          %v3395 = vrcp.pop 16.0
          %v3396 = vmul.f32 %v3345, %v3395
          %v3397 = vmul.f32 %v3352, %v3395
          %v3398 = vmul.f32 %v3359, %v3395
          %v3399 = vmul.f32 %v3366, %v3395
          %v3400 = vmul.f32 %v3373, %v3395
          %v3401 = vmul.f32 %v3380, %v3395
          %v3402 = vmul.f32 %v3387, %v3395
          %v3403 = vmul.f32 %v3394, %v3395
          %v3404 = vpack.c.bf16 %v3396, %v3396
          %v3405 = vpack.c.bf16 %v3397, %v3397
          %v3406 = vpack.c.bf16 %v3398, %v3398
          %v3407 = vpack.c.bf16 %v3399, %v3399
          %v3408 = vpack.c.bf16 %v3400, %v3400
          %v3409 = vpack.c.bf16 %v3401, %v3401
          %v3410 = vpack.c.bf16 %v3402, %v3402
          %v3411 = vpack.c.bf16 %v3403, %v3403
          %v3412 = vld [vmem:[%s16] sm:$0xf]
          %v3413 = vld [vmem:[%s16 + $0x4] sm:$0xf]
          %v3414 = vld [vmem:[%s16 + $0x8] sm:$0xf]
          %v3415 = vld [vmem:[%s16 + $0xc] sm:$0xf]
          %v3416 = vld [vmem:[%s16 + $0x10] sm:$0xf]
          %v3417 = vld [vmem:[%s16 + $0x14] sm:$0xf]
          %v3418 = vld [vmem:[%s16 + $0x18] sm:$0xf]
          %v3419 = vld [vmem:[%s16 + $0x1c] sm:$0xf]
          %v3420 = vld [vmem:[%s16 + $0x20] sm:$0xf]
          %v3421 = vld [vmem:[%s16 + $0x24] sm:$0xf]
          %v3422 = vld [vmem:[%s16 + $0x28] sm:$0xf]
          %v3423 = vld [vmem:[%s16 + $0x2c] sm:$0xf]
          %v3424 = vld [vmem:[%s16 + $0x30] sm:$0xf]
          %v3425 = vld [vmem:[%s16 + $0x34] sm:$0xf]
          %v3426 = vld [vmem:[%s16 + $0x38] sm:$0xf]
          %v3427 = vld [vmem:[%s16 + $0x3c] sm:$0xf]
          %v3428 = vld [vmem:[%s17] sm:$0x1]
          %v3430 = vlaneseq
          %v3431 = vshrl.u32 %v3430, 7
          %v3432 = vsub.s32 0, %v3431
          %v3433 = vrot.slane %v3428, %v3432
          %v3443 = vunpack.c.l.b16 %v3404
          %v3444 = vunpack.c.l.b16 %v3405
          %v3445 = vunpack.c.l.b16 %v3406
          %v3446 = vunpack.c.l.b16 %v3407
          %v3447 = vunpack.c.l.b16 %v3408
          %v3448 = vunpack.c.l.b16 %v3409
          %v3449 = vunpack.c.l.b16 %v3410
          %v3450 = vunpack.c.l.b16 %v3411
          %vm3451 = vcmask 1041409
          %v3452 = vsel %vm3451, %v3444, %v3443
          %vm3453 = vcmask 1042434
          %v3454 = vsel %vm3453, %v3445, %v3452
          %vm3455 = vcmask 1043459
          %v3456 = vsel %vm3455, %v3446, %v3454
          %vm3457 = vcmask 1044484
          %v3458 = vsel %vm3457, %v3447, %v3456
          %vm3459 = vcmask 1045509
          %v3460 = vsel %vm3459, %v3448, %v3458
          %vm3461 = vcmask 1046534
          %v3462 = vsel %vm3461, %v3449, %v3460
          %vm3463 = vcmask 1047559
          %v3464 = vsel %vm3463, %v3450, %v3462
          %v3465 = vpack.c.b16 %v3464, %v3464
          %v3483 = vunpack.c.l.b16 %v3412
          %v3484 = vunpack.c.l.b16 %v3413
          %v3485 = vunpack.c.l.b16 %v3414
          %v3486 = vunpack.c.l.b16 %v3415
          %v3487 = vunpack.c.l.b16 %v3416
          %v3488 = vunpack.c.l.b16 %v3417
          %v3489 = vunpack.c.l.b16 %v3418
          %v3490 = vunpack.c.l.b16 %v3419
          %v3491 = vunpack.c.l.b16 %v3420
          %v3492 = vunpack.c.l.b16 %v3421
          %v3493 = vunpack.c.l.b16 %v3422
          %v3494 = vunpack.c.l.b16 %v3423
          %v3495 = vunpack.c.l.b16 %v3424
          %v3496 = vunpack.c.l.b16 %v3425
          %v3497 = vunpack.c.l.b16 %v3426
          %v3498 = vunpack.c.l.b16 %v3427
          %v3499 = vpack.c.b16 %v3484, %v3483
          %v3500 = vpack.c.b16 %v3486, %v3485
          %v3501 = vpack.c.b16 %v3488, %v3487
          %v3502 = vpack.c.b16 %v3490, %v3489
          %v3503 = vpack.c.b16 %v3492, %v3491
          %v3504 = vpack.c.b16 %v3494, %v3493
          %v3505 = vpack.c.b16 %v3496, %v3495
          %v3506 = vpack.c.b16 %v3498, %v3497
          %3515 = vmatprep.subr.bf16.mxu0 0
          %3516 = vmatpush1.bf16.msra.mxu0 %v3499
          %3517 = vmatprep.subr.bf16.mxu0 0
          %3518 = vmatpush1.bf16.msra.mxu0 %v3500
          %3519 = vmatprep.subr.bf16.mxu0 0
          %3520 = vmatpush1.bf16.msra.mxu0 %v3501
          %3521 = vmatprep.subr.bf16.mxu0 0
          %3522 = vmatpush1.bf16.msra.mxu0 %v3502
          %3523 = vmatprep.subr.bf16.mxu0 0
          %3524 = vmatpush1.bf16.msra.mxu0 %v3503
          %3525 = vmatprep.subr.bf16.mxu0 0
          %3526 = vmatpush1.bf16.msra.mxu0 %v3504
          %3527 = vmatprep.subr.bf16.mxu0 0
          %3528 = vmatpush1.bf16.msra.mxu0 %v3505
          %3529 = vmatprep.subr.bf16.mxu0 0
          %3530 = vmatpush1.bf16.msra.mxu0 %v3506
          %3531 = vmatprep.subr.bf16.mxu0 0
          %3532 = vmatpush1.bf16.msra.mxu0 0
          %3533 = vmatprep.subr.bf16.mxu0 0
          %3534 = vmatpush1.bf16.msra.mxu0 0
          %3535 = vmatprep.subr.bf16.mxu0 0
          %3536 = vmatpush1.bf16.msra.mxu0 0
          %3537 = vmatprep.subr.bf16.mxu0 0
          %3538 = vmatpush1.bf16.msra.mxu0 0
          %3539 = vmatprep.subr.bf16.mxu0 0
          %3540 = vmatpush1.bf16.msra.mxu0 0
          %3541 = vmatprep.subr.bf16.mxu0 0
          %3542 = vmatpush1.bf16.msra.mxu0 0
          %3543 = vmatprep.subr.bf16.mxu0 0
          %3544 = vmatpush1.bf16.msra.mxu0 0
          %3545 = vmatprep.subr.bf16.mxu0 0
          %3546 = vmatpush1.bf16.msra.mxu0 0
          %3547 = vmatprep.mubr.bf16.mxu0 0
          %3548 = vmatmul.mubr.bf16.gmra.mrb[0].mxu0 %v3465
          %v3549 = vpop.f32.mrb[0].mxu0
          %v3550 = vadd.f32 %v3433, %v3549
          %v3551 = vpop.f32.mrb[0].mxu0
          %v3552 = vpop.f32.mrb[0].mxu0
          %v3553 = vpop.f32.mrb[0].mxu0
          %3554 = vdwg.mxu0
          %3555 = vst [vmem:[#allocation24] sm:$0xff] %v3550
        $region152: #{tpu_custom_call.1} parent=91 // pred_fallthru
          _
        // Predicated region
        $region153: #{tpu_custom_call.1} parent=91 // pred_check
          %p3556 = pneg %p520
        $region154: #{tpu_custom_call.1} parent=91 // pred_check_branch
          %3558 = sbr.rel (%p3556) target = $region156
        $region155: #{tpu_custom_call.1} parent=91 // pred_region
          %s3560 = ssub.s32 128, 128
          %3561 = vsyncadd [#allocation5], %s3560
          %s3562 = smul.addr %s51, 128
          %s3563 = scalar_lea.hbm %s18, %s3562
          %s3565 = sshll.u32 [#allocation24], 4
          %s3566 = int_to_ptr.vmem [resolvable:$true] %s3565
          %3568 = dma.vmem_to_hbm [thread:$0]  %s3566, 128, %s3563, [#allocation5]
        $region156: #{tpu_custom_call.1} parent=91 // pred_fallthru
          _
        // Predicated region
        $region157: #{tpu_custom_call.1} parent=91 // pred_check
          %p3569 = pneg %p520
        $region158: #{tpu_custom_call.1} parent=91 // pred_check_branch
          %3571 = sbr.rel (%p3569) target = $region160
        $region159: #{tpu_custom_call.1} parent=91 // pred_region
          %3572 = dma.done [#allocation5], 128
        $region160: #{tpu_custom_call.1} parent=91 // pred_fallthru
          _
      $region92: #{tpu_custom_call.1} parent=5 // pred_fallthru
        _
      %p3573 = scmp.le.s32.totalorder 2, %s42
      // Predicated region
      $region161: #{tpu_custom_call.1} parent=5 // pred_check
        %p3574 = pneg %p3573
      $region162: #{tpu_custom_call.1} parent=5 // pred_check_branch
        %3576 = sbr.rel (%p3574) target = $region164
      $region163: #{tpu_custom_call.1} parent=5 // pred_region
        %s3577 = ssub.s32 %s42, 2
      $region164: #{tpu_custom_call.1} parent=5 // pred_fallthru
        _
    $region6: #{tpu_custom_call.1} parent=1 // loop_footer
      %s46 = sadd.s32 1, %s42
    $region7: #{tpu_custom_call.1} parent=1 // loop_footer_branch
      %41 = sbr.rel target = $region3
    $region8: #{tpu_custom_call.1} parent=1 // loop_exit
      _
    %3578 = vsyncpa [#allocation4], 1
    %s3579 = scalar_lea.sflag [#allocation4], 1
    %3580 = vsyncpa %s3579, 1
    %3581 = vsyncpa [#allocation7], 1
    %s3582 = scalar_lea.sflag [#allocation7], 1
    %3583 = vsyncpa %s3582, 1
    %3584 = vsyncpa [#allocation10], 1
    %s3585 = scalar_lea.sflag [#allocation10], 1
    %3586 = vsyncpa %s3585, 1
    %3587 = vsyncpa [#allocation13], 1
    %s3588 = scalar_lea.sflag [#allocation13], 1
    %3589 = vsyncpa %s3588, 1
    %3590 = vsyncpa [#allocation16], 1
    %s3591 = scalar_lea.sflag [#allocation16], 1
    %3592 = vsyncpa %s3591, 1
    %3593 = vsyncpa [#allocation19], 1
    %s3594 = scalar_lea.sflag [#allocation19], 1
    %3595 = vsyncpa %s3594, 1
    %3596 = vsyncpa [#allocation22], 1
    %3597 = vsyncpa [#allocation5], 1
    %s3598 = scalar_lea.sflag [#allocation5], 1
    %3599 = vsyncpa %s3598, 1

</llo_original>
